<compile_context>
chip_gen: v5e
topology: v5e:2x2
jax: 0.10.0
libtpu: 0.0.40
codegen_flags: <defaults>
</compile_context>

<pallas_src>
import functools

import jax
import jax.numpy as jnp
from jax import lax
from jax.experimental import pallas as pl
from jax.experimental.pallas import tpu as pltpu


def _round_up(x, m):
    return (x + m - 1) // m * m


def _pick_tc(T, B_pad, Hp, Dp, budget_bytes=40 << 20):
    """Largest time-chunk (divisor of T, capped at 128) that fits the budget."""
    per_row = (2 * 4 * Hp * 4        # gx_f + gx_b scratch (f32)
               + 2 * Hp * 4          # hseq_f + hseq_b scratch (f32)
               + 2 * 2 * Dp * 2      # x fwd/bwd chunks, double-buffered, bf16
               + 2 * 2 * Dp * 4)     # y fwd/bwd partials, double-buffered, f32
    tc = int(max(1, min(T, budget_bytes // (per_row * B_pad), 128)))
    while T % tc:
        tc -= 1
    return tc


def _vmem_limit_bytes(TcB, B_pad, Hp, Dp):
    scratch = (2 * TcB * 4 * Hp * 4          # gx_f / gx_b
               + 2 * TcB * Hp * 4            # hseq_f / hseq_b
               + 2 * 2 * B_pad * Hp * 4)     # h/c carries
    io = (2 * 2 * TcB * Dp * 2               # x chunks (2 dirs, 2 bufs, bf16)
          + 2 * 2 * TcB * Dp * 4)            # y partials (2 dirs, 2 bufs, f32)
    weights = (2 * Dp * 4 * Hp * 2           # W_ih (bf16)
               + 2 * Hp * 4 * Hp * 4         # W_hh (f32)
               + 2 * 4 * Hp * 4              # gate bias
               + 2 * Hp * Dp * 2)            # W_fc halves (bf16)
    total = scratch + io + 2 * weights       # weights conservatively x2 buffers
    return int(min(total * 1.25 + (8 << 20), 128 << 20))


# ----------------------------------------------------------------------------
# Fused kernel: one time-chunk per grid step, BOTH directions interleaved.
# Gate order matches PyTorch: i, f, g, o (each Hp lanes, lane-aligned).
# ----------------------------------------------------------------------------
def _bilstm_fc_kernel(xf_ref, xb_ref, wih_ref, whh_ref, bg_ref, wfc_ref,
                      yf_ref, yb_ref,
                      gxf, gxb, hsf, hsb, carry,
                      *, Tc, B_pad, Hp):
    c_idx = pl.program_id(0)

    # Zero the h/c carries for both directions on the first chunk.
    @pl.when(c_idx == 0)
    def _():
        carry[...] = jnp.zeros_like(carry)

    wih_f, wih_b = wih_ref[0], wih_ref[1]    # (Dp, 4Hp) bf16
    whh_f, whh_b = whh_ref[0], whh_ref[1]    # (Hp, 4Hp) f32
    bg_f, bg_b = bg_ref[0], bg_ref[1]        # (1, 4Hp)  f32
    wfc_f, wfc_b = wfc_ref[0], wfc_ref[1]    # (Hp, Dp)  bf16

    # (1) Input projection for the whole chunk: bf16 operands, f32 accumulate.
    gxf[...] = jnp.dot(xf_ref[...], wih_f, preferred_element_type=jnp.float32)
    gxb[...] = jnp.dot(xb_ref[...], wih_b, preferred_element_type=jnp.float32)

    # (2) Interleaved forward/backward recurrence over the chunk (f32).
    def step(t, cy):
        h_f, c_f, h_b, c_b = cy
        off_f = pl.multiple_of(t * B_pad, B_pad)
        off_b = pl.multiple_of((Tc - 1 - t) * B_pad, B_pad)

        g_f = (gxf[pl.ds(off_f, B_pad), :]
               + jnp.dot(h_f, whh_f, preferred_element_type=jnp.float32)
               + bg_f)
        g_b = (gxb[pl.ds(off_b, B_pad), :]
               + jnp.dot(h_b, whh_b, preferred_element_type=jnp.float32)
               + bg_b)

        def gates(g, c_prev):
            i_g = jax.nn.sigmoid(g[:, 0 * Hp:1 * Hp])
            f_g = jax.nn.sigmoid(g[:, 1 * Hp:2 * Hp])
            g_g = jnp.tanh(g[:, 2 * Hp:3 * Hp])
            o_g = jax.nn.sigmoid(g[:, 3 * Hp:4 * Hp])
            c_new = f_g * c_prev + i_g * g_g
            h_new = o_g * jnp.tanh(c_new)
            return h_new, c_new

        h_f, c_f = gates(g_f, c_f)
        h_b, c_b = gates(g_b, c_b)
        hsf[pl.ds(off_f, B_pad), :] = h_f
        hsb[pl.ds(off_b, B_pad), :] = h_b
        return h_f, c_f, h_b, c_b

    init = (carry[0, 0], carry[0, 1], carry[1, 0], carry[1, 1])
    h_f, c_f, h_b, c_b = lax.fori_loop(0, Tc, step, init, unroll=min(8, Tc))
    carry[0, 0] = h_f
    carry[0, 1] = c_f
    carry[1, 0] = h_b
    carry[1, 1] = c_b

    # (3) Per-direction fc partials for this chunk: bf16 operands, f32 acc,
    #     lane-dense (Dp multiple of 128) stores.
    yf_ref[...] = jnp.dot(hsf[...].astype(jnp.bfloat16), wfc_f,
                          preferred_element_type=jnp.float32).astype(yf_ref.dtype)
    yb_ref[...] = jnp.dot(hsb[...].astype(jnp.bfloat16), wfc_b,
                          preferred_element_type=jnp.float32).astype(yb_ref.dtype)


# ----------------------------------------------------------------------------
# Wrapper: pad, call the fused kernel over time chunks, combine partials.
# ----------------------------------------------------------------------------
def mamba_block_forward(x_btd, prep, tc=None):
    B, T, D = x_btd.shape
    Hp = prep["whh"].shape[1]
    Dp = prep["wfc"].shape[2]
    B_pad = _round_up(B, 8)

    Tc = _pick_tc(T, B_pad, Hp, Dp) if tc is None else int(tc)
    assert T % Tc == 0
    NC = T // Tc
    TcB = Tc * B_pad

    # Pad batch -> B_pad, features -> Dp; time-major flatten; bf16 for the MXU.
    x_p = jnp.pad(x_btd, ((0, B_pad - B), (0, 0), (0, Dp - D)))
    x2d = jnp.transpose(x_p, (1, 0, 2)).reshape(T * B_pad, Dp).astype(jnp.bfloat16)

    kernel = functools.partial(_bilstm_fc_kernel, Tc=Tc, B_pad=B_pad, Hp=Hp)

    y_f, y_b = pl.pallas_call(
        kernel,
        out_shape=(jax.ShapeDtypeStruct((T * B_pad, Dp), jnp.float32),
                   jax.ShapeDtypeStruct((T * B_pad, Dp), jnp.float32)),
        grid_spec=pltpu.PrefetchScalarGridSpec(
            num_scalar_prefetch=0,
            grid=(NC,),                                        # time chunks
            in_specs=[
                pl.BlockSpec((TcB, Dp), lambda c: (c, 0)),             # x (fwd)
                pl.BlockSpec((TcB, Dp), lambda c: (NC - 1 - c, 0)),    # x (bwd)
                pl.BlockSpec((2, Dp, 4 * Hp), lambda c: (0, 0, 0)),    # W_ih^T
                pl.BlockSpec((2, Hp, 4 * Hp), lambda c: (0, 0, 0)),    # W_hh^T
                pl.BlockSpec((2, 1, 4 * Hp), lambda c: (0, 0, 0)),     # b_ih+b_hh
                pl.BlockSpec((2, Hp, Dp), lambda c: (0, 0, 0)),        # W_fc halves
            ],
            out_specs=[
                pl.BlockSpec((TcB, Dp), lambda c: (c, 0)),             # y fwd part
                pl.BlockSpec((TcB, Dp), lambda c: (NC - 1 - c, 0)),    # y bwd part
            ],
            scratch_shapes=[
                pltpu.VMEM((TcB, 4 * Hp), jnp.float32),   # fwd gate projections
                pltpu.VMEM((TcB, 4 * Hp), jnp.float32),   # bwd gate projections
                pltpu.VMEM((TcB, Hp), jnp.float32),       # fwd hidden sequence
                pltpu.VMEM((TcB, Hp), jnp.float32),       # bwd hidden sequence
                pltpu.VMEM((2, 2, B_pad, Hp), jnp.float32),  # h/c carries
            ],
        ),
        compiler_params=pltpu.CompilerParams(
            dimension_semantics=("arbitrary",),            # sequential carry
            vmem_limit_bytes=_vmem_limit_bytes(TcB, B_pad, Hp, Dp),
        ),
    )(x2d, x2d, prep["wih"], prep["whh"], prep["bg"], prep["wfc"])

    y = (y_f + y_b).reshape(T, B_pad, Dp)[:, :B, :D] + prep["b_fc"]
    return jnp.transpose(y, (1, 0, 2))                     # (B, T, D)


# ----------------------------------------------------------------------------
# Parameter handling.
#   init_params: raw PyTorch-shaped weights (nn.LSTM / nn.Linear layout).
#   prepare_params: transpose, pad H->Hp and D->Dp (multiples of 128), stack
#                   per direction, bf16 copies of the throughput-matmul weights.
# ----------------------------------------------------------------------------
def init_params(key, input_dim, hidden_dim):
    D, H = input_dim, hidden_dim
    k = 1.0 / jnp.sqrt(jnp.float32(H))
    keys = jax.random.split(key, 10)

    def u(kk, shape, bound=k):
        return jax.random.uniform(kk, shape, jnp.float32, -bound, bound)

    raw = {
        "wih_f": u(keys[0], (4 * H, D)), "whh_f": u(keys[1], (4 * H, H)),
        "bih_f": u(keys[2], (4 * H,)),   "bhh_f": u(keys[3], (4 * H,)),
        "wih_b": u(keys[4], (4 * H, D)), "whh_b": u(keys[5], (4 * H, H)),
        "bih_b": u(keys[6], (4 * H,)),   "bhh_b": u(keys[7], (4 * H,)),
    }
    kf = 1.0 / jnp.sqrt(jnp.float32(2 * H))
    raw["w_fc"] = u(keys[8], (D, 2 * H), kf)
    raw["b_fc"] = u(keys[9], (D,), kf)
    return raw


def prepare_params(raw, input_dim, hidden_dim):
    D, H = input_dim, hidden_dim
    Dp = _round_up(D, 128)
    Hp = _round_up(H, 128)

    def pad_gate_cols(w):  # (..., 4H) -> (..., 4Hp), zero-pad each gate block
        w4 = w.reshape(w.shape[:-1] + (4, H))
        w4 = jnp.pad(w4, [(0, 0)] * (w4.ndim - 1) + [(0, Hp - H)])
        return w4.reshape(w.shape[:-1] + (4 * Hp,))

    def prep_dir(wih, whh, bih, bhh):
        wih_t = pad_gate_cols(wih.T)                          # (D, 4Hp)
        wih_t = jnp.pad(wih_t, ((0, Dp - D), (0, 0)))         # (Dp, 4Hp)
        whh_t = pad_gate_cols(whh.T)                          # (H, 4Hp)
        whh_t = jnp.pad(whh_t, ((0, Hp - H), (0, 0)))         # (Hp, 4Hp)
        bg = pad_gate_cols((bih + bhh)[None, :])              # (1, 4Hp)
        return wih_t.astype(jnp.bfloat16), whh_t, bg

    wih_f, whh_f, bg_f = prep_dir(raw["wih_f"], raw["whh_f"],
                                  raw["bih_f"], raw["bhh_f"])
    wih_b, whh_b, bg_b = prep_dir(raw["wih_b"], raw["whh_b"],
                                  raw["bih_b"], raw["bhh_b"])

    wfc_t = raw["w_fc"].T                                     # (2H, D)

    def pad_fc(w):                                            # (H, D) -> (Hp, Dp)
        return jnp.pad(w, ((0, Hp - H), (0, Dp - D))).astype(jnp.bfloat16)

    return {
        "wih": jnp.stack([wih_f, wih_b]),    # (2, Dp, 4Hp) bf16
        "whh": jnp.stack([whh_f, whh_b]),    # (2, Hp, 4Hp) f32
        "bg":  jnp.stack([bg_f, bg_b]),      # (2, 1, 4Hp)  f32
        "wfc": jnp.stack([pad_fc(wfc_t[:H]), pad_fc(wfc_t[H:])]),  # (2, Hp, Dp)
        "b_fc": raw["b_fc"],                 # (D,)
    }


# ----------------------------------------------------------------------------
# Pure-JAX reference (unpadded f32, PyTorch semantics) for verification only.
# ----------------------------------------------------------------------------
def _lstm_dir_ref(x_tbd, wih, whh, bih, bhh, H, reverse):
    B = x_tbd.shape[1]
    xs = x_tbd[::-1] if reverse else x_tbd
    wih_t, whh_t = wih.T, whh.T
    b = (bih + bhh)[None, :]

    def step(carry, x_t):
        h, c = carry
        g = x_t @ wih_t + h @ whh_t + b
        i = jax.nn.sigmoid(g[:, 0 * H:1 * H])
        f = jax.nn.sigmoid(g[:, 1 * H:2 * H])
        gg = jnp.tanh(g[:, 2 * H:3 * H])
        o = jax.nn.sigmoid(g[:, 3 * H:4 * H])
        c = f * c + i * gg
        h = o * jnp.tanh(c)
        return (h, c), h

    h0 = jnp.zeros((B, H), jnp.float32)
    _, hs = lax.scan(step, (h0, h0), xs)
    return hs[::-1] if reverse else hs


def mamba_block_ref(x_btd, raw, H):
    x_tbd = jnp.transpose(x_btd, (1, 0, 2))
    hf = _lstm_dir_ref(x_tbd, raw["wih_f"], raw["whh_f"],
                       raw["bih_f"], raw["bhh_f"], H, False)
    hb = _lstm_dir_ref(x_tbd, raw["wih_b"], raw["whh_b"],
                       raw["bih_b"], raw["bhh_b"], H, True)
    h = jnp.concatenate([hf, hb], axis=-1)
    y = h @ raw["w_fc"].T + raw["b_fc"]
    return jnp.transpose(y, (1, 0, 2))


if __name__ == "__main__":
    B, T, D, H = 2, 8, 16, 32  # batch, seq, input_dim, hidden_dim (small demo)

    key = jax.random.PRNGKey(0)
    kx, kp = jax.random.split(key)
    x = jax.random.normal(kx, (B, T, D), jnp.float32)

    raw = init_params(kp, D, H)
    prep = prepare_params(raw, D, H)
    ref = jax.block_until_ready(mamba_block_ref(x, raw, H))

    # Single-chunk path (Tc == T).
    out = jax.block_until_ready(mamba_block_forward(x, prep))
    assert out.shape == (B, T, D)
    # bf16 operands on the projection / fc matmuls (f32 accumulate) -> looser tol.
    assert jnp.allclose(out, ref, rtol=3e-2, atol=3e-2), float(
        jnp.max(jnp.abs(out - ref)))

    # Multi-chunk path (grid > 1, carries across chunks).
    out_c = jax.block_until_ready(mamba_block_forward(x, prep, tc=2))
    assert jnp.allclose(out_c, ref, rtol=3e-2, atol=3e-2), float(
        jnp.max(jnp.abs(out_c - ref)))

    print("KERNEL_OK")
</pallas_src>

<mosaic_0001>
module attributes {stable_mosaic.version = 11 : i64} {
  func.func @_bilstm_fc_kernel(%arg0: i32, %arg1: memref<64x128xbf16, #tpu.memory_space<vmem>>, %arg2: memref<64x128xbf16, #tpu.memory_space<vmem>>, %arg3: memref<2x128x512xbf16, #tpu.memory_space<vmem>>, %arg4: memref<2x128x512xf32, #tpu.memory_space<vmem>>, %arg5: memref<2x1x512xf32, #tpu.memory_space<vmem>>, %arg6: memref<2x128x128xbf16, #tpu.memory_space<vmem>>, %arg7: memref<64x128xf32, #tpu.memory_space<vmem>>, %arg8: memref<64x128xf32, #tpu.memory_space<vmem>>, %arg9: memref<64x512xf32, #tpu.memory_space<vmem>>, %arg10: memref<64x512xf32, #tpu.memory_space<vmem>>, %arg11: memref<64x128xf32, #tpu.memory_space<vmem>>, %arg12: memref<64x128xf32, #tpu.memory_space<vmem>>, %arg13: memref<2x2x8x128xf32, #tpu.memory_space<vmem>>) attributes {dimension_semantics = [#tpu.dimension_semantics<arbitrary>], iteration_bounds = array<i64: 1>, scalar_prefetch = 0 : i64, scratch_operands = 5 : i64, tpu.core_type = #tpu.core_type<tc>, window_params = [{transform_indices = @transform_0, window_bounds = array<i64: 64, 128>}, {transform_indices = @transform_1, window_bounds = array<i64: 64, 128>}, {pipeline_mode = #tpu.pipeline_mode<synchronous>, transform_indices = @transform_2, window_bounds = array<i64: 2, 128, 512>}, {pipeline_mode = #tpu.pipeline_mode<synchronous>, transform_indices = @transform_3, window_bounds = array<i64: 2, 128, 512>}, {pipeline_mode = #tpu.pipeline_mode<synchronous>, transform_indices = @transform_4, window_bounds = array<i64: 2, 1, 512>}, {pipeline_mode = #tpu.pipeline_mode<synchronous>, transform_indices = @transform_5, window_bounds = array<i64: 2, 128, 128>}, {transform_indices = @transform_6, window_bounds = array<i64: 64, 128>}, {transform_indices = @transform_7, window_bounds = array<i64: 64, 128>}]} {
    %c0_i32 = arith.constant 0 : i32
    %0 = arith.cmpi eq, %arg0, %c0_i32 : i32
    %1 = arith.extui %0 : i1 to i32
    %c0_i32_0 = arith.constant 0 : i32
    %2 = arith.cmpi ne, %1, %c0_i32_0 : i32
    scf.if %2 {
      %cst_195 = arith.constant 0.000000e+00 : f32
      %621 = vector.broadcast %cst_195 : f32 to vector<2x2x8x128xf32>
      %c0_196 = arith.constant 0 : index
      %c0_197 = arith.constant 0 : index
      %c0_198 = arith.constant 0 : index
      %c0_199 = arith.constant 0 : index
      %622 = vector.load %arg13[%c0_196, %c0_197, %c0_198, %c0_199] : memref<2x2x8x128xf32, #tpu.memory_space<vmem>>, vector<2x2x8x128xf32>
      tpu.vector_store %arg13[%c0_196, %c0_197, %c0_198, %c0_199], %621 {strides = array<i32>} : memref<2x2x8x128xf32, #tpu.memory_space<vmem>>, vector<2x2x8x128xf32>,
    } else {
    }
    %c0 = arith.constant 0 : index
    %c0_1 = arith.constant 0 : index
    %c0_2 = arith.constant 0 : index
    %3 = vector.load %arg3[%c0, %c0_1, %c0_2] : memref<2x128x512xbf16, #tpu.memory_space<vmem>>, vector<1x128x512xbf16>
    %4 = vector.shape_cast %3 : vector<1x128x512xbf16> to vector<128x512xbf16>
    %c1 = arith.constant 1 : index
    %c0_3 = arith.constant 0 : index
    %c0_4 = arith.constant 0 : index
    %5 = vector.load %arg3[%c1, %c0_3, %c0_4] : memref<2x128x512xbf16, #tpu.memory_space<vmem>>, vector<1x128x512xbf16>
    %6 = vector.shape_cast %5 : vector<1x128x512xbf16> to vector<128x512xbf16>
    %c0_5 = arith.constant 0 : index
    %c0_6 = arith.constant 0 : index
    %c0_7 = arith.constant 0 : index
    %7 = vector.load %arg4[%c0_5, %c0_6, %c0_7] : memref<2x128x512xf32, #tpu.memory_space<vmem>>, vector<1x128x512xf32>
    %8 = vector.shape_cast %7 : vector<1x128x512xf32> to vector<128x512xf32>
    %c1_8 = arith.constant 1 : index
    %c0_9 = arith.constant 0 : index
    %c0_10 = arith.constant 0 : index
    %9 = vector.load %arg4[%c1_8, %c0_9, %c0_10] : memref<2x128x512xf32, #tpu.memory_space<vmem>>, vector<1x128x512xf32>
    %10 = vector.shape_cast %9 : vector<1x128x512xf32> to vector<128x512xf32>
    %c0_11 = arith.constant 0 : index
    %c0_12 = arith.constant 0 : index
    %c0_13 = arith.constant 0 : index
    %11 = vector.load %arg5[%c0_11, %c0_12, %c0_13] : memref<2x1x512xf32, #tpu.memory_space<vmem>>, vector<1x1x512xf32>
    %12 = vector.shape_cast %11 : vector<1x1x512xf32> to vector<1x512xf32>
    %c1_14 = arith.constant 1 : index
    %c0_15 = arith.constant 0 : index
    %c0_16 = arith.constant 0 : index
    %13 = vector.load %arg5[%c1_14, %c0_15, %c0_16] : memref<2x1x512xf32, #tpu.memory_space<vmem>>, vector<1x1x512xf32>
    %14 = vector.shape_cast %13 : vector<1x1x512xf32> to vector<1x512xf32>
    %c0_17 = arith.constant 0 : index
    %c0_18 = arith.constant 0 : index
    %c0_19 = arith.constant 0 : index
    %15 = vector.load %arg6[%c0_17, %c0_18, %c0_19] : memref<2x128x128xbf16, #tpu.memory_space<vmem>>, vector<1x128x128xbf16>
    %16 = vector.shape_cast %15 : vector<1x128x128xbf16> to vector<128x128xbf16>
    %c1_20 = arith.constant 1 : index
    %c0_21 = arith.constant 0 : index
    %c0_22 = arith.constant 0 : index
    %17 = vector.load %arg6[%c1_20, %c0_21, %c0_22] : memref<2x128x128xbf16, #tpu.memory_space<vmem>>, vector<1x128x128xbf16>
    %18 = vector.shape_cast %17 : vector<1x128x128xbf16> to vector<128x128xbf16>
    %c0_23 = arith.constant 0 : index
    %c0_24 = arith.constant 0 : index
    %19 = vector.load %arg1[%c0_23, %c0_24] : memref<64x128xbf16, #tpu.memory_space<vmem>>, vector<64x128xbf16>
    %cst = arith.constant dense<0.000000e+00> : vector<64x512xf32>
    %20 = tpu.matmul %19, %4, %cst {dimension_numbers = #tpu.dot_dimension_numbers<[1], [0], [0], [1], [0, 0, 1, 1], [], []>} : vector<64x128xbf16>, vector<128x512xbf16>, vector<64x512xf32> -> vector<64x512xf32>
    %c0_25 = arith.constant 0 : index
    %c0_26 = arith.constant 0 : index
    %21 = vector.load %arg9[%c0_25, %c0_26] : memref<64x512xf32, #tpu.memory_space<vmem>>, vector<64x512xf32>
    tpu.vector_store %arg9[%c0_25, %c0_26], %20 {strides = array<i32>} : memref<64x512xf32, #tpu.memory_space<vmem>>, vector<64x512xf32>,
    %c0_27 = arith.constant 0 : index
    %c0_28 = arith.constant 0 : index
    %22 = vector.load %arg2[%c0_27, %c0_28] : memref<64x128xbf16, #tpu.memory_space<vmem>>, vector<64x128xbf16>
    %cst_29 = arith.constant dense<0.000000e+00> : vector<64x512xf32>
    %23 = tpu.matmul %22, %6, %cst_29 {dimension_numbers = #tpu.dot_dimension_numbers<[1], [0], [0], [1], [0, 0, 1, 1], [], []>} : vector<64x128xbf16>, vector<128x512xbf16>, vector<64x512xf32> -> vector<64x512xf32>
    %c0_30 = arith.constant 0 : index
    %c0_31 = arith.constant 0 : index
    %24 = vector.load %arg10[%c0_30, %c0_31] : memref<64x512xf32, #tpu.memory_space<vmem>>, vector<64x512xf32>
    tpu.vector_store %arg10[%c0_30, %c0_31], %23 {strides = array<i32>} : memref<64x512xf32, #tpu.memory_space<vmem>>, vector<64x512xf32>,
    %c0_32 = arith.constant 0 : index
    %c0_33 = arith.constant 0 : index
    %c0_34 = arith.constant 0 : index
    %c0_35 = arith.constant 0 : index
    %25 = vector.load %arg13[%c0_32, %c0_33, %c0_34, %c0_35] : memref<2x2x8x128xf32, #tpu.memory_space<vmem>>, vector<1x1x8x128xf32>
    %26 = vector.shape_cast %25 : vector<1x1x8x128xf32> to vector<8x128xf32>
    %c0_36 = arith.constant 0 : index
    %c1_37 = arith.constant 1 : index
    %c0_38 = arith.constant 0 : index
    %c0_39 = arith.constant 0 : index
    %27 = vector.load %arg13[%c0_36, %c1_37, %c0_38, %c0_39] : memref<2x2x8x128xf32, #tpu.memory_space<vmem>>, vector<1x1x8x128xf32>
    %28 = vector.shape_cast %27 : vector<1x1x8x128xf32> to vector<8x128xf32>
    %c1_40 = arith.constant 1 : index
    %c0_41 = arith.constant 0 : index
    %c0_42 = arith.constant 0 : index
    %c0_43 = arith.constant 0 : index
    %29 = vector.load %arg13[%c1_40, %c0_41, %c0_42, %c0_43] : memref<2x2x8x128xf32, #tpu.memory_space<vmem>>, vector<1x1x8x128xf32>
    %30 = vector.shape_cast %29 : vector<1x1x8x128xf32> to vector<8x128xf32>
    %c1_44 = arith.constant 1 : index
    %c1_45 = arith.constant 1 : index
    %c0_46 = arith.constant 0 : index
    %c0_47 = arith.constant 0 : index
    %31 = vector.load %arg13[%c1_44, %c1_45, %c0_46, %c0_47] : memref<2x2x8x128xf32, #tpu.memory_space<vmem>>, vector<1x1x8x128xf32>
    %32 = vector.shape_cast %31 : vector<1x1x8x128xf32> to vector<8x128xf32>
    %c0_i32_48 = arith.constant 0 : i32
    %c8_i32 = arith.constant 8 : i32
    %33 = arith.muli %c0_i32_48, %c8_i32 : i32
    %34 = tpu.assume_multiple %33, 8 : i32
    %c7_i32 = arith.constant 7 : i32
    %35 = arith.subi %c7_i32, %c0_i32_48 : i32
    %c8_i32_49 = arith.constant 8 : i32
    %36 = arith.muli %35, %c8_i32_49 : i32
    %37 = tpu.assume_multiple %36, 8 : i32
    %38 = arith.index_cast %34 : i32 to index
    %c0_50 = arith.constant 0 : index
    %39 = vector.load %arg9[%38, %c0_50] : memref<64x512xf32, #tpu.memory_space<vmem>>, vector<8x512xf32>
    %cst_51 = arith.constant dense<0.000000e+00> : vector<8x512xf32>
    %40 = tpu.matmul %26, %8, %cst_51 {dimension_numbers = #tpu.dot_dimension_numbers<[1], [0], [0], [1], [0, 0, 1, 1], [], []>} : vector<8x128xf32>, vector<128x512xf32>, vector<8x512xf32> -> vector<8x512xf32>
    %41 = arith.addf %39, %40 : vector<8x512xf32>
    %42 = vector.broadcast %12 : vector<1x512xf32> to vector<8x512xf32>
    %43 = arith.addf %41, %42 : vector<8x512xf32>
    %44 = arith.index_cast %37 : i32 to index
    %c0_52 = arith.constant 0 : index
    %45 = vector.load %arg10[%44, %c0_52] : memref<64x512xf32, #tpu.memory_space<vmem>>, vector<8x512xf32>
    %cst_53 = arith.constant dense<0.000000e+00> : vector<8x512xf32>
    %46 = tpu.matmul %30, %10, %cst_53 {dimension_numbers = #tpu.dot_dimension_numbers<[1], [0], [0], [1], [0, 0, 1, 1], [], []>} : vector<8x128xf32>, vector<128x512xf32>, vector<8x512xf32> -> vector<8x512xf32>
    %47 = arith.addf %45, %46 : vector<8x512xf32>
    %48 = vector.broadcast %14 : vector<1x512xf32> to vector<8x512xf32>
    %49 = arith.addf %47, %48 : vector<8x512xf32>
    %50 = vector.extract_strided_slice %43 {offsets = [0, 0], sizes = [8, 128], strides = [1, 1]} : vector<8x512xf32> to vector<8x128xf32>
    %51 = arith.negf %50 : vector<8x128xf32>
    %52 = math.exp %51 : vector<8x128xf32>
    %cst_54 = arith.constant 1.000000e+00 : f32
    %53 = vector.broadcast %cst_54 : f32 to vector<8x128xf32>
    %54 = arith.addf %53, %52 : vector<8x128xf32>
    %55 = arith.divf %53, %54 : vector<8x128xf32>
    %56 = vector.extract_strided_slice %43 {offsets = [0, 128], sizes = [8, 128], strides = [1, 1]} : vector<8x512xf32> to vector<8x128xf32>
    %57 = arith.negf %56 : vector<8x128xf32>
    %58 = math.exp %57 : vector<8x128xf32>
    %cst_55 = arith.constant 1.000000e+00 : f32
    %59 = vector.broadcast %cst_55 : f32 to vector<8x128xf32>
    %60 = arith.addf %59, %58 : vector<8x128xf32>
    %61 = arith.divf %59, %60 : vector<8x128xf32>
    %62 = vector.extract_strided_slice %43 {offsets = [0, 256], sizes = [8, 128], strides = [1, 1]} : vector<8x512xf32> to vector<8x128xf32>
    %63 = math.tanh %62 : vector<8x128xf32>
    %64 = vector.extract_strided_slice %43 {offsets = [0, 384], sizes = [8, 128], strides = [1, 1]} : vector<8x512xf32> to vector<8x128xf32>
    %65 = arith.negf %64 : vector<8x128xf32>
    %66 = math.exp %65 : vector<8x128xf32>
    %cst_56 = arith.constant 1.000000e+00 : f32
    %67 = vector.broadcast %cst_56 : f32 to vector<8x128xf32>
    %68 = arith.addf %67, %66 : vector<8x128xf32>
    %69 = arith.divf %67, %68 : vector<8x128xf32>
    %70 = arith.mulf %61, %28 : vector<8x128xf32>
    %71 = arith.mulf %55, %63 : vector<8x128xf32>
    %72 = arith.addf %70, %71 : vector<8x128xf32>
    %73 = math.tanh %72 : vector<8x128xf32>
    %74 = arith.mulf %69, %73 : vector<8x128xf32>
    %75 = vector.extract_strided_slice %49 {offsets = [0, 0], sizes = [8, 128], strides = [1, 1]} : vector<8x512xf32> to vector<8x128xf32>
    %76 = arith.negf %75 : vector<8x128xf32>
    %77 = math.exp %76 : vector<8x128xf32>
    %cst_57 = arith.constant 1.000000e+00 : f32
    %78 = vector.broadcast %cst_57 : f32 to vector<8x128xf32>
    %79 = arith.addf %78, %77 : vector<8x128xf32>
    %80 = arith.divf %78, %79 : vector<8x128xf32>
    %81 = vector.extract_strided_slice %49 {offsets = [0, 128], sizes = [8, 128], strides = [1, 1]} : vector<8x512xf32> to vector<8x128xf32>
    %82 = arith.negf %81 : vector<8x128xf32>
    %83 = math.exp %82 : vector<8x128xf32>
    %cst_58 = arith.constant 1.000000e+00 : f32
    %84 = vector.broadcast %cst_58 : f32 to vector<8x128xf32>
    %85 = arith.addf %84, %83 : vector<8x128xf32>
    %86 = arith.divf %84, %85 : vector<8x128xf32>
    %87 = vector.extract_strided_slice %49 {offsets = [0, 256], sizes = [8, 128], strides = [1, 1]} : vector<8x512xf32> to vector<8x128xf32>
    %88 = math.tanh %87 : vector<8x128xf32>
    %89 = vector.extract_strided_slice %49 {offsets = [0, 384], sizes = [8, 128], strides = [1, 1]} : vector<8x512xf32> to vector<8x128xf32>
    %90 = arith.negf %89 : vector<8x128xf32>
    %91 = math.exp %90 : vector<8x128xf32>
    %cst_59 = arith.constant 1.000000e+00 : f32
    %92 = vector.broadcast %cst_59 : f32 to vector<8x128xf32>
    %93 = arith.addf %92, %91 : vector<8x128xf32>
    %94 = arith.divf %92, %93 : vector<8x128xf32>
    %95 = arith.mulf %86, %32 : vector<8x128xf32>
    %96 = arith.mulf %80, %88 : vector<8x128xf32>
    %97 = arith.addf %95, %96 : vector<8x128xf32>
    %98 = math.tanh %97 : vector<8x128xf32>
    %99 = arith.mulf %94, %98 : vector<8x128xf32>
    %100 = arith.index_cast %34 : i32 to index
    %c0_60 = arith.constant 0 : index
    %101 = vector.load %arg11[%100, %c0_60] : memref<64x128xf32, #tpu.memory_space<vmem>>, vector<8x128xf32>
    tpu.vector_store %arg11[%100, %c0_60], %74 {strides = array<i32>} : memref<64x128xf32, #tpu.memory_space<vmem>>, vector<8x128xf32>,
    %102 = arith.index_cast %37 : i32 to index
    %c0_61 = arith.constant 0 : index
    %103 = vector.load %arg12[%102, %c0_61] : memref<64x128xf32, #tpu.memory_space<vmem>>, vector<8x128xf32>
    tpu.vector_store %arg12[%102, %c0_61], %99 {strides = array<i32>} : memref<64x128xf32, #tpu.memory_space<vmem>>, vector<8x128xf32>,
    %c1_i32 = arith.constant 1 : i32
    %c8_i32_62 = arith.constant 8 : i32
    %104 = arith.muli %c1_i32, %c8_i32_62 : i32
    %105 = tpu.assume_multiple %104, 8 : i32
    %c7_i32_63 = arith.constant 7 : i32
    %106 = arith.subi %c7_i32_63, %c1_i32 : i32
    %c8_i32_64 = arith.constant 8 : i32
    %107 = arith.muli %106, %c8_i32_64 : i32
    %108 = tpu.assume_multiple %107, 8 : i32
    %109 = arith.index_cast %105 : i32 to index
    %c0_65 = arith.constant 0 : index
    %110 = vector.load %arg9[%109, %c0_65] : memref<64x512xf32, #tpu.memory_space<vmem>>, vector<8x512xf32>
    %cst_66 = arith.constant dense<0.000000e+00> : vector<8x512xf32>
    %111 = tpu.matmul %74, %8, %cst_66 {dimension_numbers = #tpu.dot_dimension_numbers<[1], [0], [0], [1], [0, 0, 1, 1], [], []>} : vector<8x128xf32>, vector<128x512xf32>, vector<8x512xf32> -> vector<8x512xf32>
    %112 = arith.addf %110, %111 : vector<8x512xf32>
    %113 = vector.broadcast %12 : vector<1x512xf32> to vector<8x512xf32>
    %114 = arith.addf %112, %113 : vector<8x512xf32>
    %115 = arith.index_cast %108 : i32 to index
    %c0_67 = arith.constant 0 : index
    %116 = vector.load %arg10[%115, %c0_67] : memref<64x512xf32, #tpu.memory_space<vmem>>, vector<8x512xf32>
    %cst_68 = arith.constant dense<0.000000e+00> : vector<8x512xf32>
    %117 = tpu.matmul %99, %10, %cst_68 {dimension_numbers = #tpu.dot_dimension_numbers<[1], [0], [0], [1], [0, 0, 1, 1], [], []>} : vector<8x128xf32>, vector<128x512xf32>, vector<8x512xf32> -> vector<8x512xf32>
    %118 = arith.addf %116, %117 : vector<8x512xf32>
    %119 = vector.broadcast %14 : vector<1x512xf32> to vector<8x512xf32>
    %120 = arith.addf %118, %119 : vector<8x512xf32>
    %121 = vector.extract_strided_slice %114 {offsets = [0, 0], sizes = [8, 128], strides = [1, 1]} : vector<8x512xf32> to vector<8x128xf32>
    %122 = arith.negf %121 : vector<8x128xf32>
    %123 = math.exp %122 : vector<8x128xf32>
    %cst_69 = arith.constant 1.000000e+00 : f32
    %124 = vector.broadcast %cst_69 : f32 to vector<8x128xf32>
    %125 = arith.addf %124, %123 : vector<8x128xf32>
    %126 = arith.divf %124, %125 : vector<8x128xf32>
    %127 = vector.extract_strided_slice %114 {offsets = [0, 128], sizes = [8, 128], strides = [1, 1]} : vector<8x512xf32> to vector<8x128xf32>
    %128 = arith.negf %127 : vector<8x128xf32>
    %129 = math.exp %128 : vector<8x128xf32>
    %cst_70 = arith.constant 1.000000e+00 : f32
    %130 = vector.broadcast %cst_70 : f32 to vector<8x128xf32>
    %131 = arith.addf %130, %129 : vector<8x128xf32>
    %132 = arith.divf %130, %131 : vector<8x128xf32>
    %133 = vector.extract_strided_slice %114 {offsets = [0, 256], sizes = [8, 128], strides = [1, 1]} : vector<8x512xf32> to vector<8x128xf32>
    %134 = math.tanh %133 : vector<8x128xf32>
    %135 = vector.extract_strided_slice %114 {offsets = [0, 384], sizes = [8, 128], strides = [1, 1]} : vector<8x512xf32> to vector<8x128xf32>
    %136 = arith.negf %135 : vector<8x128xf32>
    %137 = math.exp %136 : vector<8x128xf32>
    %cst_71 = arith.constant 1.000000e+00 : f32
    %138 = vector.broadcast %cst_71 : f32 to vector<8x128xf32>
    %139 = arith.addf %138, %137 : vector<8x128xf32>
    %140 = arith.divf %138, %139 : vector<8x128xf32>
    %141 = arith.mulf %132, %72 : vector<8x128xf32>
    %142 = arith.mulf %126, %134 : vector<8x128xf32>
    %143 = arith.addf %141, %142 : vector<8x128xf32>
    %144 = math.tanh %143 : vector<8x128xf32>
    %145 = arith.mulf %140, %144 : vector<8x128xf32>
    %146 = vector.extract_strided_slice %120 {offsets = [0, 0], sizes = [8, 128], strides = [1, 1]} : vector<8x512xf32> to vector<8x128xf32>
    %147 = arith.negf %146 : vector<8x128xf32>
    %148 = math.exp %147 : vector<8x128xf32>
    %cst_72 = arith.constant 1.000000e+00 : f32
    %149 = vector.broadcast %cst_72 : f32 to vector<8x128xf32>
    %150 = arith.addf %149, %148 : vector<8x128xf32>
    %151 = arith.divf %149, %150 : vector<8x128xf32>
    %152 = vector.extract_strided_slice %120 {offsets = [0, 128], sizes = [8, 128], strides = [1, 1]} : vector<8x512xf32> to vector<8x128xf32>
    %153 = arith.negf %152 : vector<8x128xf32>
    %154 = math.exp %153 : vector<8x128xf32>
    %cst_73 = arith.constant 1.000000e+00 : f32
    %155 = vector.broadcast %cst_73 : f32 to vector<8x128xf32>
    %156 = arith.addf %155, %154 : vector<8x128xf32>
    %157 = arith.divf %155, %156 : vector<8x128xf32>
    %158 = vector.extract_strided_slice %120 {offsets = [0, 256], sizes = [8, 128], strides = [1, 1]} : vector<8x512xf32> to vector<8x128xf32>
    %159 = math.tanh %158 : vector<8x128xf32>
    %160 = vector.extract_strided_slice %120 {offsets = [0, 384], sizes = [8, 128], strides = [1, 1]} : vector<8x512xf32> to vector<8x128xf32>
    %161 = arith.negf %160 : vector<8x128xf32>
    %162 = math.exp %161 : vector<8x128xf32>
    %cst_74 = arith.constant 1.000000e+00 : f32
    %163 = vector.broadcast %cst_74 : f32 to vector<8x128xf32>
    %164 = arith.addf %163, %162 : vector<8x128xf32>
    %165 = arith.divf %163, %164 : vector<8x128xf32>
    %166 = arith.mulf %157, %97 : vector<8x128xf32>
    %167 = arith.mulf %151, %159 : vector<8x128xf32>
    %168 = arith.addf %166, %167 : vector<8x128xf32>
    %169 = math.tanh %168 : vector<8x128xf32>
    %170 = arith.mulf %165, %169 : vector<8x128xf32>
    %171 = arith.index_cast %105 : i32 to index
    %c0_75 = arith.constant 0 : index
    %172 = vector.load %arg11[%171, %c0_75] : memref<64x128xf32, #tpu.memory_space<vmem>>, vector<8x128xf32>
    tpu.vector_store %arg11[%171, %c0_75], %145 {strides = array<i32>} : memref<64x128xf32, #tpu.memory_space<vmem>>, vector<8x128xf32>,
    %173 = arith.index_cast %108 : i32 to index
    %c0_76 = arith.constant 0 : index
    %174 = vector.load %arg12[%173, %c0_76] : memref<64x128xf32, #tpu.memory_space<vmem>>, vector<8x128xf32>
    tpu.vector_store %arg12[%173, %c0_76], %170 {strides = array<i32>} : memref<64x128xf32, #tpu.memory_space<vmem>>, vector<8x128xf32>,
    %c2_i32 = arith.constant 2 : i32
    %c8_i32_77 = arith.constant 8 : i32
    %175 = arith.muli %c2_i32, %c8_i32_77 : i32
    %176 = tpu.assume_multiple %175, 8 : i32
    %c7_i32_78 = arith.constant 7 : i32
    %177 = arith.subi %c7_i32_78, %c2_i32 : i32
    %c8_i32_79 = arith.constant 8 : i32
    %178 = arith.muli %177, %c8_i32_79 : i32
    %179 = tpu.assume_multiple %178, 8 : i32
    %180 = arith.index_cast %176 : i32 to index
    %c0_80 = arith.constant 0 : index
    %181 = vector.load %arg9[%180, %c0_80] : memref<64x512xf32, #tpu.memory_space<vmem>>, vector<8x512xf32>
    %cst_81 = arith.constant dense<0.000000e+00> : vector<8x512xf32>
    %182 = tpu.matmul %145, %8, %cst_81 {dimension_numbers = #tpu.dot_dimension_numbers<[1], [0], [0], [1], [0, 0, 1, 1], [], []>} : vector<8x128xf32>, vector<128x512xf32>, vector<8x512xf32> -> vector<8x512xf32>
    %183 = arith.addf %181, %182 : vector<8x512xf32>
    %184 = vector.broadcast %12 : vector<1x512xf32> to vector<8x512xf32>
    %185 = arith.addf %183, %184 : vector<8x512xf32>
    %186 = arith.index_cast %179 : i32 to index
    %c0_82 = arith.constant 0 : index
    %187 = vector.load %arg10[%186, %c0_82] : memref<64x512xf32, #tpu.memory_space<vmem>>, vector<8x512xf32>
    %cst_83 = arith.constant dense<0.000000e+00> : vector<8x512xf32>
    %188 = tpu.matmul %170, %10, %cst_83 {dimension_numbers = #tpu.dot_dimension_numbers<[1], [0], [0], [1], [0, 0, 1, 1], [], []>} : vector<8x128xf32>, vector<128x512xf32>, vector<8x512xf32> -> vector<8x512xf32>
    %189 = arith.addf %187, %188 : vector<8x512xf32>
    %190 = vector.broadcast %14 : vector<1x512xf32> to vector<8x512xf32>
    %191 = arith.addf %189, %190 : vector<8x512xf32>
    %192 = vector.extract_strided_slice %185 {offsets = [0, 0], sizes = [8, 128], strides = [1, 1]} : vector<8x512xf32> to vector<8x128xf32>
    %193 = arith.negf %192 : vector<8x128xf32>
    %194 = math.exp %193 : vector<8x128xf32>
    %cst_84 = arith.constant 1.000000e+00 : f32
    %195 = vector.broadcast %cst_84 : f32 to vector<8x128xf32>
    %196 = arith.addf %195, %194 : vector<8x128xf32>
    %197 = arith.divf %195, %196 : vector<8x128xf32>
    %198 = vector.extract_strided_slice %185 {offsets = [0, 128], sizes = [8, 128], strides = [1, 1]} : vector<8x512xf32> to vector<8x128xf32>
    %199 = arith.negf %198 : vector<8x128xf32>
    %200 = math.exp %199 : vector<8x128xf32>
    %cst_85 = arith.constant 1.000000e+00 : f32
    %201 = vector.broadcast %cst_85 : f32 to vector<8x128xf32>
    %202 = arith.addf %201, %200 : vector<8x128xf32>
    %203 = arith.divf %201, %202 : vector<8x128xf32>
    %204 = vector.extract_strided_slice %185 {offsets = [0, 256], sizes = [8, 128], strides = [1, 1]} : vector<8x512xf32> to vector<8x128xf32>
    %205 = math.tanh %204 : vector<8x128xf32>
    %206 = vector.extract_strided_slice %185 {offsets = [0, 384], sizes = [8, 128], strides = [1, 1]} : vector<8x512xf32> to vector<8x128xf32>
    %207 = arith.negf %206 : vector<8x128xf32>
    %208 = math.exp %207 : vector<8x128xf32>
    %cst_86 = arith.constant 1.000000e+00 : f32
    %209 = vector.broadcast %cst_86 : f32 to vector<8x128xf32>
    %210 = arith.addf %209, %208 : vector<8x128xf32>
    %211 = arith.divf %209, %210 : vector<8x128xf32>
    %212 = arith.mulf %203, %143 : vector<8x128xf32>
    %213 = arith.mulf %197, %205 : vector<8x128xf32>
    %214 = arith.addf %212, %213 : vector<8x128xf32>
    %215 = math.tanh %214 : vector<8x128xf32>
    %216 = arith.mulf %211, %215 : vector<8x128xf32>
    %217 = vector.extract_strided_slice %191 {offsets = [0, 0], sizes = [8, 128], strides = [1, 1]} : vector<8x512xf32> to vector<8x128xf32>
    %218 = arith.negf %217 : vector<8x128xf32>
    %219 = math.exp %218 : vector<8x128xf32>
    %cst_87 = arith.constant 1.000000e+00 : f32
    %220 = vector.broadcast %cst_87 : f32 to vector<8x128xf32>
    %221 = arith.addf %220, %219 : vector<8x128xf32>
    %222 = arith.divf %220, %221 : vector<8x128xf32>
    %223 = vector.extract_strided_slice %191 {offsets = [0, 128], sizes = [8, 128], strides = [1, 1]} : vector<8x512xf32> to vector<8x128xf32>
    %224 = arith.negf %223 : vector<8x128xf32>
    %225 = math.exp %224 : vector<8x128xf32>
    %cst_88 = arith.constant 1.000000e+00 : f32
    %226 = vector.broadcast %cst_88 : f32 to vector<8x128xf32>
    %227 = arith.addf %226, %225 : vector<8x128xf32>
    %228 = arith.divf %226, %227 : vector<8x128xf32>
    %229 = vector.extract_strided_slice %191 {offsets = [0, 256], sizes = [8, 128], strides = [1, 1]} : vector<8x512xf32> to vector<8x128xf32>
    %230 = math.tanh %229 : vector<8x128xf32>
    %231 = vector.extract_strided_slice %191 {offsets = [0, 384], sizes = [8, 128], strides = [1, 1]} : vector<8x512xf32> to vector<8x128xf32>
    %232 = arith.negf %231 : vector<8x128xf32>
    %233 = math.exp %232 : vector<8x128xf32>
    %cst_89 = arith.constant 1.000000e+00 : f32
    %234 = vector.broadcast %cst_89 : f32 to vector<8x128xf32>
    %235 = arith.addf %234, %233 : vector<8x128xf32>
    %236 = arith.divf %234, %235 : vector<8x128xf32>
    %237 = arith.mulf %228, %168 : vector<8x128xf32>
    %238 = arith.mulf %222, %230 : vector<8x128xf32>
    %239 = arith.addf %237, %238 : vector<8x128xf32>
    %240 = math.tanh %239 : vector<8x128xf32>
    %241 = arith.mulf %236, %240 : vector<8x128xf32>
    %242 = arith.index_cast %176 : i32 to index
    %c0_90 = arith.constant 0 : index
    %243 = vector.load %arg11[%242, %c0_90] : memref<64x128xf32, #tpu.memory_space<vmem>>, vector<8x128xf32>
    tpu.vector_store %arg11[%242, %c0_90], %216 {strides = array<i32>} : memref<64x128xf32, #tpu.memory_space<vmem>>, vector<8x128xf32>,
    %244 = arith.index_cast %179 : i32 to index
    %c0_91 = arith.constant 0 : index
    %245 = vector.load %arg12[%244, %c0_91] : memref<64x128xf32, #tpu.memory_space<vmem>>, vector<8x128xf32>
    tpu.vector_store %arg12[%244, %c0_91], %241 {strides = array<i32>} : memref<64x128xf32, #tpu.memory_space<vmem>>, vector<8x128xf32>,
    %c3_i32 = arith.constant 3 : i32
    %c8_i32_92 = arith.constant 8 : i32
    %246 = arith.muli %c3_i32, %c8_i32_92 : i32
    %247 = tpu.assume_multiple %246, 8 : i32
    %c7_i32_93 = arith.constant 7 : i32
    %248 = arith.subi %c7_i32_93, %c3_i32 : i32
    %c8_i32_94 = arith.constant 8 : i32
    %249 = arith.muli %248, %c8_i32_94 : i32
    %250 = tpu.assume_multiple %249, 8 : i32
    %251 = arith.index_cast %247 : i32 to index
    %c0_95 = arith.constant 0 : index
    %252 = vector.load %arg9[%251, %c0_95] : memref<64x512xf32, #tpu.memory_space<vmem>>, vector<8x512xf32>
    %cst_96 = arith.constant dense<0.000000e+00> : vector<8x512xf32>
    %253 = tpu.matmul %216, %8, %cst_96 {dimension_numbers = #tpu.dot_dimension_numbers<[1], [0], [0], [1], [0, 0, 1, 1], [], []>} : vector<8x128xf32>, vector<128x512xf32>, vector<8x512xf32> -> vector<8x512xf32>
    %254 = arith.addf %252, %253 : vector<8x512xf32>
    %255 = vector.broadcast %12 : vector<1x512xf32> to vector<8x512xf32>
    %256 = arith.addf %254, %255 : vector<8x512xf32>
    %257 = arith.index_cast %250 : i32 to index
    %c0_97 = arith.constant 0 : index
    %258 = vector.load %arg10[%257, %c0_97] : memref<64x512xf32, #tpu.memory_space<vmem>>, vector<8x512xf32>
    %cst_98 = arith.constant dense<0.000000e+00> : vector<8x512xf32>
    %259 = tpu.matmul %241, %10, %cst_98 {dimension_numbers = #tpu.dot_dimension_numbers<[1], [0], [0], [1], [0, 0, 1, 1], [], []>} : vector<8x128xf32>, vector<128x512xf32>, vector<8x512xf32> -> vector<8x512xf32>
    %260 = arith.addf %258, %259 : vector<8x512xf32>
    %261 = vector.broadcast %14 : vector<1x512xf32> to vector<8x512xf32>
    %262 = arith.addf %260, %261 : vector<8x512xf32>
    %263 = vector.extract_strided_slice %256 {offsets = [0, 0], sizes = [8, 128], strides = [1, 1]} : vector<8x512xf32> to vector<8x128xf32>
    %264 = arith.negf %263 : vector<8x128xf32>
    %265 = math.exp %264 : vector<8x128xf32>
    %cst_99 = arith.constant 1.000000e+00 : f32
    %266 = vector.broadcast %cst_99 : f32 to vector<8x128xf32>
    %267 = arith.addf %266, %265 : vector<8x128xf32>
    %268 = arith.divf %266, %267 : vector<8x128xf32>
    %269 = vector.extract_strided_slice %256 {offsets = [0, 128], sizes = [8, 128], strides = [1, 1]} : vector<8x512xf32> to vector<8x128xf32>
    %270 = arith.negf %269 : vector<8x128xf32>
    %271 = math.exp %270 : vector<8x128xf32>
    %cst_100 = arith.constant 1.000000e+00 : f32
    %272 = vector.broadcast %cst_100 : f32 to vector<8x128xf32>
    %273 = arith.addf %272, %271 : vector<8x128xf32>
    %274 = arith.divf %272, %273 : vector<8x128xf32>
    %275 = vector.extract_strided_slice %256 {offsets = [0, 256], sizes = [8, 128], strides = [1, 1]} : vector<8x512xf32> to vector<8x128xf32>
    %276 = math.tanh %275 : vector<8x128xf32>
    %277 = vector.extract_strided_slice %256 {offsets = [0, 384], sizes = [8, 128], strides = [1, 1]} : vector<8x512xf32> to vector<8x128xf32>
    %278 = arith.negf %277 : vector<8x128xf32>
    %279 = math.exp %278 : vector<8x128xf32>
    %cst_101 = arith.constant 1.000000e+00 : f32
    %280 = vector.broadcast %cst_101 : f32 to vector<8x128xf32>
    %281 = arith.addf %280, %279 : vector<8x128xf32>
    %282 = arith.divf %280, %281 : vector<8x128xf32>
    %283 = arith.mulf %274, %214 : vector<8x128xf32>
    %284 = arith.mulf %268, %276 : vector<8x128xf32>
    %285 = arith.addf %283, %284 : vector<8x128xf32>
    %286 = math.tanh %285 : vector<8x128xf32>
    %287 = arith.mulf %282, %286 : vector<8x128xf32>
    %288 = vector.extract_strided_slice %262 {offsets = [0, 0], sizes = [8, 128], strides = [1, 1]} : vector<8x512xf32> to vector<8x128xf32>
    %289 = arith.negf %288 : vector<8x128xf32>
    %290 = math.exp %289 : vector<8x128xf32>
    %cst_102 = arith.constant 1.000000e+00 : f32
    %291 = vector.broadcast %cst_102 : f32 to vector<8x128xf32>
    %292 = arith.addf %291, %290 : vector<8x128xf32>
    %293 = arith.divf %291, %292 : vector<8x128xf32>
    %294 = vector.extract_strided_slice %262 {offsets = [0, 128], sizes = [8, 128], strides = [1, 1]} : vector<8x512xf32> to vector<8x128xf32>
    %295 = arith.negf %294 : vector<8x128xf32>
    %296 = math.exp %295 : vector<8x128xf32>
    %cst_103 = arith.constant 1.000000e+00 : f32
    %297 = vector.broadcast %cst_103 : f32 to vector<8x128xf32>
    %298 = arith.addf %297, %296 : vector<8x128xf32>
    %299 = arith.divf %297, %298 : vector<8x128xf32>
    %300 = vector.extract_strided_slice %262 {offsets = [0, 256], sizes = [8, 128], strides = [1, 1]} : vector<8x512xf32> to vector<8x128xf32>
    %301 = math.tanh %300 : vector<8x128xf32>
    %302 = vector.extract_strided_slice %262 {offsets = [0, 384], sizes = [8, 128], strides = [1, 1]} : vector<8x512xf32> to vector<8x128xf32>
    %303 = arith.negf %302 : vector<8x128xf32>
    %304 = math.exp %303 : vector<8x128xf32>
    %cst_104 = arith.constant 1.000000e+00 : f32
    %305 = vector.broadcast %cst_104 : f32 to vector<8x128xf32>
    %306 = arith.addf %305, %304 : vector<8x128xf32>
    %307 = arith.divf %305, %306 : vector<8x128xf32>
    %308 = arith.mulf %299, %239 : vector<8x128xf32>
    %309 = arith.mulf %293, %301 : vector<8x128xf32>
    %310 = arith.addf %308, %309 : vector<8x128xf32>
    %311 = math.tanh %310 : vector<8x128xf32>
    %312 = arith.mulf %307, %311 : vector<8x128xf32>
    %313 = arith.index_cast %247 : i32 to index
    %c0_105 = arith.constant 0 : index
    %314 = vector.load %arg11[%313, %c0_105] : memref<64x128xf32, #tpu.memory_space<vmem>>, vector<8x128xf32>
    tpu.vector_store %arg11[%313, %c0_105], %287 {strides = array<i32>} : memref<64x128xf32, #tpu.memory_space<vmem>>, vector<8x128xf32>,
    %315 = arith.index_cast %250 : i32 to index
    %c0_106 = arith.constant 0 : index
    %316 = vector.load %arg12[%315, %c0_106] : memref<64x128xf32, #tpu.memory_space<vmem>>, vector<8x128xf32>
    tpu.vector_store %arg12[%315, %c0_106], %312 {strides = array<i32>} : memref<64x128xf32, #tpu.memory_space<vmem>>, vector<8x128xf32>,
    %c4_i32 = arith.constant 4 : i32
    %c8_i32_107 = arith.constant 8 : i32
    %317 = arith.muli %c4_i32, %c8_i32_107 : i32
    %318 = tpu.assume_multiple %317, 8 : i32
    %c7_i32_108 = arith.constant 7 : i32
    %319 = arith.subi %c7_i32_108, %c4_i32 : i32
    %c8_i32_109 = arith.constant 8 : i32
    %320 = arith.muli %319, %c8_i32_109 : i32
    %321 = tpu.assume_multiple %320, 8 : i32
    %322 = arith.index_cast %318 : i32 to index
    %c0_110 = arith.constant 0 : index
    %323 = vector.load %arg9[%322, %c0_110] : memref<64x512xf32, #tpu.memory_space<vmem>>, vector<8x512xf32>
    %cst_111 = arith.constant dense<0.000000e+00> : vector<8x512xf32>
    %324 = tpu.matmul %287, %8, %cst_111 {dimension_numbers = #tpu.dot_dimension_numbers<[1], [0], [0], [1], [0, 0, 1, 1], [], []>} : vector<8x128xf32>, vector<128x512xf32>, vector<8x512xf32> -> vector<8x512xf32>
    %325 = arith.addf %323, %324 : vector<8x512xf32>
    %326 = vector.broadcast %12 : vector<1x512xf32> to vector<8x512xf32>
    %327 = arith.addf %325, %326 : vector<8x512xf32>
    %328 = arith.index_cast %321 : i32 to index
    %c0_112 = arith.constant 0 : index
    %329 = vector.load %arg10[%328, %c0_112] : memref<64x512xf32, #tpu.memory_space<vmem>>, vector<8x512xf32>
    %cst_113 = arith.constant dense<0.000000e+00> : vector<8x512xf32>
    %330 = tpu.matmul %312, %10, %cst_113 {dimension_numbers = #tpu.dot_dimension_numbers<[1], [0], [0], [1], [0, 0, 1, 1], [], []>} : vector<8x128xf32>, vector<128x512xf32>, vector<8x512xf32> -> vector<8x512xf32>
    %331 = arith.addf %329, %330 : vector<8x512xf32>
    %332 = vector.broadcast %14 : vector<1x512xf32> to vector<8x512xf32>
    %333 = arith.addf %331, %332 : vector<8x512xf32>
    %334 = vector.extract_strided_slice %327 {offsets = [0, 0], sizes = [8, 128], strides = [1, 1]} : vector<8x512xf32> to vector<8x128xf32>
    %335 = arith.negf %334 : vector<8x128xf32>
    %336 = math.exp %335 : vector<8x128xf32>
    %cst_114 = arith.constant 1.000000e+00 : f32
    %337 = vector.broadcast %cst_114 : f32 to vector<8x128xf32>
    %338 = arith.addf %337, %336 : vector<8x128xf32>
    %339 = arith.divf %337, %338 : vector<8x128xf32>
    %340 = vector.extract_strided_slice %327 {offsets = [0, 128], sizes = [8, 128], strides = [1, 1]} : vector<8x512xf32> to vector<8x128xf32>
    %341 = arith.negf %340 : vector<8x128xf32>
    %342 = math.exp %341 : vector<8x128xf32>
    %cst_115 = arith.constant 1.000000e+00 : f32
    %343 = vector.broadcast %cst_115 : f32 to vector<8x128xf32>
    %344 = arith.addf %343, %342 : vector<8x128xf32>
    %345 = arith.divf %343, %344 : vector<8x128xf32>
    %346 = vector.extract_strided_slice %327 {offsets = [0, 256], sizes = [8, 128], strides = [1, 1]} : vector<8x512xf32> to vector<8x128xf32>
    %347 = math.tanh %346 : vector<8x128xf32>
    %348 = vector.extract_strided_slice %327 {offsets = [0, 384], sizes = [8, 128], strides = [1, 1]} : vector<8x512xf32> to vector<8x128xf32>
    %349 = arith.negf %348 : vector<8x128xf32>
    %350 = math.exp %349 : vector<8x128xf32>
    %cst_116 = arith.constant 1.000000e+00 : f32
    %351 = vector.broadcast %cst_116 : f32 to vector<8x128xf32>
    %352 = arith.addf %351, %350 : vector<8x128xf32>
    %353 = arith.divf %351, %352 : vector<8x128xf32>
    %354 = arith.mulf %345, %285 : vector<8x128xf32>
    %355 = arith.mulf %339, %347 : vector<8x128xf32>
    %356 = arith.addf %354, %355 : vector<8x128xf32>
    %357 = math.tanh %356 : vector<8x128xf32>
    %358 = arith.mulf %353, %357 : vector<8x128xf32>
    %359 = vector.extract_strided_slice %333 {offsets = [0, 0], sizes = [8, 128], strides = [1, 1]} : vector<8x512xf32> to vector<8x128xf32>
    %360 = arith.negf %359 : vector<8x128xf32>
    %361 = math.exp %360 : vector<8x128xf32>
    %cst_117 = arith.constant 1.000000e+00 : f32
    %362 = vector.broadcast %cst_117 : f32 to vector<8x128xf32>
    %363 = arith.addf %362, %361 : vector<8x128xf32>
    %364 = arith.divf %362, %363 : vector<8x128xf32>
    %365 = vector.extract_strided_slice %333 {offsets = [0, 128], sizes = [8, 128], strides = [1, 1]} : vector<8x512xf32> to vector<8x128xf32>
    %366 = arith.negf %365 : vector<8x128xf32>
    %367 = math.exp %366 : vector<8x128xf32>
    %cst_118 = arith.constant 1.000000e+00 : f32
    %368 = vector.broadcast %cst_118 : f32 to vector<8x128xf32>
    %369 = arith.addf %368, %367 : vector<8x128xf32>
    %370 = arith.divf %368, %369 : vector<8x128xf32>
    %371 = vector.extract_strided_slice %333 {offsets = [0, 256], sizes = [8, 128], strides = [1, 1]} : vector<8x512xf32> to vector<8x128xf32>
    %372 = math.tanh %371 : vector<8x128xf32>
    %373 = vector.extract_strided_slice %333 {offsets = [0, 384], sizes = [8, 128], strides = [1, 1]} : vector<8x512xf32> to vector<8x128xf32>
    %374 = arith.negf %373 : vector<8x128xf32>
    %375 = math.exp %374 : vector<8x128xf32>
    %cst_119 = arith.constant 1.000000e+00 : f32
    %376 = vector.broadcast %cst_119 : f32 to vector<8x128xf32>
    %377 = arith.addf %376, %375 : vector<8x128xf32>
    %378 = arith.divf %376, %377 : vector<8x128xf32>
    %379 = arith.mulf %370, %310 : vector<8x128xf32>
    %380 = arith.mulf %364, %372 : vector<8x128xf32>
    %381 = arith.addf %379, %380 : vector<8x128xf32>
    %382 = math.tanh %381 : vector<8x128xf32>
    %383 = arith.mulf %378, %382 : vector<8x128xf32>
    %384 = arith.index_cast %318 : i32 to index
    %c0_120 = arith.constant 0 : index
    %385 = vector.load %arg11[%384, %c0_120] : memref<64x128xf32, #tpu.memory_space<vmem>>, vector<8x128xf32>
    tpu.vector_store %arg11[%384, %c0_120], %358 {strides = array<i32>} : memref<64x128xf32, #tpu.memory_space<vmem>>, vector<8x128xf32>,
    %386 = arith.index_cast %321 : i32 to index
    %c0_121 = arith.constant 0 : index
    %387 = vector.load %arg12[%386, %c0_121] : memref<64x128xf32, #tpu.memory_space<vmem>>, vector<8x128xf32>
    tpu.vector_store %arg12[%386, %c0_121], %383 {strides = array<i32>} : memref<64x128xf32, #tpu.memory_space<vmem>>, vector<8x128xf32>,
    %c5_i32 = arith.constant 5 : i32
    %c8_i32_122 = arith.constant 8 : i32
    %388 = arith.muli %c5_i32, %c8_i32_122 : i32
    %389 = tpu.assume_multiple %388, 8 : i32
    %c7_i32_123 = arith.constant 7 : i32
    %390 = arith.subi %c7_i32_123, %c5_i32 : i32
    %c8_i32_124 = arith.constant 8 : i32
    %391 = arith.muli %390, %c8_i32_124 : i32
    %392 = tpu.assume_multiple %391, 8 : i32
    %393 = arith.index_cast %389 : i32 to index
    %c0_125 = arith.constant 0 : index
    %394 = vector.load %arg9[%393, %c0_125] : memref<64x512xf32, #tpu.memory_space<vmem>>, vector<8x512xf32>
    %cst_126 = arith.constant dense<0.000000e+00> : vector<8x512xf32>
    %395 = tpu.matmul %358, %8, %cst_126 {dimension_numbers = #tpu.dot_dimension_numbers<[1], [0], [0], [1], [0, 0, 1, 1], [], []>} : vector<8x128xf32>, vector<128x512xf32>, vector<8x512xf32> -> vector<8x512xf32>
    %396 = arith.addf %394, %395 : vector<8x512xf32>
    %397 = vector.broadcast %12 : vector<1x512xf32> to vector<8x512xf32>
    %398 = arith.addf %396, %397 : vector<8x512xf32>
    %399 = arith.index_cast %392 : i32 to index
    %c0_127 = arith.constant 0 : index
    %400 = vector.load %arg10[%399, %c0_127] : memref<64x512xf32, #tpu.memory_space<vmem>>, vector<8x512xf32>
    %cst_128 = arith.constant dense<0.000000e+00> : vector<8x512xf32>
    %401 = tpu.matmul %383, %10, %cst_128 {dimension_numbers = #tpu.dot_dimension_numbers<[1], [0], [0], [1], [0, 0, 1, 1], [], []>} : vector<8x128xf32>, vector<128x512xf32>, vector<8x512xf32> -> vector<8x512xf32>
    %402 = arith.addf %400, %401 : vector<8x512xf32>
    %403 = vector.broadcast %14 : vector<1x512xf32> to vector<8x512xf32>
    %404 = arith.addf %402, %403 : vector<8x512xf32>
    %405 = vector.extract_strided_slice %398 {offsets = [0, 0], sizes = [8, 128], strides = [1, 1]} : vector<8x512xf32> to vector<8x128xf32>
    %406 = arith.negf %405 : vector<8x128xf32>
    %407 = math.exp %406 : vector<8x128xf32>
    %cst_129 = arith.constant 1.000000e+00 : f32
    %408 = vector.broadcast %cst_129 : f32 to vector<8x128xf32>
    %409 = arith.addf %408, %407 : vector<8x128xf32>
    %410 = arith.divf %408, %409 : vector<8x128xf32>
    %411 = vector.extract_strided_slice %398 {offsets = [0, 128], sizes = [8, 128], strides = [1, 1]} : vector<8x512xf32> to vector<8x128xf32>
    %412 = arith.negf %411 : vector<8x128xf32>
    %413 = math.exp %412 : vector<8x128xf32>
    %cst_130 = arith.constant 1.000000e+00 : f32
    %414 = vector.broadcast %cst_130 : f32 to vector<8x128xf32>
    %415 = arith.addf %414, %413 : vector<8x128xf32>
    %416 = arith.divf %414, %415 : vector<8x128xf32>
    %417 = vector.extract_strided_slice %398 {offsets = [0, 256], sizes = [8, 128], strides = [1, 1]} : vector<8x512xf32> to vector<8x128xf32>
    %418 = math.tanh %417 : vector<8x128xf32>
    %419 = vector.extract_strided_slice %398 {offsets = [0, 384], sizes = [8, 128], strides = [1, 1]} : vector<8x512xf32> to vector<8x128xf32>
    %420 = arith.negf %419 : vector<8x128xf32>
    %421 = math.exp %420 : vector<8x128xf32>
    %cst_131 = arith.constant 1.000000e+00 : f32
    %422 = vector.broadcast %cst_131 : f32 to vector<8x128xf32>
    %423 = arith.addf %422, %421 : vector<8x128xf32>
    %424 = arith.divf %422, %423 : vector<8x128xf32>
    %425 = arith.mulf %416, %356 : vector<8x128xf32>
    %426 = arith.mulf %410, %418 : vector<8x128xf32>
    %427 = arith.addf %425, %426 : vector<8x128xf32>
    %428 = math.tanh %427 : vector<8x128xf32>
    %429 = arith.mulf %424, %428 : vector<8x128xf32>
    %430 = vector.extract_strided_slice %404 {offsets = [0, 0], sizes = [8, 128], strides = [1, 1]} : vector<8x512xf32> to vector<8x128xf32>
    %431 = arith.negf %430 : vector<8x128xf32>
    %432 = math.exp %431 : vector<8x128xf32>
    %cst_132 = arith.constant 1.000000e+00 : f32
    %433 = vector.broadcast %cst_132 : f32 to vector<8x128xf32>
    %434 = arith.addf %433, %432 : vector<8x128xf32>
    %435 = arith.divf %433, %434 : vector<8x128xf32>
    %436 = vector.extract_strided_slice %404 {offsets = [0, 128], sizes = [8, 128], strides = [1, 1]} : vector<8x512xf32> to vector<8x128xf32>
    %437 = arith.negf %436 : vector<8x128xf32>
    %438 = math.exp %437 : vector<8x128xf32>
    %cst_133 = arith.constant 1.000000e+00 : f32
    %439 = vector.broadcast %cst_133 : f32 to vector<8x128xf32>
    %440 = arith.addf %439, %438 : vector<8x128xf32>
    %441 = arith.divf %439, %440 : vector<8x128xf32>
    %442 = vector.extract_strided_slice %404 {offsets = [0, 256], sizes = [8, 128], strides = [1, 1]} : vector<8x512xf32> to vector<8x128xf32>
    %443 = math.tanh %442 : vector<8x128xf32>
    %444 = vector.extract_strided_slice %404 {offsets = [0, 384], sizes = [8, 128], strides = [1, 1]} : vector<8x512xf32> to vector<8x128xf32>
    %445 = arith.negf %444 : vector<8x128xf32>
    %446 = math.exp %445 : vector<8x128xf32>
    %cst_134 = arith.constant 1.000000e+00 : f32
    %447 = vector.broadcast %cst_134 : f32 to vector<8x128xf32>
    %448 = arith.addf %447, %446 : vector<8x128xf32>
    %449 = arith.divf %447, %448 : vector<8x128xf32>
    %450 = arith.mulf %441, %381 : vector<8x128xf32>
    %451 = arith.mulf %435, %443 : vector<8x128xf32>
    %452 = arith.addf %450, %451 : vector<8x128xf32>
    %453 = math.tanh %452 : vector<8x128xf32>
    %454 = arith.mulf %449, %453 : vector<8x128xf32>
    %455 = arith.index_cast %389 : i32 to index
    %c0_135 = arith.constant 0 : index
    %456 = vector.load %arg11[%455, %c0_135] : memref<64x128xf32, #tpu.memory_space<vmem>>, vector<8x128xf32>
    tpu.vector_store %arg11[%455, %c0_135], %429 {strides = array<i32>} : memref<64x128xf32, #tpu.memory_space<vmem>>, vector<8x128xf32>,
    %457 = arith.index_cast %392 : i32 to index
    %c0_136 = arith.constant 0 : index
    %458 = vector.load %arg12[%457, %c0_136] : memref<64x128xf32, #tpu.memory_space<vmem>>, vector<8x128xf32>
    tpu.vector_store %arg12[%457, %c0_136], %454 {strides = array<i32>} : memref<64x128xf32, #tpu.memory_space<vmem>>, vector<8x128xf32>,
    %c6_i32 = arith.constant 6 : i32
    %c8_i32_137 = arith.constant 8 : i32
    %459 = arith.muli %c6_i32, %c8_i32_137 : i32
    %460 = tpu.assume_multiple %459, 8 : i32
    %c7_i32_138 = arith.constant 7 : i32
    %461 = arith.subi %c7_i32_138, %c6_i32 : i32
    %c8_i32_139 = arith.constant 8 : i32
    %462 = arith.muli %461, %c8_i32_139 : i32
    %463 = tpu.assume_multiple %462, 8 : i32
    %464 = arith.index_cast %460 : i32 to index
    %c0_140 = arith.constant 0 : index
    %465 = vector.load %arg9[%464, %c0_140] : memref<64x512xf32, #tpu.memory_space<vmem>>, vector<8x512xf32>
    %cst_141 = arith.constant dense<0.000000e+00> : vector<8x512xf32>
    %466 = tpu.matmul %429, %8, %cst_141 {dimension_numbers = #tpu.dot_dimension_numbers<[1], [0], [0], [1], [0, 0, 1, 1], [], []>} : vector<8x128xf32>, vector<128x512xf32>, vector<8x512xf32> -> vector<8x512xf32>
    %467 = arith.addf %465, %466 : vector<8x512xf32>
    %468 = vector.broadcast %12 : vector<1x512xf32> to vector<8x512xf32>
    %469 = arith.addf %467, %468 : vector<8x512xf32>
    %470 = arith.index_cast %463 : i32 to index
    %c0_142 = arith.constant 0 : index
    %471 = vector.load %arg10[%470, %c0_142] : memref<64x512xf32, #tpu.memory_space<vmem>>, vector<8x512xf32>
    %cst_143 = arith.constant dense<0.000000e+00> : vector<8x512xf32>
    %472 = tpu.matmul %454, %10, %cst_143 {dimension_numbers = #tpu.dot_dimension_numbers<[1], [0], [0], [1], [0, 0, 1, 1], [], []>} : vector<8x128xf32>, vector<128x512xf32>, vector<8x512xf32> -> vector<8x512xf32>
    %473 = arith.addf %471, %472 : vector<8x512xf32>
    %474 = vector.broadcast %14 : vector<1x512xf32> to vector<8x512xf32>
    %475 = arith.addf %473, %474 : vector<8x512xf32>
    %476 = vector.extract_strided_slice %469 {offsets = [0, 0], sizes = [8, 128], strides = [1, 1]} : vector<8x512xf32> to vector<8x128xf32>
    %477 = arith.negf %476 : vector<8x128xf32>
    %478 = math.exp %477 : vector<8x128xf32>
    %cst_144 = arith.constant 1.000000e+00 : f32
    %479 = vector.broadcast %cst_144 : f32 to vector<8x128xf32>
    %480 = arith.addf %479, %478 : vector<8x128xf32>
    %481 = arith.divf %479, %480 : vector<8x128xf32>
    %482 = vector.extract_strided_slice %469 {offsets = [0, 128], sizes = [8, 128], strides = [1, 1]} : vector<8x512xf32> to vector<8x128xf32>
    %483 = arith.negf %482 : vector<8x128xf32>
    %484 = math.exp %483 : vector<8x128xf32>
    %cst_145 = arith.constant 1.000000e+00 : f32
    %485 = vector.broadcast %cst_145 : f32 to vector<8x128xf32>
    %486 = arith.addf %485, %484 : vector<8x128xf32>
    %487 = arith.divf %485, %486 : vector<8x128xf32>
    %488 = vector.extract_strided_slice %469 {offsets = [0, 256], sizes = [8, 128], strides = [1, 1]} : vector<8x512xf32> to vector<8x128xf32>
    %489 = math.tanh %488 : vector<8x128xf32>
    %490 = vector.extract_strided_slice %469 {offsets = [0, 384], sizes = [8, 128], strides = [1, 1]} : vector<8x512xf32> to vector<8x128xf32>
    %491 = arith.negf %490 : vector<8x128xf32>
    %492 = math.exp %491 : vector<8x128xf32>
    %cst_146 = arith.constant 1.000000e+00 : f32
    %493 = vector.broadcast %cst_146 : f32 to vector<8x128xf32>
    %494 = arith.addf %493, %492 : vector<8x128xf32>
    %495 = arith.divf %493, %494 : vector<8x128xf32>
    %496 = arith.mulf %487, %427 : vector<8x128xf32>
    %497 = arith.mulf %481, %489 : vector<8x128xf32>
    %498 = arith.addf %496, %497 : vector<8x128xf32>
    %499 = math.tanh %498 : vector<8x128xf32>
    %500 = arith.mulf %495, %499 : vector<8x128xf32>
    %501 = vector.extract_strided_slice %475 {offsets = [0, 0], sizes = [8, 128], strides = [1, 1]} : vector<8x512xf32> to vector<8x128xf32>
    %502 = arith.negf %501 : vector<8x128xf32>
    %503 = math.exp %502 : vector<8x128xf32>
    %cst_147 = arith.constant 1.000000e+00 : f32
    %504 = vector.broadcast %cst_147 : f32 to vector<8x128xf32>
    %505 = arith.addf %504, %503 : vector<8x128xf32>
    %506 = arith.divf %504, %505 : vector<8x128xf32>
    %507 = vector.extract_strided_slice %475 {offsets = [0, 128], sizes = [8, 128], strides = [1, 1]} : vector<8x512xf32> to vector<8x128xf32>
    %508 = arith.negf %507 : vector<8x128xf32>
    %509 = math.exp %508 : vector<8x128xf32>
    %cst_148 = arith.constant 1.000000e+00 : f32
    %510 = vector.broadcast %cst_148 : f32 to vector<8x128xf32>
    %511 = arith.addf %510, %509 : vector<8x128xf32>
    %512 = arith.divf %510, %511 : vector<8x128xf32>
    %513 = vector.extract_strided_slice %475 {offsets = [0, 256], sizes = [8, 128], strides = [1, 1]} : vector<8x512xf32> to vector<8x128xf32>
    %514 = math.tanh %513 : vector<8x128xf32>
    %515 = vector.extract_strided_slice %475 {offsets = [0, 384], sizes = [8, 128], strides = [1, 1]} : vector<8x512xf32> to vector<8x128xf32>
    %516 = arith.negf %515 : vector<8x128xf32>
    %517 = math.exp %516 : vector<8x128xf32>
    %cst_149 = arith.constant 1.000000e+00 : f32
    %518 = vector.broadcast %cst_149 : f32 to vector<8x128xf32>
    %519 = arith.addf %518, %517 : vector<8x128xf32>
    %520 = arith.divf %518, %519 : vector<8x128xf32>
    %521 = arith.mulf %512, %452 : vector<8x128xf32>
    %522 = arith.mulf %506, %514 : vector<8x128xf32>
    %523 = arith.addf %521, %522 : vector<8x128xf32>
    %524 = math.tanh %523 : vector<8x128xf32>
    %525 = arith.mulf %520, %524 : vector<8x128xf32>
    %526 = arith.index_cast %460 : i32 to index
    %c0_150 = arith.constant 0 : index
    %527 = vector.load %arg11[%526, %c0_150] : memref<64x128xf32, #tpu.memory_space<vmem>>, vector<8x128xf32>
    tpu.vector_store %arg11[%526, %c0_150], %500 {strides = array<i32>} : memref<64x128xf32, #tpu.memory_space<vmem>>, vector<8x128xf32>,
    %528 = arith.index_cast %463 : i32 to index
    %c0_151 = arith.constant 0 : index
    %529 = vector.load %arg12[%528, %c0_151] : memref<64x128xf32, #tpu.memory_space<vmem>>, vector<8x128xf32>
    tpu.vector_store %arg12[%528, %c0_151], %525 {strides = array<i32>} : memref<64x128xf32, #tpu.memory_space<vmem>>, vector<8x128xf32>,
    %c7_i32_152 = arith.constant 7 : i32
    %c8_i32_153 = arith.constant 8 : i32
    %530 = arith.muli %c7_i32_152, %c8_i32_153 : i32
    %531 = tpu.assume_multiple %530, 8 : i32
    %c7_i32_154 = arith.constant 7 : i32
    %532 = arith.subi %c7_i32_154, %c7_i32_152 : i32
    %c8_i32_155 = arith.constant 8 : i32
    %533 = arith.muli %532, %c8_i32_155 : i32
    %534 = tpu.assume_multiple %533, 8 : i32
    %535 = arith.index_cast %531 : i32 to index
    %c0_156 = arith.constant 0 : index
    %536 = vector.load %arg9[%535, %c0_156] : memref<64x512xf32, #tpu.memory_space<vmem>>, vector<8x512xf32>
    %cst_157 = arith.constant dense<0.000000e+00> : vector<8x512xf32>
    %537 = tpu.matmul %500, %8, %cst_157 {dimension_numbers = #tpu.dot_dimension_numbers<[1], [0], [0], [1], [0, 0, 1, 1], [], []>} : vector<8x128xf32>, vector<128x512xf32>, vector<8x512xf32> -> vector<8x512xf32>
    %538 = arith.addf %536, %537 : vector<8x512xf32>
    %539 = vector.broadcast %12 : vector<1x512xf32> to vector<8x512xf32>
    %540 = arith.addf %538, %539 : vector<8x512xf32>
    %541 = arith.index_cast %534 : i32 to index
    %c0_158 = arith.constant 0 : index
    %542 = vector.load %arg10[%541, %c0_158] : memref<64x512xf32, #tpu.memory_space<vmem>>, vector<8x512xf32>
    %cst_159 = arith.constant dense<0.000000e+00> : vector<8x512xf32>
    %543 = tpu.matmul %525, %10, %cst_159 {dimension_numbers = #tpu.dot_dimension_numbers<[1], [0], [0], [1], [0, 0, 1, 1], [], []>} : vector<8x128xf32>, vector<128x512xf32>, vector<8x512xf32> -> vector<8x512xf32>
    %544 = arith.addf %542, %543 : vector<8x512xf32>
    %545 = vector.broadcast %14 : vector<1x512xf32> to vector<8x512xf32>
    %546 = arith.addf %544, %545 : vector<8x512xf32>
    %547 = vector.extract_strided_slice %540 {offsets = [0, 0], sizes = [8, 128], strides = [1, 1]} : vector<8x512xf32> to vector<8x128xf32>
    %548 = arith.negf %547 : vector<8x128xf32>
    %549 = math.exp %548 : vector<8x128xf32>
    %cst_160 = arith.constant 1.000000e+00 : f32
    %550 = vector.broadcast %cst_160 : f32 to vector<8x128xf32>
    %551 = arith.addf %550, %549 : vector<8x128xf32>
    %552 = arith.divf %550, %551 : vector<8x128xf32>
    %553 = vector.extract_strided_slice %540 {offsets = [0, 128], sizes = [8, 128], strides = [1, 1]} : vector<8x512xf32> to vector<8x128xf32>
    %554 = arith.negf %553 : vector<8x128xf32>
    %555 = math.exp %554 : vector<8x128xf32>
    %cst_161 = arith.constant 1.000000e+00 : f32
    %556 = vector.broadcast %cst_161 : f32 to vector<8x128xf32>
    %557 = arith.addf %556, %555 : vector<8x128xf32>
    %558 = arith.divf %556, %557 : vector<8x128xf32>
    %559 = vector.extract_strided_slice %540 {offsets = [0, 256], sizes = [8, 128], strides = [1, 1]} : vector<8x512xf32> to vector<8x128xf32>
    %560 = math.tanh %559 : vector<8x128xf32>
    %561 = vector.extract_strided_slice %540 {offsets = [0, 384], sizes = [8, 128], strides = [1, 1]} : vector<8x512xf32> to vector<8x128xf32>
    %562 = arith.negf %561 : vector<8x128xf32>
    %563 = math.exp %562 : vector<8x128xf32>
    %cst_162 = arith.constant 1.000000e+00 : f32
    %564 = vector.broadcast %cst_162 : f32 to vector<8x128xf32>
    %565 = arith.addf %564, %563 : vector<8x128xf32>
    %566 = arith.divf %564, %565 : vector<8x128xf32>
    %567 = arith.mulf %558, %498 : vector<8x128xf32>
    %568 = arith.mulf %552, %560 : vector<8x128xf32>
    %569 = arith.addf %567, %568 : vector<8x128xf32>
    %570 = math.tanh %569 : vector<8x128xf32>
    %571 = arith.mulf %566, %570 : vector<8x128xf32>
    %572 = vector.extract_strided_slice %546 {offsets = [0, 0], sizes = [8, 128], strides = [1, 1]} : vector<8x512xf32> to vector<8x128xf32>
    %573 = arith.negf %572 : vector<8x128xf32>
    %574 = math.exp %573 : vector<8x128xf32>
    %cst_163 = arith.constant 1.000000e+00 : f32
    %575 = vector.broadcast %cst_163 : f32 to vector<8x128xf32>
    %576 = arith.addf %575, %574 : vector<8x128xf32>
    %577 = arith.divf %575, %576 : vector<8x128xf32>
    %578 = vector.extract_strided_slice %546 {offsets = [0, 128], sizes = [8, 128], strides = [1, 1]} : vector<8x512xf32> to vector<8x128xf32>
    %579 = arith.negf %578 : vector<8x128xf32>
    %580 = math.exp %579 : vector<8x128xf32>
    %cst_164 = arith.constant 1.000000e+00 : f32
    %581 = vector.broadcast %cst_164 : f32 to vector<8x128xf32>
    %582 = arith.addf %581, %580 : vector<8x128xf32>
    %583 = arith.divf %581, %582 : vector<8x128xf32>
    %584 = vector.extract_strided_slice %546 {offsets = [0, 256], sizes = [8, 128], strides = [1, 1]} : vector<8x512xf32> to vector<8x128xf32>
    %585 = math.tanh %584 : vector<8x128xf32>
    %586 = vector.extract_strided_slice %546 {offsets = [0, 384], sizes = [8, 128], strides = [1, 1]} : vector<8x512xf32> to vector<8x128xf32>
    %587 = arith.negf %586 : vector<8x128xf32>
    %588 = math.exp %587 : vector<8x128xf32>
    %cst_165 = arith.constant 1.000000e+00 : f32
    %589 = vector.broadcast %cst_165 : f32 to vector<8x128xf32>
    %590 = arith.addf %589, %588 : vector<8x128xf32>
    %591 = arith.divf %589, %590 : vector<8x128xf32>
    %592 = arith.mulf %583, %523 : vector<8x128xf32>
    %593 = arith.mulf %577, %585 : vector<8x128xf32>
    %594 = arith.addf %592, %593 : vector<8x128xf32>
    %595 = math.tanh %594 : vector<8x128xf32>
    %596 = arith.mulf %591, %595 : vector<8x128xf32>
    %597 = arith.index_cast %531 : i32 to index
    %c0_166 = arith.constant 0 : index
    %598 = vector.load %arg11[%597, %c0_166] : memref<64x128xf32, #tpu.memory_space<vmem>>, vector<8x128xf32>
    tpu.vector_store %arg11[%597, %c0_166], %571 {strides = array<i32>} : memref<64x128xf32, #tpu.memory_space<vmem>>, vector<8x128xf32>,
    %599 = arith.index_cast %534 : i32 to index
    %c0_167 = arith.constant 0 : index
    %600 = vector.load %arg12[%599, %c0_167] : memref<64x128xf32, #tpu.memory_space<vmem>>, vector<8x128xf32>
    tpu.vector_store %arg12[%599, %c0_167], %596 {strides = array<i32>} : memref<64x128xf32, #tpu.memory_space<vmem>>, vector<8x128xf32>,
    %c8_i32_168 = arith.constant 8 : i32
    %c0_169 = arith.constant 0 : index
    %c0_170 = arith.constant 0 : index
    %c0_171 = arith.constant 0 : index
    %c0_172 = arith.constant 0 : index
    %601 = vector.load %arg13[%c0_169, %c0_170, %c0_171, %c0_172] : memref<2x2x8x128xf32, #tpu.memory_space<vmem>>, vector<1x1x8x128xf32>
    %602 = vector.shape_cast %601 : vector<1x1x8x128xf32> to vector<8x128xf32>
    %603 = vector.shape_cast %571 : vector<8x128xf32> to vector<1x1x8x128xf32>
    tpu.vector_store %arg13[%c0_169, %c0_170, %c0_171, %c0_172], %603 {strides = array<i32>} : memref<2x2x8x128xf32, #tpu.memory_space<vmem>>, vector<1x1x8x128xf32>,
    %c0_173 = arith.constant 0 : index
    %c1_174 = arith.constant 1 : index
    %c0_175 = arith.constant 0 : index
    %c0_176 = arith.constant 0 : index
    %604 = vector.load %arg13[%c0_173, %c1_174, %c0_175, %c0_176] : memref<2x2x8x128xf32, #tpu.memory_space<vmem>>, vector<1x1x8x128xf32>
    %605 = vector.shape_cast %604 : vector<1x1x8x128xf32> to vector<8x128xf32>
    %606 = vector.shape_cast %569 : vector<8x128xf32> to vector<1x1x8x128xf32>
    tpu.vector_store %arg13[%c0_173, %c1_174, %c0_175, %c0_176], %606 {strides = array<i32>} : memref<2x2x8x128xf32, #tpu.memory_space<vmem>>, vector<1x1x8x128xf32>,
    %c1_177 = arith.constant 1 : index
    %c0_178 = arith.constant 0 : index
    %c0_179 = arith.constant 0 : index
    %c0_180 = arith.constant 0 : index
    %607 = vector.load %arg13[%c1_177, %c0_178, %c0_179, %c0_180] : memref<2x2x8x128xf32, #tpu.memory_space<vmem>>, vector<1x1x8x128xf32>
    %608 = vector.shape_cast %607 : vector<1x1x8x128xf32> to vector<8x128xf32>
    %609 = vector.shape_cast %596 : vector<8x128xf32> to vector<1x1x8x128xf32>
    tpu.vector_store %arg13[%c1_177, %c0_178, %c0_179, %c0_180], %609 {strides = array<i32>} : memref<2x2x8x128xf32, #tpu.memory_space<vmem>>, vector<1x1x8x128xf32>,
    %c1_181 = arith.constant 1 : index
    %c1_182 = arith.constant 1 : index
    %c0_183 = arith.constant 0 : index
    %c0_184 = arith.constant 0 : index
    %610 = vector.load %arg13[%c1_181, %c1_182, %c0_183, %c0_184] : memref<2x2x8x128xf32, #tpu.memory_space<vmem>>, vector<1x1x8x128xf32>
    %611 = vector.shape_cast %610 : vector<1x1x8x128xf32> to vector<8x128xf32>
    %612 = vector.shape_cast %594 : vector<8x128xf32> to vector<1x1x8x128xf32>
    tpu.vector_store %arg13[%c1_181, %c1_182, %c0_183, %c0_184], %612 {strides = array<i32>} : memref<2x2x8x128xf32, #tpu.memory_space<vmem>>, vector<1x1x8x128xf32>,
    %c0_185 = arith.constant 0 : index
    %c0_186 = arith.constant 0 : index
    %613 = vector.load %arg11[%c0_185, %c0_186] : memref<64x128xf32, #tpu.memory_space<vmem>>, vector<64x128xf32>
    %614 = arith.truncf %613 : vector<64x128xf32> to vector<64x128xbf16>
    %cst_187 = arith.constant dense<0.000000e+00> : vector<64x128xf32>
    %615 = tpu.matmul %614, %16, %cst_187 {dimension_numbers = #tpu.dot_dimension_numbers<[1], [0], [0], [1], [0, 0, 1, 1], [], []>} : vector<64x128xbf16>, vector<128x128xbf16>, vector<64x128xf32> -> vector<64x128xf32>
    %c0_188 = arith.constant 0 : index
    %c0_189 = arith.constant 0 : index
    %616 = vector.load %arg7[%c0_188, %c0_189] : memref<64x128xf32, #tpu.memory_space<vmem>>, vector<64x128xf32>
    tpu.vector_store %arg7[%c0_188, %c0_189], %615 {strides = array<i32>} : memref<64x128xf32, #tpu.memory_space<vmem>>, vector<64x128xf32>,
    %c0_190 = arith.constant 0 : index
    %c0_191 = arith.constant 0 : index
    %617 = vector.load %arg12[%c0_190, %c0_191] : memref<64x128xf32, #tpu.memory_space<vmem>>, vector<64x128xf32>
    %618 = arith.truncf %617 : vector<64x128xf32> to vector<64x128xbf16>
    %cst_192 = arith.constant dense<0.000000e+00> : vector<64x128xf32>
    %619 = tpu.matmul %618, %18, %cst_192 {dimension_numbers = #tpu.dot_dimension_numbers<[1], [0], [0], [1], [0, 0, 1, 1], [], []>} : vector<64x128xbf16>, vector<128x128xbf16>, vector<64x128xf32> -> vector<64x128xf32>
    %c0_193 = arith.constant 0 : index
    %c0_194 = arith.constant 0 : index
    %620 = vector.load %arg8[%c0_193, %c0_194] : memref<64x128xf32, #tpu.memory_space<vmem>>, vector<64x128xf32>
    tpu.vector_store %arg8[%c0_193, %c0_194], %619 {strides = array<i32>} : memref<64x128xf32, #tpu.memory_space<vmem>>, vector<64x128xf32>,
    return
  }
  func.func @transform_0(%arg0: i32) -> (i32, i32) {
    %c0_i32 = arith.constant 0 : i32
    %c0_i32_0 = arith.constant 0 : i32
    return %arg0, %c0_i32 : i32, i32
  }
  func.func @transform_1(%arg0: i32) -> (i32, i32) {
    %c0_i32 = arith.constant 0 : i32
    %0 = arith.subi %c0_i32, %arg0 : i32
    %c0_i32_0 = arith.constant 0 : i32
    %c0_i32_1 = arith.constant 0 : i32
    return %0, %c0_i32_0 : i32, i32
  }
  func.func @transform_2(%arg0: i32) -> (i32, i32, i32) {
    %c0_i32 = arith.constant 0 : i32
    %c0_i32_0 = arith.constant 0 : i32
    %c0_i32_1 = arith.constant 0 : i32
    %c0_i32_2 = arith.constant 0 : i32
    return %c0_i32, %c0_i32_0, %c0_i32_1 : i32, i32, i32
  }
  func.func @transform_3(%arg0: i32) -> (i32, i32, i32) {
    %c0_i32 = arith.constant 0 : i32
    %c0_i32_0 = arith.constant 0 : i32
    %c0_i32_1 = arith.constant 0 : i32
    %c0_i32_2 = arith.constant 0 : i32
    return %c0_i32, %c0_i32_0, %c0_i32_1 : i32, i32, i32
  }
  func.func @transform_4(%arg0: i32) -> (i32, i32, i32) {
    %c0_i32 = arith.constant 0 : i32
    %c0_i32_0 = arith.constant 0 : i32
    %c0_i32_1 = arith.constant 0 : i32
    %c0_i32_2 = arith.constant 0 : i32
    return %c0_i32, %c0_i32_0, %c0_i32_1 : i32, i32, i32
  }
  func.func @transform_5(%arg0: i32) -> (i32, i32, i32) {
    %c0_i32 = arith.constant 0 : i32
    %c0_i32_0 = arith.constant 0 : i32
    %c0_i32_1 = arith.constant 0 : i32
    %c0_i32_2 = arith.constant 0 : i32
    return %c0_i32, %c0_i32_0, %c0_i32_1 : i32, i32, i32
  }
  func.func @transform_6(%arg0: i32) -> (i32, i32) {
    %c0_i32 = arith.constant 0 : i32
    %c0_i32_0 = arith.constant 0 : i32
    return %arg0, %c0_i32 : i32, i32
  }
  func.func @transform_7(%arg0: i32) -> (i32, i32) {
    %c0_i32 = arith.constant 0 : i32
    %0 = arith.subi %c0_i32, %arg0 : i32
    %c0_i32_0 = arith.constant 0 : i32
    %c0_i32_1 = arith.constant 0 : i32
    return %0, %c0_i32_0 : i32, i32
  }
}

</mosaic_0001>

<llo_original>
// kernel: tpu_custom_call.1
$region0: #{tpu_custom_call.1}
  #allocation0 [shape = 'u32[]', space=smem, size = 0x4, offset = 0x4, fixed_abs, tag = 'smem constant byte address 0x4 - core index']
  #allocation1 [shape = 'u32[72,128]{1,0:T(1,128)}', space=vmem, size = 0x9000, scoped, tag = 'internal scratch']
  #allocation2 [shape = 'f32[64,512]{1,0:T(8,128)}', space=vmem, size = 0x20000, scoped, tag = 'scratch operand']
  #allocation3 [shape = 'f32[64,512]{1,0:T(8,128)}', space=vmem, size = 0x20000, scoped, tag = 'scratch operand']
  #allocation4 [shape = 'f32[64,128]{1,0:T(8,128)}', space=vmem, size = 0x8000, scoped, tag = 'scratch operand']
  #allocation5 [shape = 'f32[64,128]{1,0:T(8,128)}', space=vmem, size = 0x8000, scoped, tag = 'scratch operand']
  #allocation6 [shape = 'f32[2,2,8,128]{3,2,1,0:T(8,128)}', space=vmem, size = 0x4000, scoped, tag = 'scratch operand']
  %s0 = inlined_call_operand.hbm [shape: bf16[64,128], index: 0, kind: input, shape index: {}]
  %s1 = inlined_call_operand.hbm [shape: bf16[64,128], index: 1, kind: input, shape index: {}]
  %s2 = inlined_call_operand.hbm [shape: bf16[2,128,512], index: 2, kind: input, shape index: {}]
  %s3 = inlined_call_operand.hbm [shape: f32[2,128,512], index: 3, kind: input, shape index: {}]
  %s4 = inlined_call_operand.hbm [shape: f32[2,1,512], index: 4, kind: input, shape index: {}]
  %s5 = inlined_call_operand.hbm [shape: bf16[2,128,128], index: 5, kind: input, shape index: {}]
  %s6 = inlined_call_operand.hbm [shape: f32[64,128], index: 6, kind: output, shape index: {0}]
  %s7 = inlined_call_operand.hbm [shape: f32[64,128], index: 7, kind: output, shape index: {1}]
  %8 = xla_tuple %s6, %s7
  %s9 = sld [smem:[#allocation0]]
  $region70: #{tpu_custom_call.1} parent=0
    _
  %s11 = ssub.s32 1, %s9
  %s12 = scalar_select 0, %s11, %s9
  $region1: #{tpu_custom_call.1} parent=0
    #allocation7 [shape = 'u8[16384]{0}', space=vmem, size = 0x4000, scoped, tag = 'input window, operand 0, single buffered']
    #allocation8 [shape = 's32[1]{0}', space=sflag, size = 0x4, scoped, tag = 'scoped memory for tpu_custom_call.1']
    #allocation9 [shape = 's32[1]{0}', space=sflag, size = 0x4, scoped, tag = 'scoped memory for tpu_custom_call.1']
    #allocation10 [shape = 'u8[16384]{0}', space=vmem, size = 0x4000, scoped, tag = 'input window, operand 1, single buffered']
    #allocation11 [shape = 's32[1]{0}', space=sflag, size = 0x4, scoped, tag = 'scoped memory for tpu_custom_call.1']
    #allocation12 [shape = 'u8[262144]{0}', space=vmem, size = 0x40000, scoped, tag = 'input window, operand 2, single buffered']
    #allocation13 [shape = 'u8[524288]{0}', space=vmem, size = 0x80000, scoped, tag = 'input window, operand 3, single buffered']
    #allocation14 [shape = 's32[1]{0}', space=sflag, size = 0x4, scoped, tag = 'scoped memory for tpu_custom_call.1']
    #allocation15 [shape = 'u8[4096]{0}', space=vmem, size = 0x1000, scoped, tag = 'input window, operand 4, single buffered']
    #allocation16 [shape = 'u8[65536]{0}', space=vmem, size = 0x10000, scoped, tag = 'input window, operand 5, single buffered']
    #allocation17 [shape = 's32[1]{0}', space=sflag, size = 0x4, scoped, tag = 'scoped memory for tpu_custom_call.1']
    #allocation18 [shape = 'u8[32768]{0}', space=vmem, size = 0x8000, scoped, tag = 'output window, operand 0, single buffered']
    #allocation19 [shape = 'u8[32768]{0}', space=vmem, size = 0x8000, scoped, tag = 'output window, operand 1, single buffered']
    #allocation20 [shape = 's32[1]{0}', space=sflag, size = 0x4, scoped, tag = 'scoped memory for tpu_custom_call.1']
    %13 = vsyncpa [#allocation8], 0
    %14 = vsyncpa [#allocation11], 0
    %15 = vsyncpa [#allocation14], 0
    %16 = vsyncpa [#allocation17], 0
    %17 = vsyncpa [#allocation9], 0
    %18 = vsyncpa [#allocation20], 0
    // Predicated region
    $region2: #{tpu_custom_call.1} parent=1 // pred_check
      _
    $region3: #{tpu_custom_call.1} parent=1 // pred_check_branch
      %20 = sbr.rel (0) target = $region5
    $region4: #{tpu_custom_call.1} parent=1 // pred_region
      %22 = vsyncadd [#allocation8], 0
      %s23 = sshll.u32 %s0, 4
      %s24 = int_to_ptr.hbm [resolvable:$true] %s23
      %s25 = sshll.u32 [#allocation7], 4
      %s26 = int_to_ptr.vmem [resolvable:$true] %s25
      %31 = dma.hbm_to_vmem [thread:$0]  %s24, 512, %s26, [#allocation8], 64, 64, 4
    $region5: #{tpu_custom_call.1} parent=1 // pred_fallthru
      _
    // Predicated region
    $region6: #{tpu_custom_call.1} parent=1 // pred_check
      _
    $region7: #{tpu_custom_call.1} parent=1 // pred_check_branch
      %33 = sbr.rel (0) target = $region9
    $region8: #{tpu_custom_call.1} parent=1 // pred_region
      %s34 = ssub.s32 0, 0
      %s35 = smul.u32 8, %s34
      %37 = vsyncadd [#allocation11], 0
      %s38 = smul.addr %s35, 4
      %s39 = scalar_lea.hbm %s1, %s38
      %s40 = sshll.u32 %s39, 4
      %s41 = int_to_ptr.hbm [resolvable:$true] %s40
      %s42 = sshll.u32 [#allocation10], 4
      %s43 = int_to_ptr.vmem [resolvable:$true] %s42
      %48 = dma.hbm_to_vmem [thread:$0]  %s41, 512, %s43, [#allocation11], 64, 64, 4
    $region9: #{tpu_custom_call.1} parent=1 // pred_fallthru
      _
    // Predicated region
    $region10: #{tpu_custom_call.1} parent=1 // pred_check
      _
    $region11: #{tpu_custom_call.1} parent=1 // pred_check_branch
      %50 = sbr.rel (0) target = $region13
    $region12: #{tpu_custom_call.1} parent=1 // pred_region
      %52 = vsyncadd [#allocation11], 0
      %s53 = sshll.u32 %s2, 4
      %s54 = int_to_ptr.hbm [resolvable:$true] %s53
      %s55 = sshll.u32 [#allocation12], 4
      %s56 = int_to_ptr.vmem [resolvable:$true] %s55
      %61 = dma.hbm_to_vmem [thread:$0]  %s54, 8192, %s56, [#allocation11], 256, 256, 16
    $region13: #{tpu_custom_call.1} parent=1 // pred_fallthru
      _
    // Predicated region
    $region14: #{tpu_custom_call.1} parent=1 // pred_check
      _
    $region15: #{tpu_custom_call.1} parent=1 // pred_check_branch
      %63 = sbr.rel (0) target = $region17
    $region16: #{tpu_custom_call.1} parent=1 // pred_region
      %65 = vsyncadd [#allocation14], 0
      %s66 = sshll.u32 %s3, 4
      %s67 = int_to_ptr.hbm [resolvable:$true] %s66
      %s68 = sshll.u32 [#allocation13], 4
      %s69 = int_to_ptr.vmem [resolvable:$true] %s68
      %74 = dma.hbm_to_vmem [thread:$0]  %s67, 16384, %s69, [#allocation14], 512, 512, 32
    $region17: #{tpu_custom_call.1} parent=1 // pred_fallthru
      _
    // Predicated region
    $region18: #{tpu_custom_call.1} parent=1 // pred_check
      _
    $region19: #{tpu_custom_call.1} parent=1 // pred_check_branch
      %76 = sbr.rel (0) target = $region21
    $region20: #{tpu_custom_call.1} parent=1 // pred_region
      %78 = vsyncadd [#allocation14], 0
      %s79 = sshll.u32 %s4, 4
      %s80 = int_to_ptr.hbm [resolvable:$true] %s79
      %s81 = sshll.u32 [#allocation15], 4
      %s82 = int_to_ptr.vmem [resolvable:$true] %s81
      %87 = dma.hbm_to_vmem [thread:$0]  %s80, 128, %s82, [#allocation14], 64, 64, 4
    $region21: #{tpu_custom_call.1} parent=1 // pred_fallthru
      _
    // Predicated region
    $region22: #{tpu_custom_call.1} parent=1 // pred_check
      _
    $region23: #{tpu_custom_call.1} parent=1 // pred_check_branch
      %89 = sbr.rel (0) target = $region25
    $region24: #{tpu_custom_call.1} parent=1 // pred_region
      %91 = vsyncadd [#allocation17], 0
      %s92 = sshll.u32 %s5, 4
      %s93 = int_to_ptr.hbm [resolvable:$true] %s92
      %s94 = sshll.u32 [#allocation16], 4
      %s95 = int_to_ptr.vmem [resolvable:$true] %s94
      %100 = dma.hbm_to_vmem [thread:$0]  %s93, 2048, %s95, [#allocation17], 64, 64, 4
    $region25: #{tpu_custom_call.1} parent=1 // pred_fallthru
      _
    // Predicated region
    $region26: #{tpu_custom_call.1} parent=1 // pred_check
      _
    $region27: #{tpu_custom_call.1} parent=1 // pred_check_branch
      %102 = sbr.rel (0) target = $region29
    $region28: #{tpu_custom_call.1} parent=1 // pred_region
      %104 = dma.done [#allocation8], 512
    $region29: #{tpu_custom_call.1} parent=1 // pred_fallthru
      _
    // Predicated region
    $region30: #{tpu_custom_call.1} parent=1 // pred_check
      _
    $region31: #{tpu_custom_call.1} parent=1 // pred_check_branch
      %106 = sbr.rel (0) target = $region33
    $region32: #{tpu_custom_call.1} parent=1 // pred_region
      %108 = dma.done [#allocation11], 512
    $region33: #{tpu_custom_call.1} parent=1 // pred_fallthru
      _
    // Predicated region
    $region34: #{tpu_custom_call.1} parent=1 // pred_check
      _
    $region35: #{tpu_custom_call.1} parent=1 // pred_check_branch
      %110 = sbr.rel (0) target = $region37
    $region36: #{tpu_custom_call.1} parent=1 // pred_region
      %112 = dma.done [#allocation11], 8192
    $region37: #{tpu_custom_call.1} parent=1 // pred_fallthru
      _
    // Predicated region
    $region38: #{tpu_custom_call.1} parent=1 // pred_check
      _
    $region39: #{tpu_custom_call.1} parent=1 // pred_check_branch
      %114 = sbr.rel (0) target = $region41
    $region40: #{tpu_custom_call.1} parent=1 // pred_region
      %116 = dma.done [#allocation14], 16384
    $region41: #{tpu_custom_call.1} parent=1 // pred_fallthru
      _
    // Predicated region
    $region42: #{tpu_custom_call.1} parent=1 // pred_check
      _
    $region43: #{tpu_custom_call.1} parent=1 // pred_check_branch
      %118 = sbr.rel (0) target = $region45
    $region44: #{tpu_custom_call.1} parent=1 // pred_region
      %120 = dma.done [#allocation14], 128
    $region45: #{tpu_custom_call.1} parent=1 // pred_fallthru
      _
    // Predicated region
    $region46: #{tpu_custom_call.1} parent=1 // pred_check
      _
    $region47: #{tpu_custom_call.1} parent=1 // pred_check_branch
      %122 = sbr.rel (0) target = $region49
    $region48: #{tpu_custom_call.1} parent=1 // pred_region
      %124 = dma.done [#allocation17], 2048
    $region49: #{tpu_custom_call.1} parent=1 // pred_fallthru
      _
    %s125 = ssub.s32 0, 0
    %s126 = smul.u32 8, %s125
    %s127 = ssub.s32 0, 0
    %s128 = smul.u32 8, %s127
    %p129 = scmp.eq.s32.totalorder 0, 0
    // Predicated region
    $region50: #{tpu_custom_call.1} parent=1 // pred_check
      %p130 = pneg %p129
    $region51: #{tpu_custom_call.1} parent=1 // pred_check_branch
      %132 = sbr.rel (%p130) target = $region53
    $region52: #{tpu_custom_call.1} parent=1 // pred_region
      %133 = vst [vmem:[#allocation6] sm:$0xff] 0.0
      %134 = vst [vmem:[#allocation6 + $0x8] sm:$0xff] 0.0
      %135 = vst [vmem:[#allocation6 + $0x10] sm:$0xff] 0.0
      %136 = vst [vmem:[#allocation6 + $0x18] sm:$0xff] 0.0
    $region53: #{tpu_custom_call.1} parent=1 // pred_fallthru
      _
    %v137 = vld [vmem:[#allocation12] sm:$0xff]
    %v138 = vld [vmem:[#allocation12 + $0x8] sm:$0xff]
    %v139 = vld [vmem:[#allocation12 + $0x10] sm:$0xff]
    %v140 = vld [vmem:[#allocation12 + $0x18] sm:$0xff]
    %v141 = vld [vmem:[#allocation12 + $0x20] sm:$0xff]
    %v142 = vld [vmem:[#allocation12 + $0x28] sm:$0xff]
    %v143 = vld [vmem:[#allocation12 + $0x30] sm:$0xff]
    %v144 = vld [vmem:[#allocation12 + $0x38] sm:$0xff]
    %v145 = vld [vmem:[#allocation12 + $0x40] sm:$0xff]
    %v146 = vld [vmem:[#allocation12 + $0x48] sm:$0xff]
    %v147 = vld [vmem:[#allocation12 + $0x50] sm:$0xff]
    %v148 = vld [vmem:[#allocation12 + $0x58] sm:$0xff]
    %v149 = vld [vmem:[#allocation12 + $0x60] sm:$0xff]
    %v150 = vld [vmem:[#allocation12 + $0x68] sm:$0xff]
    %v151 = vld [vmem:[#allocation12 + $0x70] sm:$0xff]
    %v152 = vld [vmem:[#allocation12 + $0x78] sm:$0xff]
    %v153 = vld [vmem:[#allocation12 + $0x80] sm:$0xff]
    %v154 = vld [vmem:[#allocation12 + $0x88] sm:$0xff]
    %v155 = vld [vmem:[#allocation12 + $0x90] sm:$0xff]
    %v156 = vld [vmem:[#allocation12 + $0x98] sm:$0xff]
    %v157 = vld [vmem:[#allocation12 + $0xa0] sm:$0xff]
    %v158 = vld [vmem:[#allocation12 + $0xa8] sm:$0xff]
    %v159 = vld [vmem:[#allocation12 + $0xb0] sm:$0xff]
    %v160 = vld [vmem:[#allocation12 + $0xb8] sm:$0xff]
    %v161 = vld [vmem:[#allocation12 + $0xc0] sm:$0xff]
    %v162 = vld [vmem:[#allocation12 + $0xc8] sm:$0xff]
    %v163 = vld [vmem:[#allocation12 + $0xd0] sm:$0xff]
    %v164 = vld [vmem:[#allocation12 + $0xd8] sm:$0xff]
    %v165 = vld [vmem:[#allocation12 + $0xe0] sm:$0xff]
    %v166 = vld [vmem:[#allocation12 + $0xe8] sm:$0xff]
    %v167 = vld [vmem:[#allocation12 + $0xf0] sm:$0xff]
    %v168 = vld [vmem:[#allocation12 + $0xf8] sm:$0xff]
    %s169 = scalar_lea.vmem [#allocation12], 256
    %v170 = vld [vmem:[%s169] sm:$0xff]
    %v171 = vld [vmem:[%s169 + $0x8] sm:$0xff]
    %v172 = vld [vmem:[%s169 + $0x10] sm:$0xff]
    %v173 = vld [vmem:[%s169 + $0x18] sm:$0xff]
    %v174 = vld [vmem:[%s169 + $0x20] sm:$0xff]
    %v175 = vld [vmem:[%s169 + $0x28] sm:$0xff]
    %v176 = vld [vmem:[%s169 + $0x30] sm:$0xff]
    %v177 = vld [vmem:[%s169 + $0x38] sm:$0xff]
    %v178 = vld [vmem:[%s169 + $0x40] sm:$0xff]
    %v179 = vld [vmem:[%s169 + $0x48] sm:$0xff]
    %v180 = vld [vmem:[%s169 + $0x50] sm:$0xff]
    %v181 = vld [vmem:[%s169 + $0x58] sm:$0xff]
    %v182 = vld [vmem:[%s169 + $0x60] sm:$0xff]
    %v183 = vld [vmem:[%s169 + $0x68] sm:$0xff]
    %v184 = vld [vmem:[%s169 + $0x70] sm:$0xff]
    %v185 = vld [vmem:[%s169 + $0x78] sm:$0xff]
    %v186 = vld [vmem:[%s169 + $0x80] sm:$0xff]
    %v187 = vld [vmem:[%s169 + $0x88] sm:$0xff]
    %v188 = vld [vmem:[%s169 + $0x90] sm:$0xff]
    %v189 = vld [vmem:[%s169 + $0x98] sm:$0xff]
    %v190 = vld [vmem:[%s169 + $0xa0] sm:$0xff]
    %v191 = vld [vmem:[%s169 + $0xa8] sm:$0xff]
    %v192 = vld [vmem:[%s169 + $0xb0] sm:$0xff]
    %v193 = vld [vmem:[%s169 + $0xb8] sm:$0xff]
    %v194 = vld [vmem:[%s169 + $0xc0] sm:$0xff]
    %v195 = vld [vmem:[%s169 + $0xc8] sm:$0xff]
    %v196 = vld [vmem:[%s169 + $0xd0] sm:$0xff]
    %v197 = vld [vmem:[%s169 + $0xd8] sm:$0xff]
    %v198 = vld [vmem:[%s169 + $0xe0] sm:$0xff]
    %v199 = vld [vmem:[%s169 + $0xe8] sm:$0xff]
    %v200 = vld [vmem:[%s169 + $0xf0] sm:$0xff]
    %v201 = vld [vmem:[%s169 + $0xf8] sm:$0xff]
    %v202 = vld [vmem:[#allocation13] sm:$0xff]
    %v203 = vld [vmem:[#allocation13 + $0x8] sm:$0xff]
    %v204 = vld [vmem:[#allocation13 + $0x10] sm:$0xff]
    %v205 = vld [vmem:[#allocation13 + $0x18] sm:$0xff]
    %v206 = vld [vmem:[#allocation13 + $0x20] sm:$0xff]
    %v207 = vld [vmem:[#allocation13 + $0x28] sm:$0xff]
    %v208 = vld [vmem:[#allocation13 + $0x30] sm:$0xff]
    %v209 = vld [vmem:[#allocation13 + $0x38] sm:$0xff]
    %v210 = vld [vmem:[#allocation13 + $0x40] sm:$0xff]
    %v211 = vld [vmem:[#allocation13 + $0x48] sm:$0xff]
    %v212 = vld [vmem:[#allocation13 + $0x50] sm:$0xff]
    %v213 = vld [vmem:[#allocation13 + $0x58] sm:$0xff]
    %v214 = vld [vmem:[#allocation13 + $0x60] sm:$0xff]
    %v215 = vld [vmem:[#allocation13 + $0x68] sm:$0xff]
    %v216 = vld [vmem:[#allocation13 + $0x70] sm:$0xff]
    %v217 = vld [vmem:[#allocation13 + $0x78] sm:$0xff]
    %v218 = vld [vmem:[#allocation13 + $0x80] sm:$0xff]
    %v219 = vld [vmem:[#allocation13 + $0x88] sm:$0xff]
    %v220 = vld [vmem:[#allocation13 + $0x90] sm:$0xff]
    %v221 = vld [vmem:[#allocation13 + $0x98] sm:$0xff]
    %v222 = vld [vmem:[#allocation13 + $0xa0] sm:$0xff]
    %v223 = vld [vmem:[#allocation13 + $0xa8] sm:$0xff]
    %v224 = vld [vmem:[#allocation13 + $0xb0] sm:$0xff]
    %v225 = vld [vmem:[#allocation13 + $0xb8] sm:$0xff]
    %v226 = vld [vmem:[#allocation13 + $0xc0] sm:$0xff]
    %v227 = vld [vmem:[#allocation13 + $0xc8] sm:$0xff]
    %v228 = vld [vmem:[#allocation13 + $0xd0] sm:$0xff]
    %v229 = vld [vmem:[#allocation13 + $0xd8] sm:$0xff]
    %v230 = vld [vmem:[#allocation13 + $0xe0] sm:$0xff]
    %v231 = vld [vmem:[#allocation13 + $0xe8] sm:$0xff]
    %v232 = vld [vmem:[#allocation13 + $0xf0] sm:$0xff]
    %v233 = vld [vmem:[#allocation13 + $0xf8] sm:$0xff]
    %v234 = vld [vmem:[#allocation13 + $0x100] sm:$0xff]
    %v235 = vld [vmem:[#allocation13 + $0x108] sm:$0xff]
    %v236 = vld [vmem:[#allocation13 + $0x110] sm:$0xff]
    %v237 = vld [vmem:[#allocation13 + $0x118] sm:$0xff]
    %v238 = vld [vmem:[#allocation13 + $0x120] sm:$0xff]
    %v239 = vld [vmem:[#allocation13 + $0x128] sm:$0xff]
    %v240 = vld [vmem:[#allocation13 + $0x130] sm:$0xff]
    %v241 = vld [vmem:[#allocation13 + $0x138] sm:$0xff]
    %v242 = vld [vmem:[#allocation13 + $0x140] sm:$0xff]
    %v243 = vld [vmem:[#allocation13 + $0x148] sm:$0xff]
    %v244 = vld [vmem:[#allocation13 + $0x150] sm:$0xff]
    %v245 = vld [vmem:[#allocation13 + $0x158] sm:$0xff]
    %v246 = vld [vmem:[#allocation13 + $0x160] sm:$0xff]
    %v247 = vld [vmem:[#allocation13 + $0x168] sm:$0xff]
    %v248 = vld [vmem:[#allocation13 + $0x170] sm:$0xff]
    %v249 = vld [vmem:[#allocation13 + $0x178] sm:$0xff]
    %v250 = vld [vmem:[#allocation13 + $0x180] sm:$0xff]
    %v251 = vld [vmem:[#allocation13 + $0x188] sm:$0xff]
    %v252 = vld [vmem:[#allocation13 + $0x190] sm:$0xff]
    %v253 = vld [vmem:[#allocation13 + $0x198] sm:$0xff]
    %v254 = vld [vmem:[#allocation13 + $0x1a0] sm:$0xff]
    %v255 = vld [vmem:[#allocation13 + $0x1a8] sm:$0xff]
    %v256 = vld [vmem:[#allocation13 + $0x1b0] sm:$0xff]
    %v257 = vld [vmem:[#allocation13 + $0x1b8] sm:$0xff]
    %v258 = vld [vmem:[#allocation13 + $0x1c0] sm:$0xff]
    %v259 = vld [vmem:[#allocation13 + $0x1c8] sm:$0xff]
    %v260 = vld [vmem:[#allocation13 + $0x1d0] sm:$0xff]
    %v261 = vld [vmem:[#allocation13 + $0x1d8] sm:$0xff]
    %v262 = vld [vmem:[#allocation13 + $0x1e0] sm:$0xff]
    %v263 = vld [vmem:[#allocation13 + $0x1e8] sm:$0xff]
    %v264 = vld [vmem:[#allocation13 + $0x1f0] sm:$0xff]
    %v265 = vld [vmem:[#allocation13 + $0x1f8] sm:$0xff]
    %s266 = scalar_lea.vmem [#allocation13], 512
    %v267 = vld [vmem:[%s266] sm:$0xff]
    %v268 = vld [vmem:[%s266 + $0x8] sm:$0xff]
    %v269 = vld [vmem:[%s266 + $0x10] sm:$0xff]
    %v270 = vld [vmem:[%s266 + $0x18] sm:$0xff]
    %v271 = vld [vmem:[%s266 + $0x20] sm:$0xff]
    %v272 = vld [vmem:[%s266 + $0x28] sm:$0xff]
    %v273 = vld [vmem:[%s266 + $0x30] sm:$0xff]
    %v274 = vld [vmem:[%s266 + $0x38] sm:$0xff]
    %v275 = vld [vmem:[%s266 + $0x40] sm:$0xff]
    %v276 = vld [vmem:[%s266 + $0x48] sm:$0xff]
    %v277 = vld [vmem:[%s266 + $0x50] sm:$0xff]
    %v278 = vld [vmem:[%s266 + $0x58] sm:$0xff]
    %v279 = vld [vmem:[%s266 + $0x60] sm:$0xff]
    %v280 = vld [vmem:[%s266 + $0x68] sm:$0xff]
    %v281 = vld [vmem:[%s266 + $0x70] sm:$0xff]
    %v282 = vld [vmem:[%s266 + $0x78] sm:$0xff]
    %v283 = vld [vmem:[%s266 + $0x80] sm:$0xff]
    %v284 = vld [vmem:[%s266 + $0x88] sm:$0xff]
    %v285 = vld [vmem:[%s266 + $0x90] sm:$0xff]
    %v286 = vld [vmem:[%s266 + $0x98] sm:$0xff]
    %v287 = vld [vmem:[%s266 + $0xa0] sm:$0xff]
    %v288 = vld [vmem:[%s266 + $0xa8] sm:$0xff]
    %v289 = vld [vmem:[%s266 + $0xb0] sm:$0xff]
    %v290 = vld [vmem:[%s266 + $0xb8] sm:$0xff]
    %v291 = vld [vmem:[%s266 + $0xc0] sm:$0xff]
    %v292 = vld [vmem:[%s266 + $0xc8] sm:$0xff]
    %v293 = vld [vmem:[%s266 + $0xd0] sm:$0xff]
    %v294 = vld [vmem:[%s266 + $0xd8] sm:$0xff]
    %v295 = vld [vmem:[%s266 + $0xe0] sm:$0xff]
    %v296 = vld [vmem:[%s266 + $0xe8] sm:$0xff]
    %v297 = vld [vmem:[%s266 + $0xf0] sm:$0xff]
    %v298 = vld [vmem:[%s266 + $0xf8] sm:$0xff]
    %v299 = vld [vmem:[%s266 + $0x100] sm:$0xff]
    %v300 = vld [vmem:[%s266 + $0x108] sm:$0xff]
    %v301 = vld [vmem:[%s266 + $0x110] sm:$0xff]
    %v302 = vld [vmem:[%s266 + $0x118] sm:$0xff]
    %v303 = vld [vmem:[%s266 + $0x120] sm:$0xff]
    %v304 = vld [vmem:[%s266 + $0x128] sm:$0xff]
    %v305 = vld [vmem:[%s266 + $0x130] sm:$0xff]
    %v306 = vld [vmem:[%s266 + $0x138] sm:$0xff]
    %v307 = vld [vmem:[%s266 + $0x140] sm:$0xff]
    %v308 = vld [vmem:[%s266 + $0x148] sm:$0xff]
    %v309 = vld [vmem:[%s266 + $0x150] sm:$0xff]
    %v310 = vld [vmem:[%s266 + $0x158] sm:$0xff]
    %v311 = vld [vmem:[%s266 + $0x160] sm:$0xff]
    %v312 = vld [vmem:[%s266 + $0x168] sm:$0xff]
    %v313 = vld [vmem:[%s266 + $0x170] sm:$0xff]
    %v314 = vld [vmem:[%s266 + $0x178] sm:$0xff]
    %v315 = vld [vmem:[%s266 + $0x180] sm:$0xff]
    %v316 = vld [vmem:[%s266 + $0x188] sm:$0xff]
    %v317 = vld [vmem:[%s266 + $0x190] sm:$0xff]
    %v318 = vld [vmem:[%s266 + $0x198] sm:$0xff]
    %v319 = vld [vmem:[%s266 + $0x1a0] sm:$0xff]
    %v320 = vld [vmem:[%s266 + $0x1a8] sm:$0xff]
    %v321 = vld [vmem:[%s266 + $0x1b0] sm:$0xff]
    %v322 = vld [vmem:[%s266 + $0x1b8] sm:$0xff]
    %v323 = vld [vmem:[%s266 + $0x1c0] sm:$0xff]
    %v324 = vld [vmem:[%s266 + $0x1c8] sm:$0xff]
    %v325 = vld [vmem:[%s266 + $0x1d0] sm:$0xff]
    %v326 = vld [vmem:[%s266 + $0x1d8] sm:$0xff]
    %v327 = vld [vmem:[%s266 + $0x1e0] sm:$0xff]
    %v328 = vld [vmem:[%s266 + $0x1e8] sm:$0xff]
    %v329 = vld [vmem:[%s266 + $0x1f0] sm:$0xff]
    %v330 = vld [vmem:[%s266 + $0x1f8] sm:$0xff]
    %v331 = vld [vmem:[#allocation15] sm:$0xf]
    %s332 = scalar_lea.vmem [#allocation15], 4
    %v333 = vld [vmem:[%s332] sm:$0xf]
    %v334 = vld [vmem:[#allocation16] sm:$0xf]
    %v335 = vld [vmem:[#allocation16 + $0x4] sm:$0xf]
    %v336 = vld [vmem:[#allocation16 + $0x8] sm:$0xf]
    %v337 = vld [vmem:[#allocation16 + $0xc] sm:$0xf]
    %v338 = vld [vmem:[#allocation16 + $0x10] sm:$0xf]
    %v339 = vld [vmem:[#allocation16 + $0x14] sm:$0xf]
    %v340 = vld [vmem:[#allocation16 + $0x18] sm:$0xf]
    %v341 = vld [vmem:[#allocation16 + $0x1c] sm:$0xf]
    %v342 = vld [vmem:[#allocation16 + $0x20] sm:$0xf]
    %v343 = vld [vmem:[#allocation16 + $0x24] sm:$0xf]
    %v344 = vld [vmem:[#allocation16 + $0x28] sm:$0xf]
    %v345 = vld [vmem:[#allocation16 + $0x2c] sm:$0xf]
    %v346 = vld [vmem:[#allocation16 + $0x30] sm:$0xf]
    %v347 = vld [vmem:[#allocation16 + $0x34] sm:$0xf]
    %v348 = vld [vmem:[#allocation16 + $0x38] sm:$0xf]
    %v349 = vld [vmem:[#allocation16 + $0x3c] sm:$0xf]
    %s350 = scalar_lea.vmem [#allocation16], 64
    %v351 = vld [vmem:[%s350] sm:$0xf]
    %v352 = vld [vmem:[%s350 + $0x4] sm:$0xf]
    %v353 = vld [vmem:[%s350 + $0x8] sm:$0xf]
    %v354 = vld [vmem:[%s350 + $0xc] sm:$0xf]
    %v355 = vld [vmem:[%s350 + $0x10] sm:$0xf]
    %v356 = vld [vmem:[%s350 + $0x14] sm:$0xf]
    %v357 = vld [vmem:[%s350 + $0x18] sm:$0xf]
    %v358 = vld [vmem:[%s350 + $0x1c] sm:$0xf]
    %v359 = vld [vmem:[%s350 + $0x20] sm:$0xf]
    %v360 = vld [vmem:[%s350 + $0x24] sm:$0xf]
    %v361 = vld [vmem:[%s350 + $0x28] sm:$0xf]
    %v362 = vld [vmem:[%s350 + $0x2c] sm:$0xf]
    %v363 = vld [vmem:[%s350 + $0x30] sm:$0xf]
    %v364 = vld [vmem:[%s350 + $0x34] sm:$0xf]
    %v365 = vld [vmem:[%s350 + $0x38] sm:$0xf]
    %v366 = vld [vmem:[%s350 + $0x3c] sm:$0xf]
    %v367 = vld [vmem:[#allocation7] sm:$0xf]
    %v368 = vld [vmem:[#allocation7 + $0x4] sm:$0xf]
    %v369 = vld [vmem:[#allocation7 + $0x8] sm:$0xf]
    %v370 = vld [vmem:[#allocation7 + $0xc] sm:$0xf]
    %v371 = vld [vmem:[#allocation7 + $0x10] sm:$0xf]
    %v372 = vld [vmem:[#allocation7 + $0x14] sm:$0xf]
    %v373 = vld [vmem:[#allocation7 + $0x18] sm:$0xf]
    %v374 = vld [vmem:[#allocation7 + $0x1c] sm:$0xf]
    %v383 = vunpack.c.l.b16 %v367
    %v384 = vunpack.c.l.b16 %v368
    %v385 = vunpack.c.l.b16 %v369
    %v386 = vunpack.c.l.b16 %v370
    %v387 = vunpack.c.l.b16 %v371
    %v388 = vunpack.c.l.b16 %v372
    %v389 = vunpack.c.l.b16 %v373
    %v390 = vunpack.c.l.b16 %v374
    %v391 = vpack.c.b16 %v384, %v383
    %v392 = vpack.c.b16 %v386, %v385
    %v393 = vpack.c.b16 %v388, %v387
    %v394 = vpack.c.b16 %v390, %v389
    %v431 = vunpack.c.l.b16 %v137
    %v432 = vunpack.c.h.b16 %v137
    %v433 = vunpack.c.l.b16 %v138
    %v434 = vunpack.c.h.b16 %v138
    %v435 = vunpack.c.l.b16 %v139
    %v436 = vunpack.c.h.b16 %v139
    %v437 = vunpack.c.l.b16 %v140
    %v438 = vunpack.c.h.b16 %v140
    %v439 = vunpack.c.l.b16 %v141
    %v440 = vunpack.c.h.b16 %v141
    %v441 = vunpack.c.l.b16 %v142
    %v442 = vunpack.c.h.b16 %v142
    %v443 = vunpack.c.l.b16 %v143
    %v444 = vunpack.c.h.b16 %v143
    %v445 = vunpack.c.l.b16 %v144
    %v446 = vunpack.c.h.b16 %v144
    %v447 = vunpack.c.l.b16 %v145
    %v448 = vunpack.c.h.b16 %v145
    %v449 = vunpack.c.l.b16 %v146
    %v450 = vunpack.c.h.b16 %v146
    %v451 = vunpack.c.l.b16 %v147
    %v452 = vunpack.c.h.b16 %v147
    %v453 = vunpack.c.l.b16 %v148
    %v454 = vunpack.c.h.b16 %v148
    %v455 = vunpack.c.l.b16 %v149
    %v456 = vunpack.c.h.b16 %v149
    %v457 = vunpack.c.l.b16 %v150
    %v458 = vunpack.c.h.b16 %v150
    %v459 = vunpack.c.l.b16 %v151
    %v460 = vunpack.c.h.b16 %v151
    %v461 = vunpack.c.l.b16 %v152
    %v462 = vunpack.c.h.b16 %v152
    %v463 = vunpack.c.l.b16 %v153
    %v464 = vunpack.c.h.b16 %v153
    %v465 = vunpack.c.l.b16 %v154
    %v466 = vunpack.c.h.b16 %v154
    %v467 = vunpack.c.l.b16 %v155
    %v468 = vunpack.c.h.b16 %v155
    %v469 = vunpack.c.l.b16 %v156
    %v470 = vunpack.c.h.b16 %v156
    %v471 = vunpack.c.l.b16 %v157
    %v472 = vunpack.c.h.b16 %v157
    %v473 = vunpack.c.l.b16 %v158
    %v474 = vunpack.c.h.b16 %v158
    %v475 = vunpack.c.l.b16 %v159
    %v476 = vunpack.c.h.b16 %v159
    %v477 = vunpack.c.l.b16 %v160
    %v478 = vunpack.c.h.b16 %v160
    %v479 = vunpack.c.l.b16 %v161
    %v480 = vunpack.c.h.b16 %v161
    %v481 = vunpack.c.l.b16 %v162
    %v482 = vunpack.c.h.b16 %v162
    %v483 = vunpack.c.l.b16 %v163
    %v484 = vunpack.c.h.b16 %v163
    %v485 = vunpack.c.l.b16 %v164
    %v486 = vunpack.c.h.b16 %v164
    %v487 = vunpack.c.l.b16 %v165
    %v488 = vunpack.c.h.b16 %v165
    %v489 = vunpack.c.l.b16 %v166
    %v490 = vunpack.c.h.b16 %v166
    %v491 = vunpack.c.l.b16 %v167
    %v492 = vunpack.c.h.b16 %v167
    %v493 = vunpack.c.l.b16 %v168
    %v494 = vunpack.c.h.b16 %v168
    %v495 = vpack.c.b16 %v435, %v431
    %v496 = vpack.c.b16 %v436, %v432
    %v497 = vpack.c.b16 %v437, %v433
    %v498 = vpack.c.b16 %v438, %v434
    %v499 = vpack.c.b16 %v443, %v439
    %v500 = vpack.c.b16 %v444, %v440
    %v501 = vpack.c.b16 %v445, %v441
    %v502 = vpack.c.b16 %v446, %v442
    %v503 = vpack.c.b16 %v451, %v447
    %v504 = vpack.c.b16 %v452, %v448
    %v505 = vpack.c.b16 %v453, %v449
    %v506 = vpack.c.b16 %v454, %v450
    %v507 = vpack.c.b16 %v459, %v455
    %v508 = vpack.c.b16 %v460, %v456
    %v509 = vpack.c.b16 %v461, %v457
    %v510 = vpack.c.b16 %v462, %v458
    %v511 = vpack.c.b16 %v467, %v463
    %v512 = vpack.c.b16 %v468, %v464
    %v513 = vpack.c.b16 %v469, %v465
    %v514 = vpack.c.b16 %v470, %v466
    %v515 = vpack.c.b16 %v475, %v471
    %v516 = vpack.c.b16 %v476, %v472
    %v517 = vpack.c.b16 %v477, %v473
    %v518 = vpack.c.b16 %v478, %v474
    %v519 = vpack.c.b16 %v483, %v479
    %v520 = vpack.c.b16 %v484, %v480
    %v521 = vpack.c.b16 %v485, %v481
    %v522 = vpack.c.b16 %v486, %v482
    %v523 = vpack.c.b16 %v491, %v487
    %v524 = vpack.c.b16 %v492, %v488
    %v525 = vpack.c.b16 %v493, %v489
    %v526 = vpack.c.b16 %v494, %v490
    %559 = vmatpush.bf16.msra.mxu0 %v523
    %560 = vmatpush.bf16.msra.mxu0 %v519
    %561 = vmatpush.bf16.msra.mxu0 %v515
    %562 = vmatpush.bf16.msra.mxu0 %v511
    %563 = vmatpush.bf16.msra.mxu0 %v507
    %564 = vmatpush.bf16.msra.mxu0 %v503
    %565 = vmatpush.bf16.msra.mxu0 %v499
    %566 = vmatpush.bf16.msra.mxu0 %v495
    %567 = vmatmul.bf16.gmra.mxu0 %v391
    %v568 = vpop.f32.mrf.mxu0
    %v569 = vadd.f32 0.0, %v568
    %v570 = vpop.f32.mrf.mxu0
    %v571 = vadd.f32 0.0, %v570
    %572 = vmatmul.bf16.gmra.mxu0 %v392
    %v573 = vpop.f32.mrf.mxu0
    %v574 = vadd.f32 0.0, %v573
    %v575 = vpop.f32.mrf.mxu0
    %v576 = vadd.f32 0.0, %v575
    %577 = vmatmul.bf16.gmra.mxu0 %v393
    %v578 = vpop.f32.mrf.mxu0
    %v579 = vadd.f32 0.0, %v578
    %v580 = vpop.f32.mrf.mxu0
    %v581 = vadd.f32 0.0, %v580
    %582 = vmatmul.bf16.gmra.mxu0 %v394
    %v583 = vpop.f32.mrf.mxu0
    %v584 = vadd.f32 0.0, %v583
    %v585 = vpop.f32.mrf.mxu0
    %v586 = vadd.f32 0.0, %v585
    %587 = vdwg.mxu0
    %588 = vmatpush.bf16.msra.mxu0 %v524
    %589 = vmatpush.bf16.msra.mxu0 %v520
    %590 = vmatpush.bf16.msra.mxu0 %v516
    %591 = vmatpush.bf16.msra.mxu0 %v512
    %592 = vmatpush.bf16.msra.mxu0 %v508
    %593 = vmatpush.bf16.msra.mxu0 %v504
    %594 = vmatpush.bf16.msra.mxu0 %v500
    %595 = vmatpush.bf16.msra.mxu0 %v496
    %596 = vmatmul.bf16.gmra.mxu0 %v391
    %v597 = vpop.f32.mrf.mxu0
    %v598 = vadd.f32 0.0, %v597
    %v599 = vpop.f32.mrf.mxu0
    %v600 = vadd.f32 0.0, %v599
    %601 = vmatmul.bf16.gmra.mxu0 %v392
    %v602 = vpop.f32.mrf.mxu0
    %v603 = vadd.f32 0.0, %v602
    %v604 = vpop.f32.mrf.mxu0
    %v605 = vadd.f32 0.0, %v604
    %606 = vmatmul.bf16.gmra.mxu0 %v393
    %v607 = vpop.f32.mrf.mxu0
    %v608 = vadd.f32 0.0, %v607
    %v609 = vpop.f32.mrf.mxu0
    %v610 = vadd.f32 0.0, %v609
    %611 = vmatmul.bf16.gmra.mxu0 %v394
    %v612 = vpop.f32.mrf.mxu0
    %v613 = vadd.f32 0.0, %v612
    %v614 = vpop.f32.mrf.mxu0
    %v615 = vadd.f32 0.0, %v614
    %616 = vdwg.mxu0
    %617 = vmatpush.bf16.msra.mxu0 %v525
    %618 = vmatpush.bf16.msra.mxu0 %v521
    %619 = vmatpush.bf16.msra.mxu0 %v517
    %620 = vmatpush.bf16.msra.mxu0 %v513
    %621 = vmatpush.bf16.msra.mxu0 %v509
    %622 = vmatpush.bf16.msra.mxu0 %v505
    %623 = vmatpush.bf16.msra.mxu0 %v501
    %624 = vmatpush.bf16.msra.mxu0 %v497
    %625 = vmatmul.bf16.gmra.mxu0 %v391
    %v626 = vpop.f32.mrf.mxu0
    %v627 = vadd.f32 0.0, %v626
    %v628 = vpop.f32.mrf.mxu0
    %v629 = vadd.f32 0.0, %v628
    %630 = vmatmul.bf16.gmra.mxu0 %v392
    %v631 = vpop.f32.mrf.mxu0
    %v632 = vadd.f32 0.0, %v631
    %v633 = vpop.f32.mrf.mxu0
    %v634 = vadd.f32 0.0, %v633
    %635 = vmatmul.bf16.gmra.mxu0 %v393
    %v636 = vpop.f32.mrf.mxu0
    %v637 = vadd.f32 0.0, %v636
    %v638 = vpop.f32.mrf.mxu0
    %v639 = vadd.f32 0.0, %v638
    %640 = vmatmul.bf16.gmra.mxu0 %v394
    %v641 = vpop.f32.mrf.mxu0
    %v642 = vadd.f32 0.0, %v641
    %v643 = vpop.f32.mrf.mxu0
    %v644 = vadd.f32 0.0, %v643
    %645 = vdwg.mxu0
    %646 = vmatpush.bf16.msra.mxu0 %v526
    %647 = vmatpush.bf16.msra.mxu0 %v522
    %648 = vmatpush.bf16.msra.mxu0 %v518
    %649 = vmatpush.bf16.msra.mxu0 %v514
    %650 = vmatpush.bf16.msra.mxu0 %v510
    %651 = vmatpush.bf16.msra.mxu0 %v506
    %652 = vmatpush.bf16.msra.mxu0 %v502
    %653 = vmatpush.bf16.msra.mxu0 %v498
    %654 = vmatmul.bf16.gmra.mxu0 %v391
    %v655 = vpop.f32.mrf.mxu0
    %v656 = vadd.f32 0.0, %v655
    %v657 = vpop.f32.mrf.mxu0
    %v658 = vadd.f32 0.0, %v657
    %659 = vmatmul.bf16.gmra.mxu0 %v392
    %v660 = vpop.f32.mrf.mxu0
    %v661 = vadd.f32 0.0, %v660
    %v662 = vpop.f32.mrf.mxu0
    %v663 = vadd.f32 0.0, %v662
    %664 = vmatmul.bf16.gmra.mxu0 %v393
    %v665 = vpop.f32.mrf.mxu0
    %v666 = vadd.f32 0.0, %v665
    %v667 = vpop.f32.mrf.mxu0
    %v668 = vadd.f32 0.0, %v667
    %669 = vmatmul.bf16.gmra.mxu0 %v394
    %v670 = vpop.f32.mrf.mxu0
    %v671 = vadd.f32 0.0, %v670
    %v672 = vpop.f32.mrf.mxu0
    %v673 = vadd.f32 0.0, %v672
    %674 = vdwg.mxu0
    %675 = vst [vmem:[#allocation2] sm:$0xff] %v569
    %676 = vst [vmem:[#allocation2 + $0x8] sm:$0xff] %v598
    %677 = vst [vmem:[#allocation2 + $0x10] sm:$0xff] %v627
    %678 = vst [vmem:[#allocation2 + $0x18] sm:$0xff] %v656
    %679 = vst [vmem:[#allocation2 + $0x20] sm:$0xff] %v571
    %680 = vst [vmem:[#allocation2 + $0x28] sm:$0xff] %v600
    %681 = vst [vmem:[#allocation2 + $0x30] sm:$0xff] %v629
    %682 = vst [vmem:[#allocation2 + $0x38] sm:$0xff] %v658
    %683 = vst [vmem:[#allocation2 + $0x40] sm:$0xff] %v574
    %684 = vst [vmem:[#allocation2 + $0x48] sm:$0xff] %v603
    %685 = vst [vmem:[#allocation2 + $0x50] sm:$0xff] %v632
    %686 = vst [vmem:[#allocation2 + $0x58] sm:$0xff] %v661
    %687 = vst [vmem:[#allocation2 + $0x60] sm:$0xff] %v576
    %688 = vst [vmem:[#allocation2 + $0x68] sm:$0xff] %v605
    %689 = vst [vmem:[#allocation2 + $0x70] sm:$0xff] %v634
    %690 = vst [vmem:[#allocation2 + $0x78] sm:$0xff] %v663
    %691 = vst [vmem:[#allocation2 + $0x80] sm:$0xff] %v579
    %692 = vst [vmem:[#allocation2 + $0x88] sm:$0xff] %v608
    %693 = vst [vmem:[#allocation2 + $0x90] sm:$0xff] %v637
    %694 = vst [vmem:[#allocation2 + $0x98] sm:$0xff] %v666
    %695 = vst [vmem:[#allocation2 + $0xa0] sm:$0xff] %v581
    %696 = vst [vmem:[#allocation2 + $0xa8] sm:$0xff] %v610
    %697 = vst [vmem:[#allocation2 + $0xb0] sm:$0xff] %v639
    %698 = vst [vmem:[#allocation2 + $0xb8] sm:$0xff] %v668
    %699 = vst [vmem:[#allocation2 + $0xc0] sm:$0xff] %v584
    %700 = vst [vmem:[#allocation2 + $0xc8] sm:$0xff] %v613
    %701 = vst [vmem:[#allocation2 + $0xd0] sm:$0xff] %v642
    %702 = vst [vmem:[#allocation2 + $0xd8] sm:$0xff] %v671
    %703 = vst [vmem:[#allocation2 + $0xe0] sm:$0xff] %v586
    %704 = vst [vmem:[#allocation2 + $0xe8] sm:$0xff] %v615
    %705 = vst [vmem:[#allocation2 + $0xf0] sm:$0xff] %v644
    %706 = vst [vmem:[#allocation2 + $0xf8] sm:$0xff] %v673
    %v707 = vld [vmem:[#allocation10] sm:$0xf]
    %v708 = vld [vmem:[#allocation10 + $0x4] sm:$0xf]
    %v709 = vld [vmem:[#allocation10 + $0x8] sm:$0xf]
    %v710 = vld [vmem:[#allocation10 + $0xc] sm:$0xf]
    %v711 = vld [vmem:[#allocation10 + $0x10] sm:$0xf]
    %v712 = vld [vmem:[#allocation10 + $0x14] sm:$0xf]
    %v713 = vld [vmem:[#allocation10 + $0x18] sm:$0xf]
    %v714 = vld [vmem:[#allocation10 + $0x1c] sm:$0xf]
    %v723 = vunpack.c.l.b16 %v707
    %v724 = vunpack.c.l.b16 %v708
    %v725 = vunpack.c.l.b16 %v709
    %v726 = vunpack.c.l.b16 %v710
    %v727 = vunpack.c.l.b16 %v711
    %v728 = vunpack.c.l.b16 %v712
    %v729 = vunpack.c.l.b16 %v713
    %v730 = vunpack.c.l.b16 %v714
    %v731 = vpack.c.b16 %v724, %v723
    %v732 = vpack.c.b16 %v726, %v725
    %v733 = vpack.c.b16 %v728, %v727
    %v734 = vpack.c.b16 %v730, %v729
    %v771 = vunpack.c.l.b16 %v170
    %v772 = vunpack.c.h.b16 %v170
    %v773 = vunpack.c.l.b16 %v171
    %v774 = vunpack.c.h.b16 %v171
    %v775 = vunpack.c.l.b16 %v172
    %v776 = vunpack.c.h.b16 %v172
    %v777 = vunpack.c.l.b16 %v173
    %v778 = vunpack.c.h.b16 %v173
    %v779 = vunpack.c.l.b16 %v174
    %v780 = vunpack.c.h.b16 %v174
    %v781 = vunpack.c.l.b16 %v175
    %v782 = vunpack.c.h.b16 %v175
    %v783 = vunpack.c.l.b16 %v176
    %v784 = vunpack.c.h.b16 %v176
    %v785 = vunpack.c.l.b16 %v177
    %v786 = vunpack.c.h.b16 %v177
    %v787 = vunpack.c.l.b16 %v178
    %v788 = vunpack.c.h.b16 %v178
    %v789 = vunpack.c.l.b16 %v179
    %v790 = vunpack.c.h.b16 %v179
    %v791 = vunpack.c.l.b16 %v180
    %v792 = vunpack.c.h.b16 %v180
    %v793 = vunpack.c.l.b16 %v181
    %v794 = vunpack.c.h.b16 %v181
    %v795 = vunpack.c.l.b16 %v182
    %v796 = vunpack.c.h.b16 %v182
    %v797 = vunpack.c.l.b16 %v183
    %v798 = vunpack.c.h.b16 %v183
    %v799 = vunpack.c.l.b16 %v184
    %v800 = vunpack.c.h.b16 %v184
    %v801 = vunpack.c.l.b16 %v185
    %v802 = vunpack.c.h.b16 %v185
    %v803 = vunpack.c.l.b16 %v186
    %v804 = vunpack.c.h.b16 %v186
    %v805 = vunpack.c.l.b16 %v187
    %v806 = vunpack.c.h.b16 %v187
    %v807 = vunpack.c.l.b16 %v188
    %v808 = vunpack.c.h.b16 %v188
    %v809 = vunpack.c.l.b16 %v189
    %v810 = vunpack.c.h.b16 %v189
    %v811 = vunpack.c.l.b16 %v190
    %v812 = vunpack.c.h.b16 %v190
    %v813 = vunpack.c.l.b16 %v191
    %v814 = vunpack.c.h.b16 %v191
    %v815 = vunpack.c.l.b16 %v192
    %v816 = vunpack.c.h.b16 %v192
    %v817 = vunpack.c.l.b16 %v193
    %v818 = vunpack.c.h.b16 %v193
    %v819 = vunpack.c.l.b16 %v194
    %v820 = vunpack.c.h.b16 %v194
    %v821 = vunpack.c.l.b16 %v195
    %v822 = vunpack.c.h.b16 %v195
    %v823 = vunpack.c.l.b16 %v196
    %v824 = vunpack.c.h.b16 %v196
    %v825 = vunpack.c.l.b16 %v197
    %v826 = vunpack.c.h.b16 %v197
    %v827 = vunpack.c.l.b16 %v198
    %v828 = vunpack.c.h.b16 %v198
    %v829 = vunpack.c.l.b16 %v199
    %v830 = vunpack.c.h.b16 %v199
    %v831 = vunpack.c.l.b16 %v200
    %v832 = vunpack.c.h.b16 %v200
    %v833 = vunpack.c.l.b16 %v201
    %v834 = vunpack.c.h.b16 %v201
    %v835 = vpack.c.b16 %v775, %v771
    %v836 = vpack.c.b16 %v776, %v772
    %v837 = vpack.c.b16 %v777, %v773
    %v838 = vpack.c.b16 %v778, %v774
    %v839 = vpack.c.b16 %v783, %v779
    %v840 = vpack.c.b16 %v784, %v780
    %v841 = vpack.c.b16 %v785, %v781
    %v842 = vpack.c.b16 %v786, %v782
    %v843 = vpack.c.b16 %v791, %v787
    %v844 = vpack.c.b16 %v792, %v788
    %v845 = vpack.c.b16 %v793, %v789
    %v846 = vpack.c.b16 %v794, %v790
    %v847 = vpack.c.b16 %v799, %v795
    %v848 = vpack.c.b16 %v800, %v796
    %v849 = vpack.c.b16 %v801, %v797
    %v850 = vpack.c.b16 %v802, %v798
    %v851 = vpack.c.b16 %v807, %v803
    %v852 = vpack.c.b16 %v808, %v804
    %v853 = vpack.c.b16 %v809, %v805
    %v854 = vpack.c.b16 %v810, %v806
    %v855 = vpack.c.b16 %v815, %v811
    %v856 = vpack.c.b16 %v816, %v812
    %v857 = vpack.c.b16 %v817, %v813
    %v858 = vpack.c.b16 %v818, %v814
    %v859 = vpack.c.b16 %v823, %v819
    %v860 = vpack.c.b16 %v824, %v820
    %v861 = vpack.c.b16 %v825, %v821
    %v862 = vpack.c.b16 %v826, %v822
    %v863 = vpack.c.b16 %v831, %v827
    %v864 = vpack.c.b16 %v832, %v828
    %v865 = vpack.c.b16 %v833, %v829
    %v866 = vpack.c.b16 %v834, %v830
    %899 = vmatpush.bf16.msra.mxu0 %v863
    %900 = vmatpush.bf16.msra.mxu0 %v859
    %901 = vmatpush.bf16.msra.mxu0 %v855
    %902 = vmatpush.bf16.msra.mxu0 %v851
    %903 = vmatpush.bf16.msra.mxu0 %v847
    %904 = vmatpush.bf16.msra.mxu0 %v843
    %905 = vmatpush.bf16.msra.mxu0 %v839
    %906 = vmatpush.bf16.msra.mxu0 %v835
    %907 = vmatmul.bf16.gmra.mxu0 %v731
    %v908 = vpop.f32.mrf.mxu0
    %v909 = vadd.f32 0.0, %v908
    %v910 = vpop.f32.mrf.mxu0
    %v911 = vadd.f32 0.0, %v910
    %912 = vmatmul.bf16.gmra.mxu0 %v732
    %v913 = vpop.f32.mrf.mxu0
    %v914 = vadd.f32 0.0, %v913
    %v915 = vpop.f32.mrf.mxu0
    %v916 = vadd.f32 0.0, %v915
    %917 = vmatmul.bf16.gmra.mxu0 %v733
    %v918 = vpop.f32.mrf.mxu0
    %v919 = vadd.f32 0.0, %v918
    %v920 = vpop.f32.mrf.mxu0
    %v921 = vadd.f32 0.0, %v920
    %922 = vmatmul.bf16.gmra.mxu0 %v734
    %v923 = vpop.f32.mrf.mxu0
    %v924 = vadd.f32 0.0, %v923
    %v925 = vpop.f32.mrf.mxu0
    %v926 = vadd.f32 0.0, %v925
    %927 = vdwg.mxu0
    %928 = vmatpush.bf16.msra.mxu0 %v864
    %929 = vmatpush.bf16.msra.mxu0 %v860
    %930 = vmatpush.bf16.msra.mxu0 %v856
    %931 = vmatpush.bf16.msra.mxu0 %v852
    %932 = vmatpush.bf16.msra.mxu0 %v848
    %933 = vmatpush.bf16.msra.mxu0 %v844
    %934 = vmatpush.bf16.msra.mxu0 %v840
    %935 = vmatpush.bf16.msra.mxu0 %v836
    %936 = vmatmul.bf16.gmra.mxu0 %v731
    %v937 = vpop.f32.mrf.mxu0
    %v938 = vadd.f32 0.0, %v937
    %v939 = vpop.f32.mrf.mxu0
    %v940 = vadd.f32 0.0, %v939
    %941 = vmatmul.bf16.gmra.mxu0 %v732
    %v942 = vpop.f32.mrf.mxu0
    %v943 = vadd.f32 0.0, %v942
    %v944 = vpop.f32.mrf.mxu0
    %v945 = vadd.f32 0.0, %v944
    %946 = vmatmul.bf16.gmra.mxu0 %v733
    %v947 = vpop.f32.mrf.mxu0
    %v948 = vadd.f32 0.0, %v947
    %v949 = vpop.f32.mrf.mxu0
    %v950 = vadd.f32 0.0, %v949
    %951 = vmatmul.bf16.gmra.mxu0 %v734
    %v952 = vpop.f32.mrf.mxu0
    %v953 = vadd.f32 0.0, %v952
    %v954 = vpop.f32.mrf.mxu0
    %v955 = vadd.f32 0.0, %v954
    %956 = vdwg.mxu0
    %957 = vmatpush.bf16.msra.mxu0 %v865
    %958 = vmatpush.bf16.msra.mxu0 %v861
    %959 = vmatpush.bf16.msra.mxu0 %v857
    %960 = vmatpush.bf16.msra.mxu0 %v853
    %961 = vmatpush.bf16.msra.mxu0 %v849
    %962 = vmatpush.bf16.msra.mxu0 %v845
    %963 = vmatpush.bf16.msra.mxu0 %v841
    %964 = vmatpush.bf16.msra.mxu0 %v837
    %965 = vmatmul.bf16.gmra.mxu0 %v731
    %v966 = vpop.f32.mrf.mxu0
    %v967 = vadd.f32 0.0, %v966
    %v968 = vpop.f32.mrf.mxu0
    %v969 = vadd.f32 0.0, %v968
    %970 = vmatmul.bf16.gmra.mxu0 %v732
    %v971 = vpop.f32.mrf.mxu0
    %v972 = vadd.f32 0.0, %v971
    %v973 = vpop.f32.mrf.mxu0
    %v974 = vadd.f32 0.0, %v973
    %975 = vmatmul.bf16.gmra.mxu0 %v733
    %v976 = vpop.f32.mrf.mxu0
    %v977 = vadd.f32 0.0, %v976
    %v978 = vpop.f32.mrf.mxu0
    %v979 = vadd.f32 0.0, %v978
    %980 = vmatmul.bf16.gmra.mxu0 %v734
    %v981 = vpop.f32.mrf.mxu0
    %v982 = vadd.f32 0.0, %v981
    %v983 = vpop.f32.mrf.mxu0
    %v984 = vadd.f32 0.0, %v983
    %985 = vdwg.mxu0
    %986 = vmatpush.bf16.msra.mxu0 %v866
    %987 = vmatpush.bf16.msra.mxu0 %v862
    %988 = vmatpush.bf16.msra.mxu0 %v858
    %989 = vmatpush.bf16.msra.mxu0 %v854
    %990 = vmatpush.bf16.msra.mxu0 %v850
    %991 = vmatpush.bf16.msra.mxu0 %v846
    %992 = vmatpush.bf16.msra.mxu0 %v842
    %993 = vmatpush.bf16.msra.mxu0 %v838
    %994 = vmatmul.bf16.gmra.mxu0 %v731
    %v995 = vpop.f32.mrf.mxu0
    %v996 = vadd.f32 0.0, %v995
    %v997 = vpop.f32.mrf.mxu0
    %v998 = vadd.f32 0.0, %v997
    %999 = vmatmul.bf16.gmra.mxu0 %v732
    %v1000 = vpop.f32.mrf.mxu0
    %v1001 = vadd.f32 0.0, %v1000
    %v1002 = vpop.f32.mrf.mxu0
    %v1003 = vadd.f32 0.0, %v1002
    %1004 = vmatmul.bf16.gmra.mxu0 %v733
    %v1005 = vpop.f32.mrf.mxu0
    %v1006 = vadd.f32 0.0, %v1005
    %v1007 = vpop.f32.mrf.mxu0
    %v1008 = vadd.f32 0.0, %v1007
    %1009 = vmatmul.bf16.gmra.mxu0 %v734
    %v1010 = vpop.f32.mrf.mxu0
    %v1011 = vadd.f32 0.0, %v1010
    %v1012 = vpop.f32.mrf.mxu0
    %v1013 = vadd.f32 0.0, %v1012
    %1014 = vdwg.mxu0
    %1015 = vst [vmem:[#allocation3] sm:$0xff] %v909
    %1016 = vst [vmem:[#allocation3 + $0x8] sm:$0xff] %v938
    %1017 = vst [vmem:[#allocation3 + $0x10] sm:$0xff] %v967
    %1018 = vst [vmem:[#allocation3 + $0x18] sm:$0xff] %v996
    %1019 = vst [vmem:[#allocation3 + $0x20] sm:$0xff] %v911
    %1020 = vst [vmem:[#allocation3 + $0x28] sm:$0xff] %v940
    %1021 = vst [vmem:[#allocation3 + $0x30] sm:$0xff] %v969
    %1022 = vst [vmem:[#allocation3 + $0x38] sm:$0xff] %v998
    %1023 = vst [vmem:[#allocation3 + $0x40] sm:$0xff] %v914
    %1024 = vst [vmem:[#allocation3 + $0x48] sm:$0xff] %v943
    %1025 = vst [vmem:[#allocation3 + $0x50] sm:$0xff] %v972
    %1026 = vst [vmem:[#allocation3 + $0x58] sm:$0xff] %v1001
    %1027 = vst [vmem:[#allocation3 + $0x60] sm:$0xff] %v916
    %1028 = vst [vmem:[#allocation3 + $0x68] sm:$0xff] %v945
    %1029 = vst [vmem:[#allocation3 + $0x70] sm:$0xff] %v974
    %1030 = vst [vmem:[#allocation3 + $0x78] sm:$0xff] %v1003
    %1031 = vst [vmem:[#allocation3 + $0x80] sm:$0xff] %v919
    %1032 = vst [vmem:[#allocation3 + $0x88] sm:$0xff] %v948
    %1033 = vst [vmem:[#allocation3 + $0x90] sm:$0xff] %v977
    %1034 = vst [vmem:[#allocation3 + $0x98] sm:$0xff] %v1006
    %1035 = vst [vmem:[#allocation3 + $0xa0] sm:$0xff] %v921
    %1036 = vst [vmem:[#allocation3 + $0xa8] sm:$0xff] %v950
    %1037 = vst [vmem:[#allocation3 + $0xb0] sm:$0xff] %v979
    %1038 = vst [vmem:[#allocation3 + $0xb8] sm:$0xff] %v1008
    %1039 = vst [vmem:[#allocation3 + $0xc0] sm:$0xff] %v924
    %1040 = vst [vmem:[#allocation3 + $0xc8] sm:$0xff] %v953
    %1041 = vst [vmem:[#allocation3 + $0xd0] sm:$0xff] %v982
    %1042 = vst [vmem:[#allocation3 + $0xd8] sm:$0xff] %v1011
    %1043 = vst [vmem:[#allocation3 + $0xe0] sm:$0xff] %v926
    %1044 = vst [vmem:[#allocation3 + $0xe8] sm:$0xff] %v955
    %1045 = vst [vmem:[#allocation3 + $0xf0] sm:$0xff] %v984
    %1046 = vst [vmem:[#allocation3 + $0xf8] sm:$0xff] %v1013
    %v1047 = vld [vmem:[#allocation6] sm:$0xff]
    %s1048 = scalar_lea.vmem [#allocation6], 8
    %v1049 = vld [vmem:[%s1048] sm:$0xff]
    %s1050 = scalar_lea.vmem [#allocation6], 16
    %v1051 = vld [vmem:[%s1050] sm:$0xff]
    %s1052 = scalar_lea.vmem [#allocation6], 24
    %v1053 = vld [vmem:[%s1052] sm:$0xff]
    %s1054 = smul.u32 0, 4
    %s1055 = smul.addr %s1054, 8
    %s1056 = scalar_lea.vmem [#allocation2], %s1055
    %v1057 = vld [vmem:[%s1056] sm:$0xff]
    %v1058 = vld [vmem:[%s1056 + $0x8] sm:$0xff]
    %v1059 = vld [vmem:[%s1056 + $0x10] sm:$0xff]
    %v1060 = vld [vmem:[%s1056 + $0x18] sm:$0xff]
    %1061 = vmatpush.msra.mxu0 %v262
    %1062 = vmatpush.msra.mxu0 %v258
    %1063 = vmatpush.msra.mxu0 %v254
    %1064 = vmatpush.msra.mxu0 %v250
    %1065 = vmatpush.msra.mxu0 %v246
    %1066 = vmatpush.msra.mxu0 %v242
    %1067 = vmatpush.msra.mxu0 %v238
    %1068 = vmatpush.msra.mxu0 %v234
    %1069 = vmatpush.msra.mxu0 %v230
    %1070 = vmatpush.msra.mxu0 %v226
    %1071 = vmatpush.msra.mxu0 %v222
    %1072 = vmatpush.msra.mxu0 %v218
    %1073 = vmatpush.msra.mxu0 %v214
    %1074 = vmatpush.msra.mxu0 %v210
    %1075 = vmatpush.msra.mxu0 %v206
    %1076 = vmatpush.msra.mxu0 %v202
    %1077 = vmatmul.f32.gmra.mxu0 %v1047
    %v1078 = vpop.f32.mrf.mxu0
    %v1079 = vadd.f32 0.0, %v1078
    %1080 = vdwg.mxu0
    %1081 = vmatpush.msra.mxu0 %v263
    %1082 = vmatpush.msra.mxu0 %v259
    %1083 = vmatpush.msra.mxu0 %v255
    %1084 = vmatpush.msra.mxu0 %v251
    %1085 = vmatpush.msra.mxu0 %v247
    %1086 = vmatpush.msra.mxu0 %v243
    %1087 = vmatpush.msra.mxu0 %v239
    %1088 = vmatpush.msra.mxu0 %v235
    %1089 = vmatpush.msra.mxu0 %v231
    %1090 = vmatpush.msra.mxu0 %v227
    %1091 = vmatpush.msra.mxu0 %v223
    %1092 = vmatpush.msra.mxu0 %v219
    %1093 = vmatpush.msra.mxu0 %v215
    %1094 = vmatpush.msra.mxu0 %v211
    %1095 = vmatpush.msra.mxu0 %v207
    %1096 = vmatpush.msra.mxu0 %v203
    %1097 = vmatmul.f32.gmra.mxu0 %v1047
    %v1098 = vpop.f32.mrf.mxu0
    %v1099 = vadd.f32 0.0, %v1098
    %1100 = vdwg.mxu0
    %1101 = vmatpush.msra.mxu0 %v264
    %1102 = vmatpush.msra.mxu0 %v260
    %1103 = vmatpush.msra.mxu0 %v256
    %1104 = vmatpush.msra.mxu0 %v252
    %1105 = vmatpush.msra.mxu0 %v248
    %1106 = vmatpush.msra.mxu0 %v244
    %1107 = vmatpush.msra.mxu0 %v240
    %1108 = vmatpush.msra.mxu0 %v236
    %1109 = vmatpush.msra.mxu0 %v232
    %1110 = vmatpush.msra.mxu0 %v228
    %1111 = vmatpush.msra.mxu0 %v224
    %1112 = vmatpush.msra.mxu0 %v220
    %1113 = vmatpush.msra.mxu0 %v216
    %1114 = vmatpush.msra.mxu0 %v212
    %1115 = vmatpush.msra.mxu0 %v208
    %1116 = vmatpush.msra.mxu0 %v204
    %1117 = vmatmul.f32.gmra.mxu0 %v1047
    %v1118 = vpop.f32.mrf.mxu0
    %v1119 = vadd.f32 0.0, %v1118
    %1120 = vdwg.mxu0
    %1121 = vmatpush.msra.mxu0 %v265
    %1122 = vmatpush.msra.mxu0 %v261
    %1123 = vmatpush.msra.mxu0 %v257
    %1124 = vmatpush.msra.mxu0 %v253
    %1125 = vmatpush.msra.mxu0 %v249
    %1126 = vmatpush.msra.mxu0 %v245
    %1127 = vmatpush.msra.mxu0 %v241
    %1128 = vmatpush.msra.mxu0 %v237
    %1129 = vmatpush.msra.mxu0 %v233
    %1130 = vmatpush.msra.mxu0 %v229
    %1131 = vmatpush.msra.mxu0 %v225
    %1132 = vmatpush.msra.mxu0 %v221
    %1133 = vmatpush.msra.mxu0 %v217
    %1134 = vmatpush.msra.mxu0 %v213
    %1135 = vmatpush.msra.mxu0 %v209
    %1136 = vmatpush.msra.mxu0 %v205
    %1137 = vmatmul.f32.gmra.mxu0 %v1047
    %v1138 = vpop.f32.mrf.mxu0
    %v1139 = vadd.f32 0.0, %v1138
    %1140 = vdwg.mxu0
    %v1141 = vadd.f32 %v1057, %v1079
    %v1142 = vadd.f32 %v1058, %v1099
    %v1143 = vadd.f32 %v1059, %v1119
    %v1144 = vadd.f32 %v1060, %v1139
    %v1146 = vperm.slane %v331, 0
    %v1147 = vperm.slane %v331, 1
    %v1148 = vperm.slane %v331, 2
    %v1149 = vperm.slane %v331, 3
    %v1154 = vadd.f32 %v1141, %v1146
    %v1155 = vadd.f32 %v1142, %v1147
    %v1156 = vadd.f32 %v1143, %v1148
    %v1157 = vadd.f32 %v1144, %v1149
    %s1158 = smul.u32 7, 4
    %s1159 = smul.addr %s1158, 8
    %s1160 = scalar_lea.vmem [#allocation3], %s1159
    %v1161 = vld [vmem:[%s1160] sm:$0xff]
    %v1162 = vld [vmem:[%s1160 + $0x8] sm:$0xff]
    %v1163 = vld [vmem:[%s1160 + $0x10] sm:$0xff]
    %v1164 = vld [vmem:[%s1160 + $0x18] sm:$0xff]
    %1165 = vmatpush.msra.mxu0 %v327
    %1166 = vmatpush.msra.mxu0 %v323
    %1167 = vmatpush.msra.mxu0 %v319
    %1168 = vmatpush.msra.mxu0 %v315
    %1169 = vmatpush.msra.mxu0 %v311
    %1170 = vmatpush.msra.mxu0 %v307
    %1171 = vmatpush.msra.mxu0 %v303
    %1172 = vmatpush.msra.mxu0 %v299
    %1173 = vmatpush.msra.mxu0 %v295
    %1174 = vmatpush.msra.mxu0 %v291
    %1175 = vmatpush.msra.mxu0 %v287
    %1176 = vmatpush.msra.mxu0 %v283
    %1177 = vmatpush.msra.mxu0 %v279
    %1178 = vmatpush.msra.mxu0 %v275
    %1179 = vmatpush.msra.mxu0 %v271
    %1180 = vmatpush.msra.mxu0 %v267
    %1181 = vmatmul.f32.gmra.mxu0 %v1051
    %v1182 = vpop.f32.mrf.mxu0
    %v1183 = vadd.f32 0.0, %v1182
    %1184 = vdwg.mxu0
    %1185 = vmatpush.msra.mxu0 %v328
    %1186 = vmatpush.msra.mxu0 %v324
    %1187 = vmatpush.msra.mxu0 %v320
    %1188 = vmatpush.msra.mxu0 %v316
    %1189 = vmatpush.msra.mxu0 %v312
    %1190 = vmatpush.msra.mxu0 %v308
    %1191 = vmatpush.msra.mxu0 %v304
    %1192 = vmatpush.msra.mxu0 %v300
    %1193 = vmatpush.msra.mxu0 %v296
    %1194 = vmatpush.msra.mxu0 %v292
    %1195 = vmatpush.msra.mxu0 %v288
    %1196 = vmatpush.msra.mxu0 %v284
    %1197 = vmatpush.msra.mxu0 %v280
    %1198 = vmatpush.msra.mxu0 %v276
    %1199 = vmatpush.msra.mxu0 %v272
    %1200 = vmatpush.msra.mxu0 %v268
    %1201 = vmatmul.f32.gmra.mxu0 %v1051
    %v1202 = vpop.f32.mrf.mxu0
    %v1203 = vadd.f32 0.0, %v1202
    %1204 = vdwg.mxu0
    %1205 = vmatpush.msra.mxu0 %v329
    %1206 = vmatpush.msra.mxu0 %v325
    %1207 = vmatpush.msra.mxu0 %v321
    %1208 = vmatpush.msra.mxu0 %v317
    %1209 = vmatpush.msra.mxu0 %v313
    %1210 = vmatpush.msra.mxu0 %v309
    %1211 = vmatpush.msra.mxu0 %v305
    %1212 = vmatpush.msra.mxu0 %v301
    %1213 = vmatpush.msra.mxu0 %v297
    %1214 = vmatpush.msra.mxu0 %v293
    %1215 = vmatpush.msra.mxu0 %v289
    %1216 = vmatpush.msra.mxu0 %v285
    %1217 = vmatpush.msra.mxu0 %v281
    %1218 = vmatpush.msra.mxu0 %v277
    %1219 = vmatpush.msra.mxu0 %v273
    %1220 = vmatpush.msra.mxu0 %v269
    %1221 = vmatmul.f32.gmra.mxu0 %v1051
    %v1222 = vpop.f32.mrf.mxu0
    %v1223 = vadd.f32 0.0, %v1222
    %1224 = vdwg.mxu0
    %1225 = vmatpush.msra.mxu0 %v330
    %1226 = vmatpush.msra.mxu0 %v326
    %1227 = vmatpush.msra.mxu0 %v322
    %1228 = vmatpush.msra.mxu0 %v318
    %1229 = vmatpush.msra.mxu0 %v314
    %1230 = vmatpush.msra.mxu0 %v310
    %1231 = vmatpush.msra.mxu0 %v306
    %1232 = vmatpush.msra.mxu0 %v302
    %1233 = vmatpush.msra.mxu0 %v298
    %1234 = vmatpush.msra.mxu0 %v294
    %1235 = vmatpush.msra.mxu0 %v290
    %1236 = vmatpush.msra.mxu0 %v286
    %1237 = vmatpush.msra.mxu0 %v282
    %1238 = vmatpush.msra.mxu0 %v278
    %1239 = vmatpush.msra.mxu0 %v274
    %1240 = vmatpush.msra.mxu0 %v270
    %1241 = vmatmul.f32.gmra.mxu0 %v1051
    %v1242 = vpop.f32.mrf.mxu0
    %v1243 = vadd.f32 0.0, %v1242
    %1244 = vdwg.mxu0
    %v1245 = vadd.f32 %v1161, %v1183
    %v1246 = vadd.f32 %v1162, %v1203
    %v1247 = vadd.f32 %v1163, %v1223
    %v1248 = vadd.f32 %v1164, %v1243
    %v1250 = vperm.slane %v333, 0
    %v1251 = vperm.slane %v333, 1
    %v1252 = vperm.slane %v333, 2
    %v1253 = vperm.slane %v333, 3
    %v1258 = vadd.f32 %v1245, %v1250
    %v1259 = vadd.f32 %v1246, %v1251
    %v1260 = vadd.f32 %v1247, %v1252
    %v1261 = vadd.f32 %v1248, %v1253
    %v1262 = vxor.u32 %v1154, 2147483648
    %v1263 = vmul.f32 %v1262, 1.442695
    %v1264 = vpow.pop %v1263
    %v1265 = vadd.f32 %v1264, 1.0
    %v1266 = vrcp.pop %v1265
    %v1267 = vmul.f32 %v1265, %v1266
    %v1268 = vsub.f32 1.0, %v1267
    %v1269 = vmul.f32 %v1266, %v1268
    %v1270 = vadd.f32 %v1266, %v1269
    %vm1271 = vweird.f32 %v1265
    %vm1272 = vweird.f32 %v1266
    %vm1273 = vmor %vm1271, %vm1272
    %v1274 = vsel %vm1273, %v1266, %v1270
    %v1275 = vand.u32 2147483647, %v1265
    %vm1276 = vcmp.eq.f32.partialorder %v1275, 8.507059e+37
    %v1277 = vand.u32 %v1265, 2147483648
    %v1278 = vor.u32 1.1754944e-38, %v1277
    %v1279 = vsel %vm1276, %v1278, %v1274
    %v1280 = vmul.f32 1.0, %v1279
    %v1281 = vxor.u32 %v1155, 2147483648
    %v1282 = vmul.f32 %v1281, 1.442695
    %v1283 = vpow.pop %v1282
    %v1284 = vadd.f32 %v1283, 1.0
    %v1285 = vrcp.pop %v1284
    %v1286 = vmul.f32 %v1284, %v1285
    %v1287 = vsub.f32 1.0, %v1286
    %v1288 = vmul.f32 %v1285, %v1287
    %v1289 = vadd.f32 %v1285, %v1288
    %vm1290 = vweird.f32 %v1284
    %vm1291 = vweird.f32 %v1285
    %vm1292 = vmor %vm1290, %vm1291
    %v1293 = vsel %vm1292, %v1285, %v1289
    %v1294 = vand.u32 2147483647, %v1284
    %vm1295 = vcmp.eq.f32.partialorder %v1294, 8.507059e+37
    %v1296 = vand.u32 %v1284, 2147483648
    %v1297 = vor.u32 1.1754944e-38, %v1296
    %v1298 = vsel %vm1295, %v1297, %v1293
    %v1299 = vmul.f32 1.0, %v1298
    %v1300 = vtanh.pop %v1156
    %v1301 = vxor.u32 %v1157, 2147483648
    %v1302 = vmul.f32 %v1301, 1.442695
    %v1303 = vpow.pop %v1302
    %v1304 = vadd.f32 %v1303, 1.0
    %v1305 = vrcp.pop %v1304
    %v1306 = vmul.f32 %v1304, %v1305
    %v1307 = vsub.f32 1.0, %v1306
    %v1308 = vmul.f32 %v1305, %v1307
    %v1309 = vadd.f32 %v1305, %v1308
    %vm1310 = vweird.f32 %v1304
    %vm1311 = vweird.f32 %v1305
    %vm1312 = vmor %vm1310, %vm1311
    %v1313 = vsel %vm1312, %v1305, %v1309
    %v1314 = vand.u32 2147483647, %v1304
    %vm1315 = vcmp.eq.f32.partialorder %v1314, 8.507059e+37
    %v1316 = vand.u32 %v1304, 2147483648
    %v1317 = vor.u32 1.1754944e-38, %v1316
    %v1318 = vsel %vm1315, %v1317, %v1313
    %v1319 = vmul.f32 1.0, %v1318
    %v1320 = vmul.f32 %v1299, %v1049
    %v1321 = vmul.f32 %v1280, %v1300
    %v1322 = vadd.f32 %v1320, %v1321
    %v1323 = vtanh.pop %v1322
    %v1324 = vmul.f32 %v1319, %v1323
    %v1325 = vxor.u32 %v1258, 2147483648
    %v1326 = vmul.f32 %v1325, 1.442695
    %v1327 = vpow.pop %v1326
    %v1328 = vadd.f32 %v1327, 1.0
    %v1329 = vrcp.pop %v1328
    %v1330 = vmul.f32 %v1328, %v1329
    %v1331 = vsub.f32 1.0, %v1330
    %v1332 = vmul.f32 %v1329, %v1331
    %v1333 = vadd.f32 %v1329, %v1332
    %vm1334 = vweird.f32 %v1328
    %vm1335 = vweird.f32 %v1329
    %vm1336 = vmor %vm1334, %vm1335
    %v1337 = vsel %vm1336, %v1329, %v1333
    %v1338 = vand.u32 2147483647, %v1328
    %vm1339 = vcmp.eq.f32.partialorder %v1338, 8.507059e+37
    %v1340 = vand.u32 %v1328, 2147483648
    %v1341 = vor.u32 1.1754944e-38, %v1340
    %v1342 = vsel %vm1339, %v1341, %v1337
    %v1343 = vmul.f32 1.0, %v1342
    %v1344 = vxor.u32 %v1259, 2147483648
    %v1345 = vmul.f32 %v1344, 1.442695
    %v1346 = vpow.pop %v1345
    %v1347 = vadd.f32 %v1346, 1.0
    %v1348 = vrcp.pop %v1347
    %v1349 = vmul.f32 %v1347, %v1348
    %v1350 = vsub.f32 1.0, %v1349
    %v1351 = vmul.f32 %v1348, %v1350
    %v1352 = vadd.f32 %v1348, %v1351
    %vm1353 = vweird.f32 %v1347
    %vm1354 = vweird.f32 %v1348
    %vm1355 = vmor %vm1353, %vm1354
    %v1356 = vsel %vm1355, %v1348, %v1352
    %v1357 = vand.u32 2147483647, %v1347
    %vm1358 = vcmp.eq.f32.partialorder %v1357, 8.507059e+37
    %v1359 = vand.u32 %v1347, 2147483648
    %v1360 = vor.u32 1.1754944e-38, %v1359
    %v1361 = vsel %vm1358, %v1360, %v1356
    %v1362 = vmul.f32 1.0, %v1361
    %v1363 = vtanh.pop %v1260
    %v1364 = vxor.u32 %v1261, 2147483648
    %v1365 = vmul.f32 %v1364, 1.442695
    %v1366 = vpow.pop %v1365
    %v1367 = vadd.f32 %v1366, 1.0
    %v1368 = vrcp.pop %v1367
    %v1369 = vmul.f32 %v1367, %v1368
    %v1370 = vsub.f32 1.0, %v1369
    %v1371 = vmul.f32 %v1368, %v1370
    %v1372 = vadd.f32 %v1368, %v1371
    %vm1373 = vweird.f32 %v1367
    %vm1374 = vweird.f32 %v1368
    %vm1375 = vmor %vm1373, %vm1374
    %v1376 = vsel %vm1375, %v1368, %v1372
    %v1377 = vand.u32 2147483647, %v1367
    %vm1378 = vcmp.eq.f32.partialorder %v1377, 8.507059e+37
    %v1379 = vand.u32 %v1367, 2147483648
    %v1380 = vor.u32 1.1754944e-38, %v1379
    %v1381 = vsel %vm1378, %v1380, %v1376
    %v1382 = vmul.f32 1.0, %v1381
    %v1383 = vmul.f32 %v1362, %v1053
    %v1384 = vmul.f32 %v1343, %v1363
    %v1385 = vadd.f32 %v1383, %v1384
    %v1386 = vtanh.pop %v1385
    %v1387 = vmul.f32 %v1382, %v1386
    %1388 = vst [vmem:[#allocation4] sm:$0xff] %v1324
    %s1389 = scalar_lea.vmem [#allocation5], 56
    %1390 = vst [vmem:[%s1389] sm:$0xff] %v1387
    %s1391 = smul.u32 1, 4
    %s1392 = smul.addr %s1391, 8
    %s1393 = scalar_lea.vmem [#allocation2], %s1392
    %v1394 = vld [vmem:[%s1393] sm:$0xff]
    %v1395 = vld [vmem:[%s1393 + $0x8] sm:$0xff]
    %v1396 = vld [vmem:[%s1393 + $0x10] sm:$0xff]
    %v1397 = vld [vmem:[%s1393 + $0x18] sm:$0xff]
    %1398 = vmatpush.msra.mxu0 %v262
    %1399 = vmatpush.msra.mxu0 %v258
    %1400 = vmatpush.msra.mxu0 %v254
    %1401 = vmatpush.msra.mxu0 %v250
    %1402 = vmatpush.msra.mxu0 %v246
    %1403 = vmatpush.msra.mxu0 %v242
    %1404 = vmatpush.msra.mxu0 %v238
    %1405 = vmatpush.msra.mxu0 %v234
    %1406 = vmatpush.msra.mxu0 %v230
    %1407 = vmatpush.msra.mxu0 %v226
    %1408 = vmatpush.msra.mxu0 %v222
    %1409 = vmatpush.msra.mxu0 %v218
    %1410 = vmatpush.msra.mxu0 %v214
    %1411 = vmatpush.msra.mxu0 %v210
    %1412 = vmatpush.msra.mxu0 %v206
    %1413 = vmatpush.msra.mxu0 %v202
    %1414 = vmatmul.f32.gmra.mxu0 %v1324
    %v1415 = vpop.f32.mrf.mxu0
    %v1416 = vadd.f32 0.0, %v1415
    %1417 = vdwg.mxu0
    %1418 = vmatpush.msra.mxu0 %v263
    %1419 = vmatpush.msra.mxu0 %v259
    %1420 = vmatpush.msra.mxu0 %v255
    %1421 = vmatpush.msra.mxu0 %v251
    %1422 = vmatpush.msra.mxu0 %v247
    %1423 = vmatpush.msra.mxu0 %v243
    %1424 = vmatpush.msra.mxu0 %v239
    %1425 = vmatpush.msra.mxu0 %v235
    %1426 = vmatpush.msra.mxu0 %v231
    %1427 = vmatpush.msra.mxu0 %v227
    %1428 = vmatpush.msra.mxu0 %v223
    %1429 = vmatpush.msra.mxu0 %v219
    %1430 = vmatpush.msra.mxu0 %v215
    %1431 = vmatpush.msra.mxu0 %v211
    %1432 = vmatpush.msra.mxu0 %v207
    %1433 = vmatpush.msra.mxu0 %v203
    %1434 = vmatmul.f32.gmra.mxu0 %v1324
    %v1435 = vpop.f32.mrf.mxu0
    %v1436 = vadd.f32 0.0, %v1435
    %1437 = vdwg.mxu0
    %1438 = vmatpush.msra.mxu0 %v264
    %1439 = vmatpush.msra.mxu0 %v260
    %1440 = vmatpush.msra.mxu0 %v256
    %1441 = vmatpush.msra.mxu0 %v252
    %1442 = vmatpush.msra.mxu0 %v248
    %1443 = vmatpush.msra.mxu0 %v244
    %1444 = vmatpush.msra.mxu0 %v240
    %1445 = vmatpush.msra.mxu0 %v236
    %1446 = vmatpush.msra.mxu0 %v232
    %1447 = vmatpush.msra.mxu0 %v228
    %1448 = vmatpush.msra.mxu0 %v224
    %1449 = vmatpush.msra.mxu0 %v220
    %1450 = vmatpush.msra.mxu0 %v216
    %1451 = vmatpush.msra.mxu0 %v212
    %1452 = vmatpush.msra.mxu0 %v208
    %1453 = vmatpush.msra.mxu0 %v204
    %1454 = vmatmul.f32.gmra.mxu0 %v1324
    %v1455 = vpop.f32.mrf.mxu0
    %v1456 = vadd.f32 0.0, %v1455
    %1457 = vdwg.mxu0
    %1458 = vmatpush.msra.mxu0 %v265
    %1459 = vmatpush.msra.mxu0 %v261
    %1460 = vmatpush.msra.mxu0 %v257
    %1461 = vmatpush.msra.mxu0 %v253
    %1462 = vmatpush.msra.mxu0 %v249
    %1463 = vmatpush.msra.mxu0 %v245
    %1464 = vmatpush.msra.mxu0 %v241
    %1465 = vmatpush.msra.mxu0 %v237
    %1466 = vmatpush.msra.mxu0 %v233
    %1467 = vmatpush.msra.mxu0 %v229
    %1468 = vmatpush.msra.mxu0 %v225
    %1469 = vmatpush.msra.mxu0 %v221
    %1470 = vmatpush.msra.mxu0 %v217
    %1471 = vmatpush.msra.mxu0 %v213
    %1472 = vmatpush.msra.mxu0 %v209
    %1473 = vmatpush.msra.mxu0 %v205
    %1474 = vmatmul.f32.gmra.mxu0 %v1324
    %v1475 = vpop.f32.mrf.mxu0
    %v1476 = vadd.f32 0.0, %v1475
    %1477 = vdwg.mxu0
    %v1478 = vadd.f32 %v1394, %v1416
    %v1479 = vadd.f32 %v1395, %v1436
    %v1480 = vadd.f32 %v1396, %v1456
    %v1481 = vadd.f32 %v1397, %v1476
    %v1482 = vadd.f32 %v1478, %v1146
    %v1483 = vadd.f32 %v1479, %v1147
    %v1484 = vadd.f32 %v1480, %v1148
    %v1485 = vadd.f32 %v1481, %v1149
    %s1486 = smul.u32 6, 4
    %s1487 = smul.addr %s1486, 8
    %s1488 = scalar_lea.vmem [#allocation3], %s1487
    %v1489 = vld [vmem:[%s1488] sm:$0xff]
    %v1490 = vld [vmem:[%s1488 + $0x8] sm:$0xff]
    %v1491 = vld [vmem:[%s1488 + $0x10] sm:$0xff]
    %v1492 = vld [vmem:[%s1488 + $0x18] sm:$0xff]
    %1493 = vmatpush.msra.mxu0 %v327
    %1494 = vmatpush.msra.mxu0 %v323
    %1495 = vmatpush.msra.mxu0 %v319
    %1496 = vmatpush.msra.mxu0 %v315
    %1497 = vmatpush.msra.mxu0 %v311
    %1498 = vmatpush.msra.mxu0 %v307
    %1499 = vmatpush.msra.mxu0 %v303
    %1500 = vmatpush.msra.mxu0 %v299
    %1501 = vmatpush.msra.mxu0 %v295
    %1502 = vmatpush.msra.mxu0 %v291
    %1503 = vmatpush.msra.mxu0 %v287
    %1504 = vmatpush.msra.mxu0 %v283
    %1505 = vmatpush.msra.mxu0 %v279
    %1506 = vmatpush.msra.mxu0 %v275
    %1507 = vmatpush.msra.mxu0 %v271
    %1508 = vmatpush.msra.mxu0 %v267
    %1509 = vmatmul.f32.gmra.mxu0 %v1387
    %v1510 = vpop.f32.mrf.mxu0
    %v1511 = vadd.f32 0.0, %v1510
    %1512 = vdwg.mxu0
    %1513 = vmatpush.msra.mxu0 %v328
    %1514 = vmatpush.msra.mxu0 %v324
    %1515 = vmatpush.msra.mxu0 %v320
    %1516 = vmatpush.msra.mxu0 %v316
    %1517 = vmatpush.msra.mxu0 %v312
    %1518 = vmatpush.msra.mxu0 %v308
    %1519 = vmatpush.msra.mxu0 %v304
    %1520 = vmatpush.msra.mxu0 %v300
    %1521 = vmatpush.msra.mxu0 %v296
    %1522 = vmatpush.msra.mxu0 %v292
    %1523 = vmatpush.msra.mxu0 %v288
    %1524 = vmatpush.msra.mxu0 %v284
    %1525 = vmatpush.msra.mxu0 %v280
    %1526 = vmatpush.msra.mxu0 %v276
    %1527 = vmatpush.msra.mxu0 %v272
    %1528 = vmatpush.msra.mxu0 %v268
    %1529 = vmatmul.f32.gmra.mxu0 %v1387
    %v1530 = vpop.f32.mrf.mxu0
    %v1531 = vadd.f32 0.0, %v1530
    %1532 = vdwg.mxu0
    %1533 = vmatpush.msra.mxu0 %v329
    %1534 = vmatpush.msra.mxu0 %v325
    %1535 = vmatpush.msra.mxu0 %v321
    %1536 = vmatpush.msra.mxu0 %v317
    %1537 = vmatpush.msra.mxu0 %v313
    %1538 = vmatpush.msra.mxu0 %v309
    %1539 = vmatpush.msra.mxu0 %v305
    %1540 = vmatpush.msra.mxu0 %v301
    %1541 = vmatpush.msra.mxu0 %v297
    %1542 = vmatpush.msra.mxu0 %v293
    %1543 = vmatpush.msra.mxu0 %v289
    %1544 = vmatpush.msra.mxu0 %v285
    %1545 = vmatpush.msra.mxu0 %v281
    %1546 = vmatpush.msra.mxu0 %v277
    %1547 = vmatpush.msra.mxu0 %v273
    %1548 = vmatpush.msra.mxu0 %v269
    %1549 = vmatmul.f32.gmra.mxu0 %v1387
    %v1550 = vpop.f32.mrf.mxu0
    %v1551 = vadd.f32 0.0, %v1550
    %1552 = vdwg.mxu0
    %1553 = vmatpush.msra.mxu0 %v330
    %1554 = vmatpush.msra.mxu0 %v326
    %1555 = vmatpush.msra.mxu0 %v322
    %1556 = vmatpush.msra.mxu0 %v318
    %1557 = vmatpush.msra.mxu0 %v314
    %1558 = vmatpush.msra.mxu0 %v310
    %1559 = vmatpush.msra.mxu0 %v306
    %1560 = vmatpush.msra.mxu0 %v302
    %1561 = vmatpush.msra.mxu0 %v298
    %1562 = vmatpush.msra.mxu0 %v294
    %1563 = vmatpush.msra.mxu0 %v290
    %1564 = vmatpush.msra.mxu0 %v286
    %1565 = vmatpush.msra.mxu0 %v282
    %1566 = vmatpush.msra.mxu0 %v278
    %1567 = vmatpush.msra.mxu0 %v274
    %1568 = vmatpush.msra.mxu0 %v270
    %1569 = vmatmul.f32.gmra.mxu0 %v1387
    %v1570 = vpop.f32.mrf.mxu0
    %v1571 = vadd.f32 0.0, %v1570
    %1572 = vdwg.mxu0
    %v1573 = vadd.f32 %v1489, %v1511
    %v1574 = vadd.f32 %v1490, %v1531
    %v1575 = vadd.f32 %v1491, %v1551
    %v1576 = vadd.f32 %v1492, %v1571
    %v1577 = vadd.f32 %v1573, %v1250
    %v1578 = vadd.f32 %v1574, %v1251
    %v1579 = vadd.f32 %v1575, %v1252
    %v1580 = vadd.f32 %v1576, %v1253
    %v1581 = vxor.u32 %v1482, 2147483648
    %v1582 = vmul.f32 %v1581, 1.442695
    %v1583 = vpow.pop %v1582
    %v1584 = vadd.f32 %v1583, 1.0
    %v1585 = vrcp.pop %v1584
    %v1586 = vmul.f32 %v1584, %v1585
    %v1587 = vsub.f32 1.0, %v1586
    %v1588 = vmul.f32 %v1585, %v1587
    %v1589 = vadd.f32 %v1585, %v1588
    %vm1590 = vweird.f32 %v1584
    %vm1591 = vweird.f32 %v1585
    %vm1592 = vmor %vm1590, %vm1591
    %v1593 = vsel %vm1592, %v1585, %v1589
    %v1594 = vand.u32 2147483647, %v1584
    %vm1595 = vcmp.eq.f32.partialorder %v1594, 8.507059e+37
    %v1596 = vand.u32 %v1584, 2147483648
    %v1597 = vor.u32 1.1754944e-38, %v1596
    %v1598 = vsel %vm1595, %v1597, %v1593
    %v1599 = vmul.f32 1.0, %v1598
    %v1600 = vxor.u32 %v1483, 2147483648
    %v1601 = vmul.f32 %v1600, 1.442695
    %v1602 = vpow.pop %v1601
    %v1603 = vadd.f32 %v1602, 1.0
    %v1604 = vrcp.pop %v1603
    %v1605 = vmul.f32 %v1603, %v1604
    %v1606 = vsub.f32 1.0, %v1605
    %v1607 = vmul.f32 %v1604, %v1606
    %v1608 = vadd.f32 %v1604, %v1607
    %vm1609 = vweird.f32 %v1603
    %vm1610 = vweird.f32 %v1604
    %vm1611 = vmor %vm1609, %vm1610
    %v1612 = vsel %vm1611, %v1604, %v1608
    %v1613 = vand.u32 2147483647, %v1603
    %vm1614 = vcmp.eq.f32.partialorder %v1613, 8.507059e+37
    %v1615 = vand.u32 %v1603, 2147483648
    %v1616 = vor.u32 1.1754944e-38, %v1615
    %v1617 = vsel %vm1614, %v1616, %v1612
    %v1618 = vmul.f32 1.0, %v1617
    %v1619 = vtanh.pop %v1484
    %v1620 = vxor.u32 %v1485, 2147483648
    %v1621 = vmul.f32 %v1620, 1.442695
    %v1622 = vpow.pop %v1621
    %v1623 = vadd.f32 %v1622, 1.0
    %v1624 = vrcp.pop %v1623
    %v1625 = vmul.f32 %v1623, %v1624
    %v1626 = vsub.f32 1.0, %v1625
    %v1627 = vmul.f32 %v1624, %v1626
    %v1628 = vadd.f32 %v1624, %v1627
    %vm1629 = vweird.f32 %v1623
    %vm1630 = vweird.f32 %v1624
    %vm1631 = vmor %vm1629, %vm1630
    %v1632 = vsel %vm1631, %v1624, %v1628
    %v1633 = vand.u32 2147483647, %v1623
    %vm1634 = vcmp.eq.f32.partialorder %v1633, 8.507059e+37
    %v1635 = vand.u32 %v1623, 2147483648
    %v1636 = vor.u32 1.1754944e-38, %v1635
    %v1637 = vsel %vm1634, %v1636, %v1632
    %v1638 = vmul.f32 1.0, %v1637
    %v1639 = vmul.f32 %v1618, %v1322
    %v1640 = vmul.f32 %v1599, %v1619
    %v1641 = vadd.f32 %v1639, %v1640
    %v1642 = vtanh.pop %v1641
    %v1643 = vmul.f32 %v1638, %v1642
    %v1644 = vxor.u32 %v1577, 2147483648
    %v1645 = vmul.f32 %v1644, 1.442695
    %v1646 = vpow.pop %v1645
    %v1647 = vadd.f32 %v1646, 1.0
    %v1648 = vrcp.pop %v1647
    %v1649 = vmul.f32 %v1647, %v1648
    %v1650 = vsub.f32 1.0, %v1649
    %v1651 = vmul.f32 %v1648, %v1650
    %v1652 = vadd.f32 %v1648, %v1651
    %vm1653 = vweird.f32 %v1647
    %vm1654 = vweird.f32 %v1648
    %vm1655 = vmor %vm1653, %vm1654
    %v1656 = vsel %vm1655, %v1648, %v1652
    %v1657 = vand.u32 2147483647, %v1647
    %vm1658 = vcmp.eq.f32.partialorder %v1657, 8.507059e+37
    %v1659 = vand.u32 %v1647, 2147483648
    %v1660 = vor.u32 1.1754944e-38, %v1659
    %v1661 = vsel %vm1658, %v1660, %v1656
    %v1662 = vmul.f32 1.0, %v1661
    %v1663 = vxor.u32 %v1578, 2147483648
    %v1664 = vmul.f32 %v1663, 1.442695
    %v1665 = vpow.pop %v1664
    %v1666 = vadd.f32 %v1665, 1.0
    %v1667 = vrcp.pop %v1666
    %v1668 = vmul.f32 %v1666, %v1667
    %v1669 = vsub.f32 1.0, %v1668
    %v1670 = vmul.f32 %v1667, %v1669
    %v1671 = vadd.f32 %v1667, %v1670
    %vm1672 = vweird.f32 %v1666
    %vm1673 = vweird.f32 %v1667
    %vm1674 = vmor %vm1672, %vm1673
    %v1675 = vsel %vm1674, %v1667, %v1671
    %v1676 = vand.u32 2147483647, %v1666
    %vm1677 = vcmp.eq.f32.partialorder %v1676, 8.507059e+37
    %v1678 = vand.u32 %v1666, 2147483648
    %v1679 = vor.u32 1.1754944e-38, %v1678
    %v1680 = vsel %vm1677, %v1679, %v1675
    %v1681 = vmul.f32 1.0, %v1680
    %v1682 = vtanh.pop %v1579
    %v1683 = vxor.u32 %v1580, 2147483648
    %v1684 = vmul.f32 %v1683, 1.442695
    %v1685 = vpow.pop %v1684
    %v1686 = vadd.f32 %v1685, 1.0
    %v1687 = vrcp.pop %v1686
    %v1688 = vmul.f32 %v1686, %v1687
    %v1689 = vsub.f32 1.0, %v1688
    %v1690 = vmul.f32 %v1687, %v1689
    %v1691 = vadd.f32 %v1687, %v1690
    %vm1692 = vweird.f32 %v1686
    %vm1693 = vweird.f32 %v1687
    %vm1694 = vmor %vm1692, %vm1693
    %v1695 = vsel %vm1694, %v1687, %v1691
    %v1696 = vand.u32 2147483647, %v1686
    %vm1697 = vcmp.eq.f32.partialorder %v1696, 8.507059e+37
    %v1698 = vand.u32 %v1686, 2147483648
    %v1699 = vor.u32 1.1754944e-38, %v1698
    %v1700 = vsel %vm1697, %v1699, %v1695
    %v1701 = vmul.f32 1.0, %v1700
    %v1702 = vmul.f32 %v1681, %v1385
    %v1703 = vmul.f32 %v1662, %v1682
    %v1704 = vadd.f32 %v1702, %v1703
    %v1705 = vtanh.pop %v1704
    %v1706 = vmul.f32 %v1701, %v1705
    %s1707 = scalar_lea.vmem [#allocation4], 8
    %1708 = vst [vmem:[%s1707] sm:$0xff] %v1643
    %s1709 = scalar_lea.vmem [#allocation5], 48
    %1710 = vst [vmem:[%s1709] sm:$0xff] %v1706
    %s1711 = smul.u32 2, 4
    %s1712 = smul.addr %s1711, 8
    %s1713 = scalar_lea.vmem [#allocation2], %s1712
    %v1714 = vld [vmem:[%s1713] sm:$0xff]
    %v1715 = vld [vmem:[%s1713 + $0x8] sm:$0xff]
    %v1716 = vld [vmem:[%s1713 + $0x10] sm:$0xff]
    %v1717 = vld [vmem:[%s1713 + $0x18] sm:$0xff]
    %1718 = vmatpush.msra.mxu0 %v262
    %1719 = vmatpush.msra.mxu0 %v258
    %1720 = vmatpush.msra.mxu0 %v254
    %1721 = vmatpush.msra.mxu0 %v250
    %1722 = vmatpush.msra.mxu0 %v246
    %1723 = vmatpush.msra.mxu0 %v242
    %1724 = vmatpush.msra.mxu0 %v238
    %1725 = vmatpush.msra.mxu0 %v234
    %1726 = vmatpush.msra.mxu0 %v230
    %1727 = vmatpush.msra.mxu0 %v226
    %1728 = vmatpush.msra.mxu0 %v222
    %1729 = vmatpush.msra.mxu0 %v218
    %1730 = vmatpush.msra.mxu0 %v214
    %1731 = vmatpush.msra.mxu0 %v210
    %1732 = vmatpush.msra.mxu0 %v206
    %1733 = vmatpush.msra.mxu0 %v202
    %1734 = vmatmul.f32.gmra.mxu0 %v1643
    %v1735 = vpop.f32.mrf.mxu0
    %v1736 = vadd.f32 0.0, %v1735
    %1737 = vdwg.mxu0
    %1738 = vmatpush.msra.mxu0 %v263
    %1739 = vmatpush.msra.mxu0 %v259
    %1740 = vmatpush.msra.mxu0 %v255
    %1741 = vmatpush.msra.mxu0 %v251
    %1742 = vmatpush.msra.mxu0 %v247
    %1743 = vmatpush.msra.mxu0 %v243
    %1744 = vmatpush.msra.mxu0 %v239
    %1745 = vmatpush.msra.mxu0 %v235
    %1746 = vmatpush.msra.mxu0 %v231
    %1747 = vmatpush.msra.mxu0 %v227
    %1748 = vmatpush.msra.mxu0 %v223
    %1749 = vmatpush.msra.mxu0 %v219
    %1750 = vmatpush.msra.mxu0 %v215
    %1751 = vmatpush.msra.mxu0 %v211
    %1752 = vmatpush.msra.mxu0 %v207
    %1753 = vmatpush.msra.mxu0 %v203
    %1754 = vmatmul.f32.gmra.mxu0 %v1643
    %v1755 = vpop.f32.mrf.mxu0
    %v1756 = vadd.f32 0.0, %v1755
    %1757 = vdwg.mxu0
    %1758 = vmatpush.msra.mxu0 %v264
    %1759 = vmatpush.msra.mxu0 %v260
    %1760 = vmatpush.msra.mxu0 %v256
    %1761 = vmatpush.msra.mxu0 %v252
    %1762 = vmatpush.msra.mxu0 %v248
    %1763 = vmatpush.msra.mxu0 %v244
    %1764 = vmatpush.msra.mxu0 %v240
    %1765 = vmatpush.msra.mxu0 %v236
    %1766 = vmatpush.msra.mxu0 %v232
    %1767 = vmatpush.msra.mxu0 %v228
    %1768 = vmatpush.msra.mxu0 %v224
    %1769 = vmatpush.msra.mxu0 %v220
    %1770 = vmatpush.msra.mxu0 %v216
    %1771 = vmatpush.msra.mxu0 %v212
    %1772 = vmatpush.msra.mxu0 %v208
    %1773 = vmatpush.msra.mxu0 %v204
    %1774 = vmatmul.f32.gmra.mxu0 %v1643
    %v1775 = vpop.f32.mrf.mxu0
    %v1776 = vadd.f32 0.0, %v1775
    %1777 = vdwg.mxu0
    %1778 = vmatpush.msra.mxu0 %v265
    %1779 = vmatpush.msra.mxu0 %v261
    %1780 = vmatpush.msra.mxu0 %v257
    %1781 = vmatpush.msra.mxu0 %v253
    %1782 = vmatpush.msra.mxu0 %v249
    %1783 = vmatpush.msra.mxu0 %v245
    %1784 = vmatpush.msra.mxu0 %v241
    %1785 = vmatpush.msra.mxu0 %v237
    %1786 = vmatpush.msra.mxu0 %v233
    %1787 = vmatpush.msra.mxu0 %v229
    %1788 = vmatpush.msra.mxu0 %v225
    %1789 = vmatpush.msra.mxu0 %v221
    %1790 = vmatpush.msra.mxu0 %v217
    %1791 = vmatpush.msra.mxu0 %v213
    %1792 = vmatpush.msra.mxu0 %v209
    %1793 = vmatpush.msra.mxu0 %v205
    %1794 = vmatmul.f32.gmra.mxu0 %v1643
    %v1795 = vpop.f32.mrf.mxu0
    %v1796 = vadd.f32 0.0, %v1795
    %1797 = vdwg.mxu0
    %v1798 = vadd.f32 %v1714, %v1736
    %v1799 = vadd.f32 %v1715, %v1756
    %v1800 = vadd.f32 %v1716, %v1776
    %v1801 = vadd.f32 %v1717, %v1796
    %v1802 = vadd.f32 %v1798, %v1146
    %v1803 = vadd.f32 %v1799, %v1147
    %v1804 = vadd.f32 %v1800, %v1148
    %v1805 = vadd.f32 %v1801, %v1149
    %s1806 = smul.u32 5, 4
    %s1807 = smul.addr %s1806, 8
    %s1808 = scalar_lea.vmem [#allocation3], %s1807
    %v1809 = vld [vmem:[%s1808] sm:$0xff]
    %v1810 = vld [vmem:[%s1808 + $0x8] sm:$0xff]
    %v1811 = vld [vmem:[%s1808 + $0x10] sm:$0xff]
    %v1812 = vld [vmem:[%s1808 + $0x18] sm:$0xff]
    %1813 = vmatpush.msra.mxu0 %v327
    %1814 = vmatpush.msra.mxu0 %v323
    %1815 = vmatpush.msra.mxu0 %v319
    %1816 = vmatpush.msra.mxu0 %v315
    %1817 = vmatpush.msra.mxu0 %v311
    %1818 = vmatpush.msra.mxu0 %v307
    %1819 = vmatpush.msra.mxu0 %v303
    %1820 = vmatpush.msra.mxu0 %v299
    %1821 = vmatpush.msra.mxu0 %v295
    %1822 = vmatpush.msra.mxu0 %v291
    %1823 = vmatpush.msra.mxu0 %v287
    %1824 = vmatpush.msra.mxu0 %v283
    %1825 = vmatpush.msra.mxu0 %v279
    %1826 = vmatpush.msra.mxu0 %v275
    %1827 = vmatpush.msra.mxu0 %v271
    %1828 = vmatpush.msra.mxu0 %v267
    %1829 = vmatmul.f32.gmra.mxu0 %v1706
    %v1830 = vpop.f32.mrf.mxu0
    %v1831 = vadd.f32 0.0, %v1830
    %1832 = vdwg.mxu0
    %1833 = vmatpush.msra.mxu0 %v328
    %1834 = vmatpush.msra.mxu0 %v324
    %1835 = vmatpush.msra.mxu0 %v320
    %1836 = vmatpush.msra.mxu0 %v316
    %1837 = vmatpush.msra.mxu0 %v312
    %1838 = vmatpush.msra.mxu0 %v308
    %1839 = vmatpush.msra.mxu0 %v304
    %1840 = vmatpush.msra.mxu0 %v300
    %1841 = vmatpush.msra.mxu0 %v296
    %1842 = vmatpush.msra.mxu0 %v292
    %1843 = vmatpush.msra.mxu0 %v288
    %1844 = vmatpush.msra.mxu0 %v284
    %1845 = vmatpush.msra.mxu0 %v280
    %1846 = vmatpush.msra.mxu0 %v276
    %1847 = vmatpush.msra.mxu0 %v272
    %1848 = vmatpush.msra.mxu0 %v268
    %1849 = vmatmul.f32.gmra.mxu0 %v1706
    %v1850 = vpop.f32.mrf.mxu0
    %v1851 = vadd.f32 0.0, %v1850
    %1852 = vdwg.mxu0
    %1853 = vmatpush.msra.mxu0 %v329
    %1854 = vmatpush.msra.mxu0 %v325
    %1855 = vmatpush.msra.mxu0 %v321
    %1856 = vmatpush.msra.mxu0 %v317
    %1857 = vmatpush.msra.mxu0 %v313
    %1858 = vmatpush.msra.mxu0 %v309
    %1859 = vmatpush.msra.mxu0 %v305
    %1860 = vmatpush.msra.mxu0 %v301
    %1861 = vmatpush.msra.mxu0 %v297
    %1862 = vmatpush.msra.mxu0 %v293
    %1863 = vmatpush.msra.mxu0 %v289
    %1864 = vmatpush.msra.mxu0 %v285
    %1865 = vmatpush.msra.mxu0 %v281
    %1866 = vmatpush.msra.mxu0 %v277
    %1867 = vmatpush.msra.mxu0 %v273
    %1868 = vmatpush.msra.mxu0 %v269
    %1869 = vmatmul.f32.gmra.mxu0 %v1706
    %v1870 = vpop.f32.mrf.mxu0
    %v1871 = vadd.f32 0.0, %v1870
    %1872 = vdwg.mxu0
    %1873 = vmatpush.msra.mxu0 %v330
    %1874 = vmatpush.msra.mxu0 %v326
    %1875 = vmatpush.msra.mxu0 %v322
    %1876 = vmatpush.msra.mxu0 %v318
    %1877 = vmatpush.msra.mxu0 %v314
    %1878 = vmatpush.msra.mxu0 %v310
    %1879 = vmatpush.msra.mxu0 %v306
    %1880 = vmatpush.msra.mxu0 %v302
    %1881 = vmatpush.msra.mxu0 %v298
    %1882 = vmatpush.msra.mxu0 %v294
    %1883 = vmatpush.msra.mxu0 %v290
    %1884 = vmatpush.msra.mxu0 %v286
    %1885 = vmatpush.msra.mxu0 %v282
    %1886 = vmatpush.msra.mxu0 %v278
    %1887 = vmatpush.msra.mxu0 %v274
    %1888 = vmatpush.msra.mxu0 %v270
    %1889 = vmatmul.f32.gmra.mxu0 %v1706
    %v1890 = vpop.f32.mrf.mxu0
    %v1891 = vadd.f32 0.0, %v1890
    %1892 = vdwg.mxu0
    %v1893 = vadd.f32 %v1809, %v1831
    %v1894 = vadd.f32 %v1810, %v1851
    %v1895 = vadd.f32 %v1811, %v1871
    %v1896 = vadd.f32 %v1812, %v1891
    %v1897 = vadd.f32 %v1893, %v1250
    %v1898 = vadd.f32 %v1894, %v1251
    %v1899 = vadd.f32 %v1895, %v1252
    %v1900 = vadd.f32 %v1896, %v1253
    %v1901 = vxor.u32 %v1802, 2147483648
    %v1902 = vmul.f32 %v1901, 1.442695
    %v1903 = vpow.pop %v1902
    %v1904 = vadd.f32 %v1903, 1.0
    %v1905 = vrcp.pop %v1904
    %v1906 = vmul.f32 %v1904, %v1905
    %v1907 = vsub.f32 1.0, %v1906
    %v1908 = vmul.f32 %v1905, %v1907
    %v1909 = vadd.f32 %v1905, %v1908
    %vm1910 = vweird.f32 %v1904
    %vm1911 = vweird.f32 %v1905
    %vm1912 = vmor %vm1910, %vm1911
    %v1913 = vsel %vm1912, %v1905, %v1909
    %v1914 = vand.u32 2147483647, %v1904
    %vm1915 = vcmp.eq.f32.partialorder %v1914, 8.507059e+37
    %v1916 = vand.u32 %v1904, 2147483648
    %v1917 = vor.u32 1.1754944e-38, %v1916
    %v1918 = vsel %vm1915, %v1917, %v1913
    %v1919 = vmul.f32 1.0, %v1918
    %v1920 = vxor.u32 %v1803, 2147483648
    %v1921 = vmul.f32 %v1920, 1.442695
    %v1922 = vpow.pop %v1921
    %v1923 = vadd.f32 %v1922, 1.0
    %v1924 = vrcp.pop %v1923
    %v1925 = vmul.f32 %v1923, %v1924
    %v1926 = vsub.f32 1.0, %v1925
    %v1927 = vmul.f32 %v1924, %v1926
    %v1928 = vadd.f32 %v1924, %v1927
    %vm1929 = vweird.f32 %v1923
    %vm1930 = vweird.f32 %v1924
    %vm1931 = vmor %vm1929, %vm1930
    %v1932 = vsel %vm1931, %v1924, %v1928
    %v1933 = vand.u32 2147483647, %v1923
    %vm1934 = vcmp.eq.f32.partialorder %v1933, 8.507059e+37
    %v1935 = vand.u32 %v1923, 2147483648
    %v1936 = vor.u32 1.1754944e-38, %v1935
    %v1937 = vsel %vm1934, %v1936, %v1932
    %v1938 = vmul.f32 1.0, %v1937
    %v1939 = vtanh.pop %v1804
    %v1940 = vxor.u32 %v1805, 2147483648
    %v1941 = vmul.f32 %v1940, 1.442695
    %v1942 = vpow.pop %v1941
    %v1943 = vadd.f32 %v1942, 1.0
    %v1944 = vrcp.pop %v1943
    %v1945 = vmul.f32 %v1943, %v1944
    %v1946 = vsub.f32 1.0, %v1945
    %v1947 = vmul.f32 %v1944, %v1946
    %v1948 = vadd.f32 %v1944, %v1947
    %vm1949 = vweird.f32 %v1943
    %vm1950 = vweird.f32 %v1944
    %vm1951 = vmor %vm1949, %vm1950
    %v1952 = vsel %vm1951, %v1944, %v1948
    %v1953 = vand.u32 2147483647, %v1943
    %vm1954 = vcmp.eq.f32.partialorder %v1953, 8.507059e+37
    %v1955 = vand.u32 %v1943, 2147483648
    %v1956 = vor.u32 1.1754944e-38, %v1955
    %v1957 = vsel %vm1954, %v1956, %v1952
    %v1958 = vmul.f32 1.0, %v1957
    %v1959 = vmul.f32 %v1938, %v1641
    %v1960 = vmul.f32 %v1919, %v1939
    %v1961 = vadd.f32 %v1959, %v1960
    %v1962 = vtanh.pop %v1961
    %v1963 = vmul.f32 %v1958, %v1962
    %v1964 = vxor.u32 %v1897, 2147483648
    %v1965 = vmul.f32 %v1964, 1.442695
    %v1966 = vpow.pop %v1965
    %v1967 = vadd.f32 %v1966, 1.0
    %v1968 = vrcp.pop %v1967
    %v1969 = vmul.f32 %v1967, %v1968
    %v1970 = vsub.f32 1.0, %v1969
    %v1971 = vmul.f32 %v1968, %v1970
    %v1972 = vadd.f32 %v1968, %v1971
    %vm1973 = vweird.f32 %v1967
    %vm1974 = vweird.f32 %v1968
    %vm1975 = vmor %vm1973, %vm1974
    %v1976 = vsel %vm1975, %v1968, %v1972
    %v1977 = vand.u32 2147483647, %v1967
    %vm1978 = vcmp.eq.f32.partialorder %v1977, 8.507059e+37
    %v1979 = vand.u32 %v1967, 2147483648
    %v1980 = vor.u32 1.1754944e-38, %v1979
    %v1981 = vsel %vm1978, %v1980, %v1976
    %v1982 = vmul.f32 1.0, %v1981
    %v1983 = vxor.u32 %v1898, 2147483648
    %v1984 = vmul.f32 %v1983, 1.442695
    %v1985 = vpow.pop %v1984
    %v1986 = vadd.f32 %v1985, 1.0
    %v1987 = vrcp.pop %v1986
    %v1988 = vmul.f32 %v1986, %v1987
    %v1989 = vsub.f32 1.0, %v1988
    %v1990 = vmul.f32 %v1987, %v1989
    %v1991 = vadd.f32 %v1987, %v1990
    %vm1992 = vweird.f32 %v1986
    %vm1993 = vweird.f32 %v1987
    %vm1994 = vmor %vm1992, %vm1993
    %v1995 = vsel %vm1994, %v1987, %v1991
    %v1996 = vand.u32 2147483647, %v1986
    %vm1997 = vcmp.eq.f32.partialorder %v1996, 8.507059e+37
    %v1998 = vand.u32 %v1986, 2147483648
    %v1999 = vor.u32 1.1754944e-38, %v1998
    %v2000 = vsel %vm1997, %v1999, %v1995
    %v2001 = vmul.f32 1.0, %v2000
    %v2002 = vtanh.pop %v1899
    %v2003 = vxor.u32 %v1900, 2147483648
    %v2004 = vmul.f32 %v2003, 1.442695
    %v2005 = vpow.pop %v2004
    %v2006 = vadd.f32 %v2005, 1.0
    %v2007 = vrcp.pop %v2006
    %v2008 = vmul.f32 %v2006, %v2007
    %v2009 = vsub.f32 1.0, %v2008
    %v2010 = vmul.f32 %v2007, %v2009
    %v2011 = vadd.f32 %v2007, %v2010
    %vm2012 = vweird.f32 %v2006
    %vm2013 = vweird.f32 %v2007
    %vm2014 = vmor %vm2012, %vm2013
    %v2015 = vsel %vm2014, %v2007, %v2011
    %v2016 = vand.u32 2147483647, %v2006
    %vm2017 = vcmp.eq.f32.partialorder %v2016, 8.507059e+37
    %v2018 = vand.u32 %v2006, 2147483648
    %v2019 = vor.u32 1.1754944e-38, %v2018
    %v2020 = vsel %vm2017, %v2019, %v2015
    %v2021 = vmul.f32 1.0, %v2020
    %v2022 = vmul.f32 %v2001, %v1704
    %v2023 = vmul.f32 %v1982, %v2002
    %v2024 = vadd.f32 %v2022, %v2023
    %v2025 = vtanh.pop %v2024
    %v2026 = vmul.f32 %v2021, %v2025
    %s2027 = scalar_lea.vmem [#allocation4], 16
    %2028 = vst [vmem:[%s2027] sm:$0xff] %v1963
    %s2029 = scalar_lea.vmem [#allocation5], 40
    %2030 = vst [vmem:[%s2029] sm:$0xff] %v2026
    %s2031 = smul.u32 3, 4
    %s2032 = smul.addr %s2031, 8
    %s2033 = scalar_lea.vmem [#allocation2], %s2032
    %v2034 = vld [vmem:[%s2033] sm:$0xff]
    %v2035 = vld [vmem:[%s2033 + $0x8] sm:$0xff]
    %v2036 = vld [vmem:[%s2033 + $0x10] sm:$0xff]
    %v2037 = vld [vmem:[%s2033 + $0x18] sm:$0xff]
    %2038 = vmatpush.msra.mxu0 %v262
    %2039 = vmatpush.msra.mxu0 %v258
    %2040 = vmatpush.msra.mxu0 %v254
    %2041 = vmatpush.msra.mxu0 %v250
    %2042 = vmatpush.msra.mxu0 %v246
    %2043 = vmatpush.msra.mxu0 %v242
    %2044 = vmatpush.msra.mxu0 %v238
    %2045 = vmatpush.msra.mxu0 %v234
    %2046 = vmatpush.msra.mxu0 %v230
    %2047 = vmatpush.msra.mxu0 %v226
    %2048 = vmatpush.msra.mxu0 %v222
    %2049 = vmatpush.msra.mxu0 %v218
    %2050 = vmatpush.msra.mxu0 %v214
    %2051 = vmatpush.msra.mxu0 %v210
    %2052 = vmatpush.msra.mxu0 %v206
    %2053 = vmatpush.msra.mxu0 %v202
    %2054 = vmatmul.f32.gmra.mxu0 %v1963
    %v2055 = vpop.f32.mrf.mxu0
    %v2056 = vadd.f32 0.0, %v2055
    %2057 = vdwg.mxu0
    %2058 = vmatpush.msra.mxu0 %v263
    %2059 = vmatpush.msra.mxu0 %v259
    %2060 = vmatpush.msra.mxu0 %v255
    %2061 = vmatpush.msra.mxu0 %v251
    %2062 = vmatpush.msra.mxu0 %v247
    %2063 = vmatpush.msra.mxu0 %v243
    %2064 = vmatpush.msra.mxu0 %v239
    %2065 = vmatpush.msra.mxu0 %v235
    %2066 = vmatpush.msra.mxu0 %v231
    %2067 = vmatpush.msra.mxu0 %v227
    %2068 = vmatpush.msra.mxu0 %v223
    %2069 = vmatpush.msra.mxu0 %v219
    %2070 = vmatpush.msra.mxu0 %v215
    %2071 = vmatpush.msra.mxu0 %v211
    %2072 = vmatpush.msra.mxu0 %v207
    %2073 = vmatpush.msra.mxu0 %v203
    %2074 = vmatmul.f32.gmra.mxu0 %v1963
    %v2075 = vpop.f32.mrf.mxu0
    %v2076 = vadd.f32 0.0, %v2075
    %2077 = vdwg.mxu0
    %2078 = vmatpush.msra.mxu0 %v264
    %2079 = vmatpush.msra.mxu0 %v260
    %2080 = vmatpush.msra.mxu0 %v256
    %2081 = vmatpush.msra.mxu0 %v252
    %2082 = vmatpush.msra.mxu0 %v248
    %2083 = vmatpush.msra.mxu0 %v244
    %2084 = vmatpush.msra.mxu0 %v240
    %2085 = vmatpush.msra.mxu0 %v236
    %2086 = vmatpush.msra.mxu0 %v232
    %2087 = vmatpush.msra.mxu0 %v228
    %2088 = vmatpush.msra.mxu0 %v224
    %2089 = vmatpush.msra.mxu0 %v220
    %2090 = vmatpush.msra.mxu0 %v216
    %2091 = vmatpush.msra.mxu0 %v212
    %2092 = vmatpush.msra.mxu0 %v208
    %2093 = vmatpush.msra.mxu0 %v204
    %2094 = vmatmul.f32.gmra.mxu0 %v1963
    %v2095 = vpop.f32.mrf.mxu0
    %v2096 = vadd.f32 0.0, %v2095
    %2097 = vdwg.mxu0
    %2098 = vmatpush.msra.mxu0 %v265
    %2099 = vmatpush.msra.mxu0 %v261
    %2100 = vmatpush.msra.mxu0 %v257
    %2101 = vmatpush.msra.mxu0 %v253
    %2102 = vmatpush.msra.mxu0 %v249
    %2103 = vmatpush.msra.mxu0 %v245
    %2104 = vmatpush.msra.mxu0 %v241
    %2105 = vmatpush.msra.mxu0 %v237
    %2106 = vmatpush.msra.mxu0 %v233
    %2107 = vmatpush.msra.mxu0 %v229
    %2108 = vmatpush.msra.mxu0 %v225
    %2109 = vmatpush.msra.mxu0 %v221
    %2110 = vmatpush.msra.mxu0 %v217
    %2111 = vmatpush.msra.mxu0 %v213
    %2112 = vmatpush.msra.mxu0 %v209
    %2113 = vmatpush.msra.mxu0 %v205
    %2114 = vmatmul.f32.gmra.mxu0 %v1963
    %v2115 = vpop.f32.mrf.mxu0
    %v2116 = vadd.f32 0.0, %v2115
    %2117 = vdwg.mxu0
    %v2118 = vadd.f32 %v2034, %v2056
    %v2119 = vadd.f32 %v2035, %v2076
    %v2120 = vadd.f32 %v2036, %v2096
    %v2121 = vadd.f32 %v2037, %v2116
    %v2122 = vadd.f32 %v2118, %v1146
    %v2123 = vadd.f32 %v2119, %v1147
    %v2124 = vadd.f32 %v2120, %v1148
    %v2125 = vadd.f32 %v2121, %v1149
    %s2126 = smul.u32 4, 4
    %s2127 = smul.addr %s2126, 8
    %s2128 = scalar_lea.vmem [#allocation3], %s2127
    %v2129 = vld [vmem:[%s2128] sm:$0xff]
    %v2130 = vld [vmem:[%s2128 + $0x8] sm:$0xff]
    %v2131 = vld [vmem:[%s2128 + $0x10] sm:$0xff]
    %v2132 = vld [vmem:[%s2128 + $0x18] sm:$0xff]
    %2133 = vmatpush.msra.mxu0 %v327
    %2134 = vmatpush.msra.mxu0 %v323
    %2135 = vmatpush.msra.mxu0 %v319
    %2136 = vmatpush.msra.mxu0 %v315
    %2137 = vmatpush.msra.mxu0 %v311
    %2138 = vmatpush.msra.mxu0 %v307
    %2139 = vmatpush.msra.mxu0 %v303
    %2140 = vmatpush.msra.mxu0 %v299
    %2141 = vmatpush.msra.mxu0 %v295
    %2142 = vmatpush.msra.mxu0 %v291
    %2143 = vmatpush.msra.mxu0 %v287
    %2144 = vmatpush.msra.mxu0 %v283
    %2145 = vmatpush.msra.mxu0 %v279
    %2146 = vmatpush.msra.mxu0 %v275
    %2147 = vmatpush.msra.mxu0 %v271
    %2148 = vmatpush.msra.mxu0 %v267
    %2149 = vmatmul.f32.gmra.mxu0 %v2026
    %v2150 = vpop.f32.mrf.mxu0
    %v2151 = vadd.f32 0.0, %v2150
    %2152 = vdwg.mxu0
    %2153 = vmatpush.msra.mxu0 %v328
    %2154 = vmatpush.msra.mxu0 %v324
    %2155 = vmatpush.msra.mxu0 %v320
    %2156 = vmatpush.msra.mxu0 %v316
    %2157 = vmatpush.msra.mxu0 %v312
    %2158 = vmatpush.msra.mxu0 %v308
    %2159 = vmatpush.msra.mxu0 %v304
    %2160 = vmatpush.msra.mxu0 %v300
    %2161 = vmatpush.msra.mxu0 %v296
    %2162 = vmatpush.msra.mxu0 %v292
    %2163 = vmatpush.msra.mxu0 %v288
    %2164 = vmatpush.msra.mxu0 %v284
    %2165 = vmatpush.msra.mxu0 %v280
    %2166 = vmatpush.msra.mxu0 %v276
    %2167 = vmatpush.msra.mxu0 %v272
    %2168 = vmatpush.msra.mxu0 %v268
    %2169 = vmatmul.f32.gmra.mxu0 %v2026
    %v2170 = vpop.f32.mrf.mxu0
    %v2171 = vadd.f32 0.0, %v2170
    %2172 = vdwg.mxu0
    %2173 = vmatpush.msra.mxu0 %v329
    %2174 = vmatpush.msra.mxu0 %v325
    %2175 = vmatpush.msra.mxu0 %v321
    %2176 = vmatpush.msra.mxu0 %v317
    %2177 = vmatpush.msra.mxu0 %v313
    %2178 = vmatpush.msra.mxu0 %v309
    %2179 = vmatpush.msra.mxu0 %v305
    %2180 = vmatpush.msra.mxu0 %v301
    %2181 = vmatpush.msra.mxu0 %v297
    %2182 = vmatpush.msra.mxu0 %v293
    %2183 = vmatpush.msra.mxu0 %v289
    %2184 = vmatpush.msra.mxu0 %v285
    %2185 = vmatpush.msra.mxu0 %v281
    %2186 = vmatpush.msra.mxu0 %v277
    %2187 = vmatpush.msra.mxu0 %v273
    %2188 = vmatpush.msra.mxu0 %v269
    %2189 = vmatmul.f32.gmra.mxu0 %v2026
    %v2190 = vpop.f32.mrf.mxu0
    %v2191 = vadd.f32 0.0, %v2190
    %2192 = vdwg.mxu0
    %2193 = vmatpush.msra.mxu0 %v330
    %2194 = vmatpush.msra.mxu0 %v326
    %2195 = vmatpush.msra.mxu0 %v322
    %2196 = vmatpush.msra.mxu0 %v318
    %2197 = vmatpush.msra.mxu0 %v314
    %2198 = vmatpush.msra.mxu0 %v310
    %2199 = vmatpush.msra.mxu0 %v306
    %2200 = vmatpush.msra.mxu0 %v302
    %2201 = vmatpush.msra.mxu0 %v298
    %2202 = vmatpush.msra.mxu0 %v294
    %2203 = vmatpush.msra.mxu0 %v290
    %2204 = vmatpush.msra.mxu0 %v286
    %2205 = vmatpush.msra.mxu0 %v282
    %2206 = vmatpush.msra.mxu0 %v278
    %2207 = vmatpush.msra.mxu0 %v274
    %2208 = vmatpush.msra.mxu0 %v270
    %2209 = vmatmul.f32.gmra.mxu0 %v2026
    %v2210 = vpop.f32.mrf.mxu0
    %v2211 = vadd.f32 0.0, %v2210
    %2212 = vdwg.mxu0
    %v2213 = vadd.f32 %v2129, %v2151
    %v2214 = vadd.f32 %v2130, %v2171
    %v2215 = vadd.f32 %v2131, %v2191
    %v2216 = vadd.f32 %v2132, %v2211
    %v2217 = vadd.f32 %v2213, %v1250
    %v2218 = vadd.f32 %v2214, %v1251
    %v2219 = vadd.f32 %v2215, %v1252
    %v2220 = vadd.f32 %v2216, %v1253
    %v2221 = vxor.u32 %v2122, 2147483648
    %v2222 = vmul.f32 %v2221, 1.442695
    %v2223 = vpow.pop %v2222
    %v2224 = vadd.f32 %v2223, 1.0
    %v2225 = vrcp.pop %v2224
    %v2226 = vmul.f32 %v2224, %v2225
    %v2227 = vsub.f32 1.0, %v2226
    %v2228 = vmul.f32 %v2225, %v2227
    %v2229 = vadd.f32 %v2225, %v2228
    %vm2230 = vweird.f32 %v2224
    %vm2231 = vweird.f32 %v2225
    %vm2232 = vmor %vm2230, %vm2231
    %v2233 = vsel %vm2232, %v2225, %v2229
    %v2234 = vand.u32 2147483647, %v2224
    %vm2235 = vcmp.eq.f32.partialorder %v2234, 8.507059e+37
    %v2236 = vand.u32 %v2224, 2147483648
    %v2237 = vor.u32 1.1754944e-38, %v2236
    %v2238 = vsel %vm2235, %v2237, %v2233
    %v2239 = vmul.f32 1.0, %v2238
    %v2240 = vxor.u32 %v2123, 2147483648
    %v2241 = vmul.f32 %v2240, 1.442695
    %v2242 = vpow.pop %v2241
    %v2243 = vadd.f32 %v2242, 1.0
    %v2244 = vrcp.pop %v2243
    %v2245 = vmul.f32 %v2243, %v2244
    %v2246 = vsub.f32 1.0, %v2245
    %v2247 = vmul.f32 %v2244, %v2246
    %v2248 = vadd.f32 %v2244, %v2247
    %vm2249 = vweird.f32 %v2243
    %vm2250 = vweird.f32 %v2244
    %vm2251 = vmor %vm2249, %vm2250
    %v2252 = vsel %vm2251, %v2244, %v2248
    %v2253 = vand.u32 2147483647, %v2243
    %vm2254 = vcmp.eq.f32.partialorder %v2253, 8.507059e+37
    %v2255 = vand.u32 %v2243, 2147483648
    %v2256 = vor.u32 1.1754944e-38, %v2255
    %v2257 = vsel %vm2254, %v2256, %v2252
    %v2258 = vmul.f32 1.0, %v2257
    %v2259 = vtanh.pop %v2124
    %v2260 = vxor.u32 %v2125, 2147483648
    %v2261 = vmul.f32 %v2260, 1.442695
    %v2262 = vpow.pop %v2261
    %v2263 = vadd.f32 %v2262, 1.0
    %v2264 = vrcp.pop %v2263
    %v2265 = vmul.f32 %v2263, %v2264
    %v2266 = vsub.f32 1.0, %v2265
    %v2267 = vmul.f32 %v2264, %v2266
    %v2268 = vadd.f32 %v2264, %v2267
    %vm2269 = vweird.f32 %v2263
    %vm2270 = vweird.f32 %v2264
    %vm2271 = vmor %vm2269, %vm2270
    %v2272 = vsel %vm2271, %v2264, %v2268
    %v2273 = vand.u32 2147483647, %v2263
    %vm2274 = vcmp.eq.f32.partialorder %v2273, 8.507059e+37
    %v2275 = vand.u32 %v2263, 2147483648
    %v2276 = vor.u32 1.1754944e-38, %v2275
    %v2277 = vsel %vm2274, %v2276, %v2272
    %v2278 = vmul.f32 1.0, %v2277
    %v2279 = vmul.f32 %v2258, %v1961
    %v2280 = vmul.f32 %v2239, %v2259
    %v2281 = vadd.f32 %v2279, %v2280
    %v2282 = vtanh.pop %v2281
    %v2283 = vmul.f32 %v2278, %v2282
    %v2284 = vxor.u32 %v2217, 2147483648
    %v2285 = vmul.f32 %v2284, 1.442695
    %v2286 = vpow.pop %v2285
    %v2287 = vadd.f32 %v2286, 1.0
    %v2288 = vrcp.pop %v2287
    %v2289 = vmul.f32 %v2287, %v2288
    %v2290 = vsub.f32 1.0, %v2289
    %v2291 = vmul.f32 %v2288, %v2290
    %v2292 = vadd.f32 %v2288, %v2291
    %vm2293 = vweird.f32 %v2287
    %vm2294 = vweird.f32 %v2288
    %vm2295 = vmor %vm2293, %vm2294
    %v2296 = vsel %vm2295, %v2288, %v2292
    %v2297 = vand.u32 2147483647, %v2287
    %vm2298 = vcmp.eq.f32.partialorder %v2297, 8.507059e+37
    %v2299 = vand.u32 %v2287, 2147483648
    %v2300 = vor.u32 1.1754944e-38, %v2299
    %v2301 = vsel %vm2298, %v2300, %v2296
    %v2302 = vmul.f32 1.0, %v2301
    %v2303 = vxor.u32 %v2218, 2147483648
    %v2304 = vmul.f32 %v2303, 1.442695
    %v2305 = vpow.pop %v2304
    %v2306 = vadd.f32 %v2305, 1.0
    %v2307 = vrcp.pop %v2306
    %v2308 = vmul.f32 %v2306, %v2307
    %v2309 = vsub.f32 1.0, %v2308
    %v2310 = vmul.f32 %v2307, %v2309
    %v2311 = vadd.f32 %v2307, %v2310
    %vm2312 = vweird.f32 %v2306
    %vm2313 = vweird.f32 %v2307
    %vm2314 = vmor %vm2312, %vm2313
    %v2315 = vsel %vm2314, %v2307, %v2311
    %v2316 = vand.u32 2147483647, %v2306
    %vm2317 = vcmp.eq.f32.partialorder %v2316, 8.507059e+37
    %v2318 = vand.u32 %v2306, 2147483648
    %v2319 = vor.u32 1.1754944e-38, %v2318
    %v2320 = vsel %vm2317, %v2319, %v2315
    %v2321 = vmul.f32 1.0, %v2320
    %v2322 = vtanh.pop %v2219
    %v2323 = vxor.u32 %v2220, 2147483648
    %v2324 = vmul.f32 %v2323, 1.442695
    %v2325 = vpow.pop %v2324
    %v2326 = vadd.f32 %v2325, 1.0
    %v2327 = vrcp.pop %v2326
    %v2328 = vmul.f32 %v2326, %v2327
    %v2329 = vsub.f32 1.0, %v2328
    %v2330 = vmul.f32 %v2327, %v2329
    %v2331 = vadd.f32 %v2327, %v2330
    %vm2332 = vweird.f32 %v2326
    %vm2333 = vweird.f32 %v2327
    %vm2334 = vmor %vm2332, %vm2333
    %v2335 = vsel %vm2334, %v2327, %v2331
    %v2336 = vand.u32 2147483647, %v2326
    %vm2337 = vcmp.eq.f32.partialorder %v2336, 8.507059e+37
    %v2338 = vand.u32 %v2326, 2147483648
    %v2339 = vor.u32 1.1754944e-38, %v2338
    %v2340 = vsel %vm2337, %v2339, %v2335
    %v2341 = vmul.f32 1.0, %v2340
    %v2342 = vmul.f32 %v2321, %v2024
    %v2343 = vmul.f32 %v2302, %v2322
    %v2344 = vadd.f32 %v2342, %v2343
    %v2345 = vtanh.pop %v2344
    %v2346 = vmul.f32 %v2341, %v2345
    %s2347 = scalar_lea.vmem [#allocation4], 24
    %2348 = vst [vmem:[%s2347] sm:$0xff] %v2283
    %s2349 = scalar_lea.vmem [#allocation5], 32
    %2350 = vst [vmem:[%s2349] sm:$0xff] %v2346
    %s2351 = smul.addr %s2126, 8
    %s2352 = scalar_lea.vmem [#allocation2], %s2351
    %v2353 = vld [vmem:[%s2352] sm:$0xff]
    %v2354 = vld [vmem:[%s2352 + $0x8] sm:$0xff]
    %v2355 = vld [vmem:[%s2352 + $0x10] sm:$0xff]
    %v2356 = vld [vmem:[%s2352 + $0x18] sm:$0xff]
    %2357 = vmatpush.msra.mxu0 %v262
    %2358 = vmatpush.msra.mxu0 %v258
    %2359 = vmatpush.msra.mxu0 %v254
    %2360 = vmatpush.msra.mxu0 %v250
    %2361 = vmatpush.msra.mxu0 %v246
    %2362 = vmatpush.msra.mxu0 %v242
    %2363 = vmatpush.msra.mxu0 %v238
    %2364 = vmatpush.msra.mxu0 %v234
    %2365 = vmatpush.msra.mxu0 %v230
    %2366 = vmatpush.msra.mxu0 %v226
    %2367 = vmatpush.msra.mxu0 %v222
    %2368 = vmatpush.msra.mxu0 %v218
    %2369 = vmatpush.msra.mxu0 %v214
    %2370 = vmatpush.msra.mxu0 %v210
    %2371 = vmatpush.msra.mxu0 %v206
    %2372 = vmatpush.msra.mxu0 %v202
    %2373 = vmatmul.f32.gmra.mxu0 %v2283
    %v2374 = vpop.f32.mrf.mxu0
    %v2375 = vadd.f32 0.0, %v2374
    %2376 = vdwg.mxu0
    %2377 = vmatpush.msra.mxu0 %v263
    %2378 = vmatpush.msra.mxu0 %v259
    %2379 = vmatpush.msra.mxu0 %v255
    %2380 = vmatpush.msra.mxu0 %v251
    %2381 = vmatpush.msra.mxu0 %v247
    %2382 = vmatpush.msra.mxu0 %v243
    %2383 = vmatpush.msra.mxu0 %v239
    %2384 = vmatpush.msra.mxu0 %v235
    %2385 = vmatpush.msra.mxu0 %v231
    %2386 = vmatpush.msra.mxu0 %v227
    %2387 = vmatpush.msra.mxu0 %v223
    %2388 = vmatpush.msra.mxu0 %v219
    %2389 = vmatpush.msra.mxu0 %v215
    %2390 = vmatpush.msra.mxu0 %v211
    %2391 = vmatpush.msra.mxu0 %v207
    %2392 = vmatpush.msra.mxu0 %v203
    %2393 = vmatmul.f32.gmra.mxu0 %v2283
    %v2394 = vpop.f32.mrf.mxu0
    %v2395 = vadd.f32 0.0, %v2394
    %2396 = vdwg.mxu0
    %2397 = vmatpush.msra.mxu0 %v264
    %2398 = vmatpush.msra.mxu0 %v260
    %2399 = vmatpush.msra.mxu0 %v256
    %2400 = vmatpush.msra.mxu0 %v252
    %2401 = vmatpush.msra.mxu0 %v248
    %2402 = vmatpush.msra.mxu0 %v244
    %2403 = vmatpush.msra.mxu0 %v240
    %2404 = vmatpush.msra.mxu0 %v236
    %2405 = vmatpush.msra.mxu0 %v232
    %2406 = vmatpush.msra.mxu0 %v228
    %2407 = vmatpush.msra.mxu0 %v224
    %2408 = vmatpush.msra.mxu0 %v220
    %2409 = vmatpush.msra.mxu0 %v216
    %2410 = vmatpush.msra.mxu0 %v212
    %2411 = vmatpush.msra.mxu0 %v208
    %2412 = vmatpush.msra.mxu0 %v204
    %2413 = vmatmul.f32.gmra.mxu0 %v2283
    %v2414 = vpop.f32.mrf.mxu0
    %v2415 = vadd.f32 0.0, %v2414
    %2416 = vdwg.mxu0
    %2417 = vmatpush.msra.mxu0 %v265
    %2418 = vmatpush.msra.mxu0 %v261
    %2419 = vmatpush.msra.mxu0 %v257
    %2420 = vmatpush.msra.mxu0 %v253
    %2421 = vmatpush.msra.mxu0 %v249
    %2422 = vmatpush.msra.mxu0 %v245
    %2423 = vmatpush.msra.mxu0 %v241
    %2424 = vmatpush.msra.mxu0 %v237
    %2425 = vmatpush.msra.mxu0 %v233
    %2426 = vmatpush.msra.mxu0 %v229
    %2427 = vmatpush.msra.mxu0 %v225
    %2428 = vmatpush.msra.mxu0 %v221
    %2429 = vmatpush.msra.mxu0 %v217
    %2430 = vmatpush.msra.mxu0 %v213
    %2431 = vmatpush.msra.mxu0 %v209
    %2432 = vmatpush.msra.mxu0 %v205
    %2433 = vmatmul.f32.gmra.mxu0 %v2283
    %v2434 = vpop.f32.mrf.mxu0
    %v2435 = vadd.f32 0.0, %v2434
    %2436 = vdwg.mxu0
    %v2437 = vadd.f32 %v2353, %v2375
    %v2438 = vadd.f32 %v2354, %v2395
    %v2439 = vadd.f32 %v2355, %v2415
    %v2440 = vadd.f32 %v2356, %v2435
    %v2441 = vadd.f32 %v2437, %v1146
    %v2442 = vadd.f32 %v2438, %v1147
    %v2443 = vadd.f32 %v2439, %v1148
    %v2444 = vadd.f32 %v2440, %v1149
    %s2445 = smul.addr %s2031, 8
    %s2446 = scalar_lea.vmem [#allocation3], %s2445
    %v2447 = vld [vmem:[%s2446] sm:$0xff]
    %v2448 = vld [vmem:[%s2446 + $0x8] sm:$0xff]
    %v2449 = vld [vmem:[%s2446 + $0x10] sm:$0xff]
    %v2450 = vld [vmem:[%s2446 + $0x18] sm:$0xff]
    %2451 = vmatpush.msra.mxu0 %v327
    %2452 = vmatpush.msra.mxu0 %v323
    %2453 = vmatpush.msra.mxu0 %v319
    %2454 = vmatpush.msra.mxu0 %v315
    %2455 = vmatpush.msra.mxu0 %v311
    %2456 = vmatpush.msra.mxu0 %v307
    %2457 = vmatpush.msra.mxu0 %v303
    %2458 = vmatpush.msra.mxu0 %v299
    %2459 = vmatpush.msra.mxu0 %v295
    %2460 = vmatpush.msra.mxu0 %v291
    %2461 = vmatpush.msra.mxu0 %v287
    %2462 = vmatpush.msra.mxu0 %v283
    %2463 = vmatpush.msra.mxu0 %v279
    %2464 = vmatpush.msra.mxu0 %v275
    %2465 = vmatpush.msra.mxu0 %v271
    %2466 = vmatpush.msra.mxu0 %v267
    %2467 = vmatmul.f32.gmra.mxu0 %v2346
    %v2468 = vpop.f32.mrf.mxu0
    %v2469 = vadd.f32 0.0, %v2468
    %2470 = vdwg.mxu0
    %2471 = vmatpush.msra.mxu0 %v328
    %2472 = vmatpush.msra.mxu0 %v324
    %2473 = vmatpush.msra.mxu0 %v320
    %2474 = vmatpush.msra.mxu0 %v316
    %2475 = vmatpush.msra.mxu0 %v312
    %2476 = vmatpush.msra.mxu0 %v308
    %2477 = vmatpush.msra.mxu0 %v304
    %2478 = vmatpush.msra.mxu0 %v300
    %2479 = vmatpush.msra.mxu0 %v296
    %2480 = vmatpush.msra.mxu0 %v292
    %2481 = vmatpush.msra.mxu0 %v288
    %2482 = vmatpush.msra.mxu0 %v284
    %2483 = vmatpush.msra.mxu0 %v280
    %2484 = vmatpush.msra.mxu0 %v276
    %2485 = vmatpush.msra.mxu0 %v272
    %2486 = vmatpush.msra.mxu0 %v268
    %2487 = vmatmul.f32.gmra.mxu0 %v2346
    %v2488 = vpop.f32.mrf.mxu0
    %v2489 = vadd.f32 0.0, %v2488
    %2490 = vdwg.mxu0
    %2491 = vmatpush.msra.mxu0 %v329
    %2492 = vmatpush.msra.mxu0 %v325
    %2493 = vmatpush.msra.mxu0 %v321
    %2494 = vmatpush.msra.mxu0 %v317
    %2495 = vmatpush.msra.mxu0 %v313
    %2496 = vmatpush.msra.mxu0 %v309
    %2497 = vmatpush.msra.mxu0 %v305
    %2498 = vmatpush.msra.mxu0 %v301
    %2499 = vmatpush.msra.mxu0 %v297
    %2500 = vmatpush.msra.mxu0 %v293
    %2501 = vmatpush.msra.mxu0 %v289
    %2502 = vmatpush.msra.mxu0 %v285
    %2503 = vmatpush.msra.mxu0 %v281
    %2504 = vmatpush.msra.mxu0 %v277
    %2505 = vmatpush.msra.mxu0 %v273
    %2506 = vmatpush.msra.mxu0 %v269
    %2507 = vmatmul.f32.gmra.mxu0 %v2346
    %v2508 = vpop.f32.mrf.mxu0
    %v2509 = vadd.f32 0.0, %v2508
    %2510 = vdwg.mxu0
    %2511 = vmatpush.msra.mxu0 %v330
    %2512 = vmatpush.msra.mxu0 %v326
    %2513 = vmatpush.msra.mxu0 %v322
    %2514 = vmatpush.msra.mxu0 %v318
    %2515 = vmatpush.msra.mxu0 %v314
    %2516 = vmatpush.msra.mxu0 %v310
    %2517 = vmatpush.msra.mxu0 %v306
    %2518 = vmatpush.msra.mxu0 %v302
    %2519 = vmatpush.msra.mxu0 %v298
    %2520 = vmatpush.msra.mxu0 %v294
    %2521 = vmatpush.msra.mxu0 %v290
    %2522 = vmatpush.msra.mxu0 %v286
    %2523 = vmatpush.msra.mxu0 %v282
    %2524 = vmatpush.msra.mxu0 %v278
    %2525 = vmatpush.msra.mxu0 %v274
    %2526 = vmatpush.msra.mxu0 %v270
    %2527 = vmatmul.f32.gmra.mxu0 %v2346
    %v2528 = vpop.f32.mrf.mxu0
    %v2529 = vadd.f32 0.0, %v2528
    %2530 = vdwg.mxu0
    %v2531 = vadd.f32 %v2447, %v2469
    %v2532 = vadd.f32 %v2448, %v2489
    %v2533 = vadd.f32 %v2449, %v2509
    %v2534 = vadd.f32 %v2450, %v2529
    %v2535 = vadd.f32 %v2531, %v1250
    %v2536 = vadd.f32 %v2532, %v1251
    %v2537 = vadd.f32 %v2533, %v1252
    %v2538 = vadd.f32 %v2534, %v1253
    %v2539 = vxor.u32 %v2441, 2147483648
    %v2540 = vmul.f32 %v2539, 1.442695
    %v2541 = vpow.pop %v2540
    %v2542 = vadd.f32 %v2541, 1.0
    %v2543 = vrcp.pop %v2542
    %v2544 = vmul.f32 %v2542, %v2543
    %v2545 = vsub.f32 1.0, %v2544
    %v2546 = vmul.f32 %v2543, %v2545
    %v2547 = vadd.f32 %v2543, %v2546
    %vm2548 = vweird.f32 %v2542
    %vm2549 = vweird.f32 %v2543
    %vm2550 = vmor %vm2548, %vm2549
    %v2551 = vsel %vm2550, %v2543, %v2547
    %v2552 = vand.u32 2147483647, %v2542
    %vm2553 = vcmp.eq.f32.partialorder %v2552, 8.507059e+37
    %v2554 = vand.u32 %v2542, 2147483648
    %v2555 = vor.u32 1.1754944e-38, %v2554
    %v2556 = vsel %vm2553, %v2555, %v2551
    %v2557 = vmul.f32 1.0, %v2556
    %v2558 = vxor.u32 %v2442, 2147483648
    %v2559 = vmul.f32 %v2558, 1.442695
    %v2560 = vpow.pop %v2559
    %v2561 = vadd.f32 %v2560, 1.0
    %v2562 = vrcp.pop %v2561
    %v2563 = vmul.f32 %v2561, %v2562
    %v2564 = vsub.f32 1.0, %v2563
    %v2565 = vmul.f32 %v2562, %v2564
    %v2566 = vadd.f32 %v2562, %v2565
    %vm2567 = vweird.f32 %v2561
    %vm2568 = vweird.f32 %v2562
    %vm2569 = vmor %vm2567, %vm2568
    %v2570 = vsel %vm2569, %v2562, %v2566
    %v2571 = vand.u32 2147483647, %v2561
    %vm2572 = vcmp.eq.f32.partialorder %v2571, 8.507059e+37
    %v2573 = vand.u32 %v2561, 2147483648
    %v2574 = vor.u32 1.1754944e-38, %v2573
    %v2575 = vsel %vm2572, %v2574, %v2570
    %v2576 = vmul.f32 1.0, %v2575
    %v2577 = vtanh.pop %v2443
    %v2578 = vxor.u32 %v2444, 2147483648
    %v2579 = vmul.f32 %v2578, 1.442695
    %v2580 = vpow.pop %v2579
    %v2581 = vadd.f32 %v2580, 1.0
    %v2582 = vrcp.pop %v2581
    %v2583 = vmul.f32 %v2581, %v2582
    %v2584 = vsub.f32 1.0, %v2583
    %v2585 = vmul.f32 %v2582, %v2584
    %v2586 = vadd.f32 %v2582, %v2585
    %vm2587 = vweird.f32 %v2581
    %vm2588 = vweird.f32 %v2582
    %vm2589 = vmor %vm2587, %vm2588
    %v2590 = vsel %vm2589, %v2582, %v2586
    %v2591 = vand.u32 2147483647, %v2581
    %vm2592 = vcmp.eq.f32.partialorder %v2591, 8.507059e+37
    %v2593 = vand.u32 %v2581, 2147483648
    %v2594 = vor.u32 1.1754944e-38, %v2593
    %v2595 = vsel %vm2592, %v2594, %v2590
    %v2596 = vmul.f32 1.0, %v2595
    %v2597 = vmul.f32 %v2576, %v2281
    %v2598 = vmul.f32 %v2557, %v2577
    %v2599 = vadd.f32 %v2597, %v2598
    %v2600 = vtanh.pop %v2599
    %v2601 = vmul.f32 %v2596, %v2600
    %v2602 = vxor.u32 %v2535, 2147483648
    %v2603 = vmul.f32 %v2602, 1.442695
    %v2604 = vpow.pop %v2603
    %v2605 = vadd.f32 %v2604, 1.0
    %v2606 = vrcp.pop %v2605
    %v2607 = vmul.f32 %v2605, %v2606
    %v2608 = vsub.f32 1.0, %v2607
    %v2609 = vmul.f32 %v2606, %v2608
    %v2610 = vadd.f32 %v2606, %v2609
    %vm2611 = vweird.f32 %v2605
    %vm2612 = vweird.f32 %v2606
    %vm2613 = vmor %vm2611, %vm2612
    %v2614 = vsel %vm2613, %v2606, %v2610
    %v2615 = vand.u32 2147483647, %v2605
    %vm2616 = vcmp.eq.f32.partialorder %v2615, 8.507059e+37
    %v2617 = vand.u32 %v2605, 2147483648
    %v2618 = vor.u32 1.1754944e-38, %v2617
    %v2619 = vsel %vm2616, %v2618, %v2614
    %v2620 = vmul.f32 1.0, %v2619
    %v2621 = vxor.u32 %v2536, 2147483648
    %v2622 = vmul.f32 %v2621, 1.442695
    %v2623 = vpow.pop %v2622
    %v2624 = vadd.f32 %v2623, 1.0
    %v2625 = vrcp.pop %v2624
    %v2626 = vmul.f32 %v2624, %v2625
    %v2627 = vsub.f32 1.0, %v2626
    %v2628 = vmul.f32 %v2625, %v2627
    %v2629 = vadd.f32 %v2625, %v2628
    %vm2630 = vweird.f32 %v2624
    %vm2631 = vweird.f32 %v2625
    %vm2632 = vmor %vm2630, %vm2631
    %v2633 = vsel %vm2632, %v2625, %v2629
    %v2634 = vand.u32 2147483647, %v2624
    %vm2635 = vcmp.eq.f32.partialorder %v2634, 8.507059e+37
    %v2636 = vand.u32 %v2624, 2147483648
    %v2637 = vor.u32 1.1754944e-38, %v2636
    %v2638 = vsel %vm2635, %v2637, %v2633
    %v2639 = vmul.f32 1.0, %v2638
    %v2640 = vtanh.pop %v2537
    %v2641 = vxor.u32 %v2538, 2147483648
    %v2642 = vmul.f32 %v2641, 1.442695
    %v2643 = vpow.pop %v2642
    %v2644 = vadd.f32 %v2643, 1.0
    %v2645 = vrcp.pop %v2644
    %v2646 = vmul.f32 %v2644, %v2645
    %v2647 = vsub.f32 1.0, %v2646
    %v2648 = vmul.f32 %v2645, %v2647
    %v2649 = vadd.f32 %v2645, %v2648
    %vm2650 = vweird.f32 %v2644
    %vm2651 = vweird.f32 %v2645
    %vm2652 = vmor %vm2650, %vm2651
    %v2653 = vsel %vm2652, %v2645, %v2649
    %v2654 = vand.u32 2147483647, %v2644
    %vm2655 = vcmp.eq.f32.partialorder %v2654, 8.507059e+37
    %v2656 = vand.u32 %v2644, 2147483648
    %v2657 = vor.u32 1.1754944e-38, %v2656
    %v2658 = vsel %vm2655, %v2657, %v2653
    %v2659 = vmul.f32 1.0, %v2658
    %v2660 = vmul.f32 %v2639, %v2344
    %v2661 = vmul.f32 %v2620, %v2640
    %v2662 = vadd.f32 %v2660, %v2661
    %v2663 = vtanh.pop %v2662
    %v2664 = vmul.f32 %v2659, %v2663
    %s2665 = scalar_lea.vmem [#allocation4], 32
    %2666 = vst [vmem:[%s2665] sm:$0xff] %v2601
    %s2667 = scalar_lea.vmem [#allocation5], 24
    %2668 = vst [vmem:[%s2667] sm:$0xff] %v2664
    %s2669 = smul.addr %s1806, 8
    %s2670 = scalar_lea.vmem [#allocation2], %s2669
    %v2671 = vld [vmem:[%s2670] sm:$0xff]
    %v2672 = vld [vmem:[%s2670 + $0x8] sm:$0xff]
    %v2673 = vld [vmem:[%s2670 + $0x10] sm:$0xff]
    %v2674 = vld [vmem:[%s2670 + $0x18] sm:$0xff]
    %2675 = vmatpush.msra.mxu0 %v262
    %2676 = vmatpush.msra.mxu0 %v258
    %2677 = vmatpush.msra.mxu0 %v254
    %2678 = vmatpush.msra.mxu0 %v250
    %2679 = vmatpush.msra.mxu0 %v246
    %2680 = vmatpush.msra.mxu0 %v242
    %2681 = vmatpush.msra.mxu0 %v238
    %2682 = vmatpush.msra.mxu0 %v234
    %2683 = vmatpush.msra.mxu0 %v230
    %2684 = vmatpush.msra.mxu0 %v226
    %2685 = vmatpush.msra.mxu0 %v222
    %2686 = vmatpush.msra.mxu0 %v218
    %2687 = vmatpush.msra.mxu0 %v214
    %2688 = vmatpush.msra.mxu0 %v210
    %2689 = vmatpush.msra.mxu0 %v206
    %2690 = vmatpush.msra.mxu0 %v202
    %2691 = vmatmul.f32.gmra.mxu0 %v2601
    %v2692 = vpop.f32.mrf.mxu0
    %v2693 = vadd.f32 0.0, %v2692
    %2694 = vdwg.mxu0
    %2695 = vmatpush.msra.mxu0 %v263
    %2696 = vmatpush.msra.mxu0 %v259
    %2697 = vmatpush.msra.mxu0 %v255
    %2698 = vmatpush.msra.mxu0 %v251
    %2699 = vmatpush.msra.mxu0 %v247
    %2700 = vmatpush.msra.mxu0 %v243
    %2701 = vmatpush.msra.mxu0 %v239
    %2702 = vmatpush.msra.mxu0 %v235
    %2703 = vmatpush.msra.mxu0 %v231
    %2704 = vmatpush.msra.mxu0 %v227
    %2705 = vmatpush.msra.mxu0 %v223
    %2706 = vmatpush.msra.mxu0 %v219
    %2707 = vmatpush.msra.mxu0 %v215
    %2708 = vmatpush.msra.mxu0 %v211
    %2709 = vmatpush.msra.mxu0 %v207
    %2710 = vmatpush.msra.mxu0 %v203
    %2711 = vmatmul.f32.gmra.mxu0 %v2601
    %v2712 = vpop.f32.mrf.mxu0
    %v2713 = vadd.f32 0.0, %v2712
    %2714 = vdwg.mxu0
    %2715 = vmatpush.msra.mxu0 %v264
    %2716 = vmatpush.msra.mxu0 %v260
    %2717 = vmatpush.msra.mxu0 %v256
    %2718 = vmatpush.msra.mxu0 %v252
    %2719 = vmatpush.msra.mxu0 %v248
    %2720 = vmatpush.msra.mxu0 %v244
    %2721 = vmatpush.msra.mxu0 %v240
    %2722 = vmatpush.msra.mxu0 %v236
    %2723 = vmatpush.msra.mxu0 %v232
    %2724 = vmatpush.msra.mxu0 %v228
    %2725 = vmatpush.msra.mxu0 %v224
    %2726 = vmatpush.msra.mxu0 %v220
    %2727 = vmatpush.msra.mxu0 %v216
    %2728 = vmatpush.msra.mxu0 %v212
    %2729 = vmatpush.msra.mxu0 %v208
    %2730 = vmatpush.msra.mxu0 %v204
    %2731 = vmatmul.f32.gmra.mxu0 %v2601
    %v2732 = vpop.f32.mrf.mxu0
    %v2733 = vadd.f32 0.0, %v2732
    %2734 = vdwg.mxu0
    %2735 = vmatpush.msra.mxu0 %v265
    %2736 = vmatpush.msra.mxu0 %v261
    %2737 = vmatpush.msra.mxu0 %v257
    %2738 = vmatpush.msra.mxu0 %v253
    %2739 = vmatpush.msra.mxu0 %v249
    %2740 = vmatpush.msra.mxu0 %v245
    %2741 = vmatpush.msra.mxu0 %v241
    %2742 = vmatpush.msra.mxu0 %v237
    %2743 = vmatpush.msra.mxu0 %v233
    %2744 = vmatpush.msra.mxu0 %v229
    %2745 = vmatpush.msra.mxu0 %v225
    %2746 = vmatpush.msra.mxu0 %v221
    %2747 = vmatpush.msra.mxu0 %v217
    %2748 = vmatpush.msra.mxu0 %v213
    %2749 = vmatpush.msra.mxu0 %v209
    %2750 = vmatpush.msra.mxu0 %v205
    %2751 = vmatmul.f32.gmra.mxu0 %v2601
    %v2752 = vpop.f32.mrf.mxu0
    %v2753 = vadd.f32 0.0, %v2752
    %2754 = vdwg.mxu0
    %v2755 = vadd.f32 %v2671, %v2693
    %v2756 = vadd.f32 %v2672, %v2713
    %v2757 = vadd.f32 %v2673, %v2733
    %v2758 = vadd.f32 %v2674, %v2753
    %v2759 = vadd.f32 %v2755, %v1146
    %v2760 = vadd.f32 %v2756, %v1147
    %v2761 = vadd.f32 %v2757, %v1148
    %v2762 = vadd.f32 %v2758, %v1149
    %s2763 = smul.addr %s1711, 8
    %s2764 = scalar_lea.vmem [#allocation3], %s2763
    %v2765 = vld [vmem:[%s2764] sm:$0xff]
    %v2766 = vld [vmem:[%s2764 + $0x8] sm:$0xff]
    %v2767 = vld [vmem:[%s2764 + $0x10] sm:$0xff]
    %v2768 = vld [vmem:[%s2764 + $0x18] sm:$0xff]
    %2769 = vmatpush.msra.mxu0 %v327
    %2770 = vmatpush.msra.mxu0 %v323
    %2771 = vmatpush.msra.mxu0 %v319
    %2772 = vmatpush.msra.mxu0 %v315
    %2773 = vmatpush.msra.mxu0 %v311
    %2774 = vmatpush.msra.mxu0 %v307
    %2775 = vmatpush.msra.mxu0 %v303
    %2776 = vmatpush.msra.mxu0 %v299
    %2777 = vmatpush.msra.mxu0 %v295
    %2778 = vmatpush.msra.mxu0 %v291
    %2779 = vmatpush.msra.mxu0 %v287
    %2780 = vmatpush.msra.mxu0 %v283
    %2781 = vmatpush.msra.mxu0 %v279
    %2782 = vmatpush.msra.mxu0 %v275
    %2783 = vmatpush.msra.mxu0 %v271
    %2784 = vmatpush.msra.mxu0 %v267
    %2785 = vmatmul.f32.gmra.mxu0 %v2664
    %v2786 = vpop.f32.mrf.mxu0
    %v2787 = vadd.f32 0.0, %v2786
    %2788 = vdwg.mxu0
    %2789 = vmatpush.msra.mxu0 %v328
    %2790 = vmatpush.msra.mxu0 %v324
    %2791 = vmatpush.msra.mxu0 %v320
    %2792 = vmatpush.msra.mxu0 %v316
    %2793 = vmatpush.msra.mxu0 %v312
    %2794 = vmatpush.msra.mxu0 %v308
    %2795 = vmatpush.msra.mxu0 %v304
    %2796 = vmatpush.msra.mxu0 %v300
    %2797 = vmatpush.msra.mxu0 %v296
    %2798 = vmatpush.msra.mxu0 %v292
    %2799 = vmatpush.msra.mxu0 %v288
    %2800 = vmatpush.msra.mxu0 %v284
    %2801 = vmatpush.msra.mxu0 %v280
    %2802 = vmatpush.msra.mxu0 %v276
    %2803 = vmatpush.msra.mxu0 %v272
    %2804 = vmatpush.msra.mxu0 %v268
    %2805 = vmatmul.f32.gmra.mxu0 %v2664
    %v2806 = vpop.f32.mrf.mxu0
    %v2807 = vadd.f32 0.0, %v2806
    %2808 = vdwg.mxu0
    %2809 = vmatpush.msra.mxu0 %v329
    %2810 = vmatpush.msra.mxu0 %v325
    %2811 = vmatpush.msra.mxu0 %v321
    %2812 = vmatpush.msra.mxu0 %v317
    %2813 = vmatpush.msra.mxu0 %v313
    %2814 = vmatpush.msra.mxu0 %v309
    %2815 = vmatpush.msra.mxu0 %v305
    %2816 = vmatpush.msra.mxu0 %v301
    %2817 = vmatpush.msra.mxu0 %v297
    %2818 = vmatpush.msra.mxu0 %v293
    %2819 = vmatpush.msra.mxu0 %v289
    %2820 = vmatpush.msra.mxu0 %v285
    %2821 = vmatpush.msra.mxu0 %v281
    %2822 = vmatpush.msra.mxu0 %v277
    %2823 = vmatpush.msra.mxu0 %v273
    %2824 = vmatpush.msra.mxu0 %v269
    %2825 = vmatmul.f32.gmra.mxu0 %v2664
    %v2826 = vpop.f32.mrf.mxu0
    %v2827 = vadd.f32 0.0, %v2826
    %2828 = vdwg.mxu0
    %2829 = vmatpush.msra.mxu0 %v330
    %2830 = vmatpush.msra.mxu0 %v326
    %2831 = vmatpush.msra.mxu0 %v322
    %2832 = vmatpush.msra.mxu0 %v318
    %2833 = vmatpush.msra.mxu0 %v314
    %2834 = vmatpush.msra.mxu0 %v310
    %2835 = vmatpush.msra.mxu0 %v306
    %2836 = vmatpush.msra.mxu0 %v302
    %2837 = vmatpush.msra.mxu0 %v298
    %2838 = vmatpush.msra.mxu0 %v294
    %2839 = vmatpush.msra.mxu0 %v290
    %2840 = vmatpush.msra.mxu0 %v286
    %2841 = vmatpush.msra.mxu0 %v282
    %2842 = vmatpush.msra.mxu0 %v278
    %2843 = vmatpush.msra.mxu0 %v274
    %2844 = vmatpush.msra.mxu0 %v270
    %2845 = vmatmul.f32.gmra.mxu0 %v2664
    %v2846 = vpop.f32.mrf.mxu0
    %v2847 = vadd.f32 0.0, %v2846
    %2848 = vdwg.mxu0
    %v2849 = vadd.f32 %v2765, %v2787
    %v2850 = vadd.f32 %v2766, %v2807
    %v2851 = vadd.f32 %v2767, %v2827
    %v2852 = vadd.f32 %v2768, %v2847
    %v2853 = vadd.f32 %v2849, %v1250
    %v2854 = vadd.f32 %v2850, %v1251
    %v2855 = vadd.f32 %v2851, %v1252
    %v2856 = vadd.f32 %v2852, %v1253
    %v2857 = vxor.u32 %v2759, 2147483648
    %v2858 = vmul.f32 %v2857, 1.442695
    %v2859 = vpow.pop %v2858
    %v2860 = vadd.f32 %v2859, 1.0
    %v2861 = vrcp.pop %v2860
    %v2862 = vmul.f32 %v2860, %v2861
    %v2863 = vsub.f32 1.0, %v2862
    %v2864 = vmul.f32 %v2861, %v2863
    %v2865 = vadd.f32 %v2861, %v2864
    %vm2866 = vweird.f32 %v2860
    %vm2867 = vweird.f32 %v2861
    %vm2868 = vmor %vm2866, %vm2867
    %v2869 = vsel %vm2868, %v2861, %v2865
    %v2870 = vand.u32 2147483647, %v2860
    %vm2871 = vcmp.eq.f32.partialorder %v2870, 8.507059e+37
    %v2872 = vand.u32 %v2860, 2147483648
    %v2873 = vor.u32 1.1754944e-38, %v2872
    %v2874 = vsel %vm2871, %v2873, %v2869
    %v2875 = vmul.f32 1.0, %v2874
    %v2876 = vxor.u32 %v2760, 2147483648
    %v2877 = vmul.f32 %v2876, 1.442695
    %v2878 = vpow.pop %v2877
    %v2879 = vadd.f32 %v2878, 1.0
    %v2880 = vrcp.pop %v2879
    %v2881 = vmul.f32 %v2879, %v2880
    %v2882 = vsub.f32 1.0, %v2881
    %v2883 = vmul.f32 %v2880, %v2882
    %v2884 = vadd.f32 %v2880, %v2883
    %vm2885 = vweird.f32 %v2879
    %vm2886 = vweird.f32 %v2880
    %vm2887 = vmor %vm2885, %vm2886
    %v2888 = vsel %vm2887, %v2880, %v2884
    %v2889 = vand.u32 2147483647, %v2879
    %vm2890 = vcmp.eq.f32.partialorder %v2889, 8.507059e+37
    %v2891 = vand.u32 %v2879, 2147483648
    %v2892 = vor.u32 1.1754944e-38, %v2891
    %v2893 = vsel %vm2890, %v2892, %v2888
    %v2894 = vmul.f32 1.0, %v2893
    %v2895 = vtanh.pop %v2761
    %v2896 = vxor.u32 %v2762, 2147483648
    %v2897 = vmul.f32 %v2896, 1.442695
    %v2898 = vpow.pop %v2897
    %v2899 = vadd.f32 %v2898, 1.0
    %v2900 = vrcp.pop %v2899
    %v2901 = vmul.f32 %v2899, %v2900
    %v2902 = vsub.f32 1.0, %v2901
    %v2903 = vmul.f32 %v2900, %v2902
    %v2904 = vadd.f32 %v2900, %v2903
    %vm2905 = vweird.f32 %v2899
    %vm2906 = vweird.f32 %v2900
    %vm2907 = vmor %vm2905, %vm2906
    %v2908 = vsel %vm2907, %v2900, %v2904
    %v2909 = vand.u32 2147483647, %v2899
    %vm2910 = vcmp.eq.f32.partialorder %v2909, 8.507059e+37
    %v2911 = vand.u32 %v2899, 2147483648
    %v2912 = vor.u32 1.1754944e-38, %v2911
    %v2913 = vsel %vm2910, %v2912, %v2908
    %v2914 = vmul.f32 1.0, %v2913
    %v2915 = vmul.f32 %v2894, %v2599
    %v2916 = vmul.f32 %v2875, %v2895
    %v2917 = vadd.f32 %v2915, %v2916
    %v2918 = vtanh.pop %v2917
    %v2919 = vmul.f32 %v2914, %v2918
    %v2920 = vxor.u32 %v2853, 2147483648
    %v2921 = vmul.f32 %v2920, 1.442695
    %v2922 = vpow.pop %v2921
    %v2923 = vadd.f32 %v2922, 1.0
    %v2924 = vrcp.pop %v2923
    %v2925 = vmul.f32 %v2923, %v2924
    %v2926 = vsub.f32 1.0, %v2925
    %v2927 = vmul.f32 %v2924, %v2926
    %v2928 = vadd.f32 %v2924, %v2927
    %vm2929 = vweird.f32 %v2923
    %vm2930 = vweird.f32 %v2924
    %vm2931 = vmor %vm2929, %vm2930
    %v2932 = vsel %vm2931, %v2924, %v2928
    %v2933 = vand.u32 2147483647, %v2923
    %vm2934 = vcmp.eq.f32.partialorder %v2933, 8.507059e+37
    %v2935 = vand.u32 %v2923, 2147483648
    %v2936 = vor.u32 1.1754944e-38, %v2935
    %v2937 = vsel %vm2934, %v2936, %v2932
    %v2938 = vmul.f32 1.0, %v2937
    %v2939 = vxor.u32 %v2854, 2147483648
    %v2940 = vmul.f32 %v2939, 1.442695
    %v2941 = vpow.pop %v2940
    %v2942 = vadd.f32 %v2941, 1.0
    %v2943 = vrcp.pop %v2942
    %v2944 = vmul.f32 %v2942, %v2943
    %v2945 = vsub.f32 1.0, %v2944
    %v2946 = vmul.f32 %v2943, %v2945
    %v2947 = vadd.f32 %v2943, %v2946
    %vm2948 = vweird.f32 %v2942
    %vm2949 = vweird.f32 %v2943
    %vm2950 = vmor %vm2948, %vm2949
    %v2951 = vsel %vm2950, %v2943, %v2947
    %v2952 = vand.u32 2147483647, %v2942
    %vm2953 = vcmp.eq.f32.partialorder %v2952, 8.507059e+37
    %v2954 = vand.u32 %v2942, 2147483648
    %v2955 = vor.u32 1.1754944e-38, %v2954
    %v2956 = vsel %vm2953, %v2955, %v2951
    %v2957 = vmul.f32 1.0, %v2956
    %v2958 = vtanh.pop %v2855
    %v2959 = vxor.u32 %v2856, 2147483648
    %v2960 = vmul.f32 %v2959, 1.442695
    %v2961 = vpow.pop %v2960
    %v2962 = vadd.f32 %v2961, 1.0
    %v2963 = vrcp.pop %v2962
    %v2964 = vmul.f32 %v2962, %v2963
    %v2965 = vsub.f32 1.0, %v2964
    %v2966 = vmul.f32 %v2963, %v2965
    %v2967 = vadd.f32 %v2963, %v2966
    %vm2968 = vweird.f32 %v2962
    %vm2969 = vweird.f32 %v2963
    %vm2970 = vmor %vm2968, %vm2969
    %v2971 = vsel %vm2970, %v2963, %v2967
    %v2972 = vand.u32 2147483647, %v2962
    %vm2973 = vcmp.eq.f32.partialorder %v2972, 8.507059e+37
    %v2974 = vand.u32 %v2962, 2147483648
    %v2975 = vor.u32 1.1754944e-38, %v2974
    %v2976 = vsel %vm2973, %v2975, %v2971
    %v2977 = vmul.f32 1.0, %v2976
    %v2978 = vmul.f32 %v2957, %v2662
    %v2979 = vmul.f32 %v2938, %v2958
    %v2980 = vadd.f32 %v2978, %v2979
    %v2981 = vtanh.pop %v2980
    %v2982 = vmul.f32 %v2977, %v2981
    %s2983 = scalar_lea.vmem [#allocation4], 40
    %2984 = vst [vmem:[%s2983] sm:$0xff] %v2919
    %s2985 = scalar_lea.vmem [#allocation5], 16
    %2986 = vst [vmem:[%s2985] sm:$0xff] %v2982
    %s2987 = smul.addr %s1486, 8
    %s2988 = scalar_lea.vmem [#allocation2], %s2987
    %v2989 = vld [vmem:[%s2988] sm:$0xff]
    %v2990 = vld [vmem:[%s2988 + $0x8] sm:$0xff]
    %v2991 = vld [vmem:[%s2988 + $0x10] sm:$0xff]
    %v2992 = vld [vmem:[%s2988 + $0x18] sm:$0xff]
    %2993 = vmatpush.msra.mxu0 %v262
    %2994 = vmatpush.msra.mxu0 %v258
    %2995 = vmatpush.msra.mxu0 %v254
    %2996 = vmatpush.msra.mxu0 %v250
    %2997 = vmatpush.msra.mxu0 %v246
    %2998 = vmatpush.msra.mxu0 %v242
    %2999 = vmatpush.msra.mxu0 %v238
    %3000 = vmatpush.msra.mxu0 %v234
    %3001 = vmatpush.msra.mxu0 %v230
    %3002 = vmatpush.msra.mxu0 %v226
    %3003 = vmatpush.msra.mxu0 %v222
    %3004 = vmatpush.msra.mxu0 %v218
    %3005 = vmatpush.msra.mxu0 %v214
    %3006 = vmatpush.msra.mxu0 %v210
    %3007 = vmatpush.msra.mxu0 %v206
    %3008 = vmatpush.msra.mxu0 %v202
    %3009 = vmatmul.f32.gmra.mxu0 %v2919
    %v3010 = vpop.f32.mrf.mxu0
    %v3011 = vadd.f32 0.0, %v3010
    %3012 = vdwg.mxu0
    %3013 = vmatpush.msra.mxu0 %v263
    %3014 = vmatpush.msra.mxu0 %v259
    %3015 = vmatpush.msra.mxu0 %v255
    %3016 = vmatpush.msra.mxu0 %v251
    %3017 = vmatpush.msra.mxu0 %v247
    %3018 = vmatpush.msra.mxu0 %v243
    %3019 = vmatpush.msra.mxu0 %v239
    %3020 = vmatpush.msra.mxu0 %v235
    %3021 = vmatpush.msra.mxu0 %v231
    %3022 = vmatpush.msra.mxu0 %v227
    %3023 = vmatpush.msra.mxu0 %v223
    %3024 = vmatpush.msra.mxu0 %v219
    %3025 = vmatpush.msra.mxu0 %v215
    %3026 = vmatpush.msra.mxu0 %v211
    %3027 = vmatpush.msra.mxu0 %v207
    %3028 = vmatpush.msra.mxu0 %v203
    %3029 = vmatmul.f32.gmra.mxu0 %v2919
    %v3030 = vpop.f32.mrf.mxu0
    %v3031 = vadd.f32 0.0, %v3030
    %3032 = vdwg.mxu0
    %3033 = vmatpush.msra.mxu0 %v264
    %3034 = vmatpush.msra.mxu0 %v260
    %3035 = vmatpush.msra.mxu0 %v256
    %3036 = vmatpush.msra.mxu0 %v252
    %3037 = vmatpush.msra.mxu0 %v248
    %3038 = vmatpush.msra.mxu0 %v244
    %3039 = vmatpush.msra.mxu0 %v240
    %3040 = vmatpush.msra.mxu0 %v236
    %3041 = vmatpush.msra.mxu0 %v232
    %3042 = vmatpush.msra.mxu0 %v228
    %3043 = vmatpush.msra.mxu0 %v224
    %3044 = vmatpush.msra.mxu0 %v220
    %3045 = vmatpush.msra.mxu0 %v216
    %3046 = vmatpush.msra.mxu0 %v212
    %3047 = vmatpush.msra.mxu0 %v208
    %3048 = vmatpush.msra.mxu0 %v204
    %3049 = vmatmul.f32.gmra.mxu0 %v2919
    %v3050 = vpop.f32.mrf.mxu0
    %v3051 = vadd.f32 0.0, %v3050
    %3052 = vdwg.mxu0
    %3053 = vmatpush.msra.mxu0 %v265
    %3054 = vmatpush.msra.mxu0 %v261
    %3055 = vmatpush.msra.mxu0 %v257
    %3056 = vmatpush.msra.mxu0 %v253
    %3057 = vmatpush.msra.mxu0 %v249
    %3058 = vmatpush.msra.mxu0 %v245
    %3059 = vmatpush.msra.mxu0 %v241
    %3060 = vmatpush.msra.mxu0 %v237
    %3061 = vmatpush.msra.mxu0 %v233
    %3062 = vmatpush.msra.mxu0 %v229
    %3063 = vmatpush.msra.mxu0 %v225
    %3064 = vmatpush.msra.mxu0 %v221
    %3065 = vmatpush.msra.mxu0 %v217
    %3066 = vmatpush.msra.mxu0 %v213
    %3067 = vmatpush.msra.mxu0 %v209
    %3068 = vmatpush.msra.mxu0 %v205
    %3069 = vmatmul.f32.gmra.mxu0 %v2919
    %v3070 = vpop.f32.mrf.mxu0
    %v3071 = vadd.f32 0.0, %v3070
    %3072 = vdwg.mxu0
    %v3073 = vadd.f32 %v2989, %v3011
    %v3074 = vadd.f32 %v2990, %v3031
    %v3075 = vadd.f32 %v2991, %v3051
    %v3076 = vadd.f32 %v2992, %v3071
    %v3077 = vadd.f32 %v3073, %v1146
    %v3078 = vadd.f32 %v3074, %v1147
    %v3079 = vadd.f32 %v3075, %v1148
    %v3080 = vadd.f32 %v3076, %v1149
    %s3081 = smul.addr %s1391, 8
    %s3082 = scalar_lea.vmem [#allocation3], %s3081
    %v3083 = vld [vmem:[%s3082] sm:$0xff]
    %v3084 = vld [vmem:[%s3082 + $0x8] sm:$0xff]
    %v3085 = vld [vmem:[%s3082 + $0x10] sm:$0xff]
    %v3086 = vld [vmem:[%s3082 + $0x18] sm:$0xff]
    %3087 = vmatpush.msra.mxu0 %v327
    %3088 = vmatpush.msra.mxu0 %v323
    %3089 = vmatpush.msra.mxu0 %v319
    %3090 = vmatpush.msra.mxu0 %v315
    %3091 = vmatpush.msra.mxu0 %v311
    %3092 = vmatpush.msra.mxu0 %v307
    %3093 = vmatpush.msra.mxu0 %v303
    %3094 = vmatpush.msra.mxu0 %v299
    %3095 = vmatpush.msra.mxu0 %v295
    %3096 = vmatpush.msra.mxu0 %v291
    %3097 = vmatpush.msra.mxu0 %v287
    %3098 = vmatpush.msra.mxu0 %v283
    %3099 = vmatpush.msra.mxu0 %v279
    %3100 = vmatpush.msra.mxu0 %v275
    %3101 = vmatpush.msra.mxu0 %v271
    %3102 = vmatpush.msra.mxu0 %v267
    %3103 = vmatmul.f32.gmra.mxu0 %v2982
    %v3104 = vpop.f32.mrf.mxu0
    %v3105 = vadd.f32 0.0, %v3104
    %3106 = vdwg.mxu0
    %3107 = vmatpush.msra.mxu0 %v328
    %3108 = vmatpush.msra.mxu0 %v324
    %3109 = vmatpush.msra.mxu0 %v320
    %3110 = vmatpush.msra.mxu0 %v316
    %3111 = vmatpush.msra.mxu0 %v312
    %3112 = vmatpush.msra.mxu0 %v308
    %3113 = vmatpush.msra.mxu0 %v304
    %3114 = vmatpush.msra.mxu0 %v300
    %3115 = vmatpush.msra.mxu0 %v296
    %3116 = vmatpush.msra.mxu0 %v292
    %3117 = vmatpush.msra.mxu0 %v288
    %3118 = vmatpush.msra.mxu0 %v284
    %3119 = vmatpush.msra.mxu0 %v280
    %3120 = vmatpush.msra.mxu0 %v276
    %3121 = vmatpush.msra.mxu0 %v272
    %3122 = vmatpush.msra.mxu0 %v268
    %3123 = vmatmul.f32.gmra.mxu0 %v2982
    %v3124 = vpop.f32.mrf.mxu0
    %v3125 = vadd.f32 0.0, %v3124
    %3126 = vdwg.mxu0
    %3127 = vmatpush.msra.mxu0 %v329
    %3128 = vmatpush.msra.mxu0 %v325
    %3129 = vmatpush.msra.mxu0 %v321
    %3130 = vmatpush.msra.mxu0 %v317
    %3131 = vmatpush.msra.mxu0 %v313
    %3132 = vmatpush.msra.mxu0 %v309
    %3133 = vmatpush.msra.mxu0 %v305
    %3134 = vmatpush.msra.mxu0 %v301
    %3135 = vmatpush.msra.mxu0 %v297
    %3136 = vmatpush.msra.mxu0 %v293
    %3137 = vmatpush.msra.mxu0 %v289
    %3138 = vmatpush.msra.mxu0 %v285
    %3139 = vmatpush.msra.mxu0 %v281
    %3140 = vmatpush.msra.mxu0 %v277
    %3141 = vmatpush.msra.mxu0 %v273
    %3142 = vmatpush.msra.mxu0 %v269
    %3143 = vmatmul.f32.gmra.mxu0 %v2982
    %v3144 = vpop.f32.mrf.mxu0
    %v3145 = vadd.f32 0.0, %v3144
    %3146 = vdwg.mxu0
    %3147 = vmatpush.msra.mxu0 %v330
    %3148 = vmatpush.msra.mxu0 %v326
    %3149 = vmatpush.msra.mxu0 %v322
    %3150 = vmatpush.msra.mxu0 %v318
    %3151 = vmatpush.msra.mxu0 %v314
    %3152 = vmatpush.msra.mxu0 %v310
    %3153 = vmatpush.msra.mxu0 %v306
    %3154 = vmatpush.msra.mxu0 %v302
    %3155 = vmatpush.msra.mxu0 %v298
    %3156 = vmatpush.msra.mxu0 %v294
    %3157 = vmatpush.msra.mxu0 %v290
    %3158 = vmatpush.msra.mxu0 %v286
    %3159 = vmatpush.msra.mxu0 %v282
    %3160 = vmatpush.msra.mxu0 %v278
    %3161 = vmatpush.msra.mxu0 %v274
    %3162 = vmatpush.msra.mxu0 %v270
    %3163 = vmatmul.f32.gmra.mxu0 %v2982
    %v3164 = vpop.f32.mrf.mxu0
    %v3165 = vadd.f32 0.0, %v3164
    %3166 = vdwg.mxu0
    %v3167 = vadd.f32 %v3083, %v3105
    %v3168 = vadd.f32 %v3084, %v3125
    %v3169 = vadd.f32 %v3085, %v3145
    %v3170 = vadd.f32 %v3086, %v3165
    %v3171 = vadd.f32 %v3167, %v1250
    %v3172 = vadd.f32 %v3168, %v1251
    %v3173 = vadd.f32 %v3169, %v1252
    %v3174 = vadd.f32 %v3170, %v1253
    %v3175 = vxor.u32 %v3077, 2147483648
    %v3176 = vmul.f32 %v3175, 1.442695
    %v3177 = vpow.pop %v3176
    %v3178 = vadd.f32 %v3177, 1.0
    %v3179 = vrcp.pop %v3178
    %v3180 = vmul.f32 %v3178, %v3179
    %v3181 = vsub.f32 1.0, %v3180
    %v3182 = vmul.f32 %v3179, %v3181
    %v3183 = vadd.f32 %v3179, %v3182
    %vm3184 = vweird.f32 %v3178
    %vm3185 = vweird.f32 %v3179
    %vm3186 = vmor %vm3184, %vm3185
    %v3187 = vsel %vm3186, %v3179, %v3183
    %v3188 = vand.u32 2147483647, %v3178
    %vm3189 = vcmp.eq.f32.partialorder %v3188, 8.507059e+37
    %v3190 = vand.u32 %v3178, 2147483648
    %v3191 = vor.u32 1.1754944e-38, %v3190
    %v3192 = vsel %vm3189, %v3191, %v3187
    %v3193 = vmul.f32 1.0, %v3192
    %v3194 = vxor.u32 %v3078, 2147483648
    %v3195 = vmul.f32 %v3194, 1.442695
    %v3196 = vpow.pop %v3195
    %v3197 = vadd.f32 %v3196, 1.0
    %v3198 = vrcp.pop %v3197
    %v3199 = vmul.f32 %v3197, %v3198
    %v3200 = vsub.f32 1.0, %v3199
    %v3201 = vmul.f32 %v3198, %v3200
    %v3202 = vadd.f32 %v3198, %v3201
    %vm3203 = vweird.f32 %v3197
    %vm3204 = vweird.f32 %v3198
    %vm3205 = vmor %vm3203, %vm3204
    %v3206 = vsel %vm3205, %v3198, %v3202
    %v3207 = vand.u32 2147483647, %v3197
    %vm3208 = vcmp.eq.f32.partialorder %v3207, 8.507059e+37
    %v3209 = vand.u32 %v3197, 2147483648
    %v3210 = vor.u32 1.1754944e-38, %v3209
    %v3211 = vsel %vm3208, %v3210, %v3206
    %v3212 = vmul.f32 1.0, %v3211
    %v3213 = vtanh.pop %v3079
    %v3214 = vxor.u32 %v3080, 2147483648
    %v3215 = vmul.f32 %v3214, 1.442695
    %v3216 = vpow.pop %v3215
    %v3217 = vadd.f32 %v3216, 1.0
    %v3218 = vrcp.pop %v3217
    %v3219 = vmul.f32 %v3217, %v3218
    %v3220 = vsub.f32 1.0, %v3219
    %v3221 = vmul.f32 %v3218, %v3220
    %v3222 = vadd.f32 %v3218, %v3221
    %vm3223 = vweird.f32 %v3217
    %vm3224 = vweird.f32 %v3218
    %vm3225 = vmor %vm3223, %vm3224
    %v3226 = vsel %vm3225, %v3218, %v3222
    %v3227 = vand.u32 2147483647, %v3217
    %vm3228 = vcmp.eq.f32.partialorder %v3227, 8.507059e+37
    %v3229 = vand.u32 %v3217, 2147483648
    %v3230 = vor.u32 1.1754944e-38, %v3229
    %v3231 = vsel %vm3228, %v3230, %v3226
    %v3232 = vmul.f32 1.0, %v3231
    %v3233 = vmul.f32 %v3212, %v2917
    %v3234 = vmul.f32 %v3193, %v3213
    %v3235 = vadd.f32 %v3233, %v3234
    %v3236 = vtanh.pop %v3235
    %v3237 = vmul.f32 %v3232, %v3236
    %v3238 = vxor.u32 %v3171, 2147483648
    %v3239 = vmul.f32 %v3238, 1.442695
    %v3240 = vpow.pop %v3239
    %v3241 = vadd.f32 %v3240, 1.0
    %v3242 = vrcp.pop %v3241
    %v3243 = vmul.f32 %v3241, %v3242
    %v3244 = vsub.f32 1.0, %v3243
    %v3245 = vmul.f32 %v3242, %v3244
    %v3246 = vadd.f32 %v3242, %v3245
    %vm3247 = vweird.f32 %v3241
    %vm3248 = vweird.f32 %v3242
    %vm3249 = vmor %vm3247, %vm3248
    %v3250 = vsel %vm3249, %v3242, %v3246
    %v3251 = vand.u32 2147483647, %v3241
    %vm3252 = vcmp.eq.f32.partialorder %v3251, 8.507059e+37
    %v3253 = vand.u32 %v3241, 2147483648
    %v3254 = vor.u32 1.1754944e-38, %v3253
    %v3255 = vsel %vm3252, %v3254, %v3250
    %v3256 = vmul.f32 1.0, %v3255
    %v3257 = vxor.u32 %v3172, 2147483648
    %v3258 = vmul.f32 %v3257, 1.442695
    %v3259 = vpow.pop %v3258
    %v3260 = vadd.f32 %v3259, 1.0
    %v3261 = vrcp.pop %v3260
    %v3262 = vmul.f32 %v3260, %v3261
    %v3263 = vsub.f32 1.0, %v3262
    %v3264 = vmul.f32 %v3261, %v3263
    %v3265 = vadd.f32 %v3261, %v3264
    %vm3266 = vweird.f32 %v3260
    %vm3267 = vweird.f32 %v3261
    %vm3268 = vmor %vm3266, %vm3267
    %v3269 = vsel %vm3268, %v3261, %v3265
    %v3270 = vand.u32 2147483647, %v3260
    %vm3271 = vcmp.eq.f32.partialorder %v3270, 8.507059e+37
    %v3272 = vand.u32 %v3260, 2147483648
    %v3273 = vor.u32 1.1754944e-38, %v3272
    %v3274 = vsel %vm3271, %v3273, %v3269
    %v3275 = vmul.f32 1.0, %v3274
    %v3276 = vtanh.pop %v3173
    %v3277 = vxor.u32 %v3174, 2147483648
    %v3278 = vmul.f32 %v3277, 1.442695
    %v3279 = vpow.pop %v3278
    %v3280 = vadd.f32 %v3279, 1.0
    %v3281 = vrcp.pop %v3280
    %v3282 = vmul.f32 %v3280, %v3281
    %v3283 = vsub.f32 1.0, %v3282
    %v3284 = vmul.f32 %v3281, %v3283
    %v3285 = vadd.f32 %v3281, %v3284
    %vm3286 = vweird.f32 %v3280
    %vm3287 = vweird.f32 %v3281
    %vm3288 = vmor %vm3286, %vm3287
    %v3289 = vsel %vm3288, %v3281, %v3285
    %v3290 = vand.u32 2147483647, %v3280
    %vm3291 = vcmp.eq.f32.partialorder %v3290, 8.507059e+37
    %v3292 = vand.u32 %v3280, 2147483648
    %v3293 = vor.u32 1.1754944e-38, %v3292
    %v3294 = vsel %vm3291, %v3293, %v3289
    %v3295 = vmul.f32 1.0, %v3294
    %v3296 = vmul.f32 %v3275, %v2980
    %v3297 = vmul.f32 %v3256, %v3276
    %v3298 = vadd.f32 %v3296, %v3297
    %v3299 = vtanh.pop %v3298
    %v3300 = vmul.f32 %v3295, %v3299
    %s3301 = scalar_lea.vmem [#allocation4], 48
    %3302 = vst [vmem:[%s3301] sm:$0xff] %v3237
    %s3303 = scalar_lea.vmem [#allocation5], 8
    %3304 = vst [vmem:[%s3303] sm:$0xff] %v3300
    %s3305 = smul.addr %s1158, 8
    %s3306 = scalar_lea.vmem [#allocation2], %s3305
    %v3307 = vld [vmem:[%s3306] sm:$0xff]
    %v3308 = vld [vmem:[%s3306 + $0x8] sm:$0xff]
    %v3309 = vld [vmem:[%s3306 + $0x10] sm:$0xff]
    %v3310 = vld [vmem:[%s3306 + $0x18] sm:$0xff]
    %3311 = vmatpush.msra.mxu0 %v262
    %3312 = vmatpush.msra.mxu0 %v258
    %3313 = vmatpush.msra.mxu0 %v254
    %3314 = vmatpush.msra.mxu0 %v250
    %3315 = vmatpush.msra.mxu0 %v246
    %3316 = vmatpush.msra.mxu0 %v242
    %3317 = vmatpush.msra.mxu0 %v238
    %3318 = vmatpush.msra.mxu0 %v234
    %3319 = vmatpush.msra.mxu0 %v230
    %3320 = vmatpush.msra.mxu0 %v226
    %3321 = vmatpush.msra.mxu0 %v222
    %3322 = vmatpush.msra.mxu0 %v218
    %3323 = vmatpush.msra.mxu0 %v214
    %3324 = vmatpush.msra.mxu0 %v210
    %3325 = vmatpush.msra.mxu0 %v206
    %3326 = vmatpush.msra.mxu0 %v202
    %3327 = vmatmul.f32.gmra.mxu0 %v3237
    %v3328 = vpop.f32.mrf.mxu0
    %v3329 = vadd.f32 0.0, %v3328
    %3330 = vdwg.mxu0
    %3331 = vmatpush.msra.mxu0 %v263
    %3332 = vmatpush.msra.mxu0 %v259
    %3333 = vmatpush.msra.mxu0 %v255
    %3334 = vmatpush.msra.mxu0 %v251
    %3335 = vmatpush.msra.mxu0 %v247
    %3336 = vmatpush.msra.mxu0 %v243
    %3337 = vmatpush.msra.mxu0 %v239
    %3338 = vmatpush.msra.mxu0 %v235
    %3339 = vmatpush.msra.mxu0 %v231
    %3340 = vmatpush.msra.mxu0 %v227
    %3341 = vmatpush.msra.mxu0 %v223
    %3342 = vmatpush.msra.mxu0 %v219
    %3343 = vmatpush.msra.mxu0 %v215
    %3344 = vmatpush.msra.mxu0 %v211
    %3345 = vmatpush.msra.mxu0 %v207
    %3346 = vmatpush.msra.mxu0 %v203
    %3347 = vmatmul.f32.gmra.mxu0 %v3237
    %v3348 = vpop.f32.mrf.mxu0
    %v3349 = vadd.f32 0.0, %v3348
    %3350 = vdwg.mxu0
    %3351 = vmatpush.msra.mxu0 %v264
    %3352 = vmatpush.msra.mxu0 %v260
    %3353 = vmatpush.msra.mxu0 %v256
    %3354 = vmatpush.msra.mxu0 %v252
    %3355 = vmatpush.msra.mxu0 %v248
    %3356 = vmatpush.msra.mxu0 %v244
    %3357 = vmatpush.msra.mxu0 %v240
    %3358 = vmatpush.msra.mxu0 %v236
    %3359 = vmatpush.msra.mxu0 %v232
    %3360 = vmatpush.msra.mxu0 %v228
    %3361 = vmatpush.msra.mxu0 %v224
    %3362 = vmatpush.msra.mxu0 %v220
    %3363 = vmatpush.msra.mxu0 %v216
    %3364 = vmatpush.msra.mxu0 %v212
    %3365 = vmatpush.msra.mxu0 %v208
    %3366 = vmatpush.msra.mxu0 %v204
    %3367 = vmatmul.f32.gmra.mxu0 %v3237
    %v3368 = vpop.f32.mrf.mxu0
    %v3369 = vadd.f32 0.0, %v3368
    %3370 = vdwg.mxu0
    %3371 = vmatpush.msra.mxu0 %v265
    %3372 = vmatpush.msra.mxu0 %v261
    %3373 = vmatpush.msra.mxu0 %v257
    %3374 = vmatpush.msra.mxu0 %v253
    %3375 = vmatpush.msra.mxu0 %v249
    %3376 = vmatpush.msra.mxu0 %v245
    %3377 = vmatpush.msra.mxu0 %v241
    %3378 = vmatpush.msra.mxu0 %v237
    %3379 = vmatpush.msra.mxu0 %v233
    %3380 = vmatpush.msra.mxu0 %v229
    %3381 = vmatpush.msra.mxu0 %v225
    %3382 = vmatpush.msra.mxu0 %v221
    %3383 = vmatpush.msra.mxu0 %v217
    %3384 = vmatpush.msra.mxu0 %v213
    %3385 = vmatpush.msra.mxu0 %v209
    %3386 = vmatpush.msra.mxu0 %v205
    %3387 = vmatmul.f32.gmra.mxu0 %v3237
    %v3388 = vpop.f32.mrf.mxu0
    %v3389 = vadd.f32 0.0, %v3388
    %3390 = vdwg.mxu0
    %v3391 = vadd.f32 %v3307, %v3329
    %v3392 = vadd.f32 %v3308, %v3349
    %v3393 = vadd.f32 %v3309, %v3369
    %v3394 = vadd.f32 %v3310, %v3389
    %v3395 = vadd.f32 %v3391, %v1146
    %v3396 = vadd.f32 %v3392, %v1147
    %v3397 = vadd.f32 %v3393, %v1148
    %v3398 = vadd.f32 %v3394, %v1149
    %s3399 = smul.addr %s1054, 8
    %s3400 = scalar_lea.vmem [#allocation3], %s3399
    %v3401 = vld [vmem:[%s3400] sm:$0xff]
    %v3402 = vld [vmem:[%s3400 + $0x8] sm:$0xff]
    %v3403 = vld [vmem:[%s3400 + $0x10] sm:$0xff]
    %v3404 = vld [vmem:[%s3400 + $0x18] sm:$0xff]
    %3405 = vmatpush.msra.mxu0 %v327
    %3406 = vmatpush.msra.mxu0 %v323
    %3407 = vmatpush.msra.mxu0 %v319
    %3408 = vmatpush.msra.mxu0 %v315
    %3409 = vmatpush.msra.mxu0 %v311
    %3410 = vmatpush.msra.mxu0 %v307
    %3411 = vmatpush.msra.mxu0 %v303
    %3412 = vmatpush.msra.mxu0 %v299
    %3413 = vmatpush.msra.mxu0 %v295
    %3414 = vmatpush.msra.mxu0 %v291
    %3415 = vmatpush.msra.mxu0 %v287
    %3416 = vmatpush.msra.mxu0 %v283
    %3417 = vmatpush.msra.mxu0 %v279
    %3418 = vmatpush.msra.mxu0 %v275
    %3419 = vmatpush.msra.mxu0 %v271
    %3420 = vmatpush.msra.mxu0 %v267
    %3421 = vmatmul.f32.gmra.mxu0 %v3300
    %v3422 = vpop.f32.mrf.mxu0
    %v3423 = vadd.f32 0.0, %v3422
    %3424 = vdwg.mxu0
    %3425 = vmatpush.msra.mxu0 %v328
    %3426 = vmatpush.msra.mxu0 %v324
    %3427 = vmatpush.msra.mxu0 %v320
    %3428 = vmatpush.msra.mxu0 %v316
    %3429 = vmatpush.msra.mxu0 %v312
    %3430 = vmatpush.msra.mxu0 %v308
    %3431 = vmatpush.msra.mxu0 %v304
    %3432 = vmatpush.msra.mxu0 %v300
    %3433 = vmatpush.msra.mxu0 %v296
    %3434 = vmatpush.msra.mxu0 %v292
    %3435 = vmatpush.msra.mxu0 %v288
    %3436 = vmatpush.msra.mxu0 %v284
    %3437 = vmatpush.msra.mxu0 %v280
    %3438 = vmatpush.msra.mxu0 %v276
    %3439 = vmatpush.msra.mxu0 %v272
    %3440 = vmatpush.msra.mxu0 %v268
    %3441 = vmatmul.f32.gmra.mxu0 %v3300
    %v3442 = vpop.f32.mrf.mxu0
    %v3443 = vadd.f32 0.0, %v3442
    %3444 = vdwg.mxu0
    %3445 = vmatpush.msra.mxu0 %v329
    %3446 = vmatpush.msra.mxu0 %v325
    %3447 = vmatpush.msra.mxu0 %v321
    %3448 = vmatpush.msra.mxu0 %v317
    %3449 = vmatpush.msra.mxu0 %v313
    %3450 = vmatpush.msra.mxu0 %v309
    %3451 = vmatpush.msra.mxu0 %v305
    %3452 = vmatpush.msra.mxu0 %v301
    %3453 = vmatpush.msra.mxu0 %v297
    %3454 = vmatpush.msra.mxu0 %v293
    %3455 = vmatpush.msra.mxu0 %v289
    %3456 = vmatpush.msra.mxu0 %v285
    %3457 = vmatpush.msra.mxu0 %v281
    %3458 = vmatpush.msra.mxu0 %v277
    %3459 = vmatpush.msra.mxu0 %v273
    %3460 = vmatpush.msra.mxu0 %v269
    %3461 = vmatmul.f32.gmra.mxu0 %v3300
    %v3462 = vpop.f32.mrf.mxu0
    %v3463 = vadd.f32 0.0, %v3462
    %3464 = vdwg.mxu0
    %3465 = vmatpush.msra.mxu0 %v330
    %3466 = vmatpush.msra.mxu0 %v326
    %3467 = vmatpush.msra.mxu0 %v322
    %3468 = vmatpush.msra.mxu0 %v318
    %3469 = vmatpush.msra.mxu0 %v314
    %3470 = vmatpush.msra.mxu0 %v310
    %3471 = vmatpush.msra.mxu0 %v306
    %3472 = vmatpush.msra.mxu0 %v302
    %3473 = vmatpush.msra.mxu0 %v298
    %3474 = vmatpush.msra.mxu0 %v294
    %3475 = vmatpush.msra.mxu0 %v290
    %3476 = vmatpush.msra.mxu0 %v286
    %3477 = vmatpush.msra.mxu0 %v282
    %3478 = vmatpush.msra.mxu0 %v278
    %3479 = vmatpush.msra.mxu0 %v274
    %3480 = vmatpush.msra.mxu0 %v270
    %3481 = vmatmul.f32.gmra.mxu0 %v3300
    %v3482 = vpop.f32.mrf.mxu0
    %v3483 = vadd.f32 0.0, %v3482
    %3484 = vdwg.mxu0
    %v3485 = vadd.f32 %v3401, %v3423
    %v3486 = vadd.f32 %v3402, %v3443
    %v3487 = vadd.f32 %v3403, %v3463
    %v3488 = vadd.f32 %v3404, %v3483
    %v3489 = vadd.f32 %v3485, %v1250
    %v3490 = vadd.f32 %v3486, %v1251
    %v3491 = vadd.f32 %v3487, %v1252
    %v3492 = vadd.f32 %v3488, %v1253
    %v3493 = vxor.u32 %v3395, 2147483648
    %v3494 = vmul.f32 %v3493, 1.442695
    %v3495 = vpow.pop %v3494
    %v3496 = vadd.f32 %v3495, 1.0
    %v3497 = vrcp.pop %v3496
    %v3498 = vmul.f32 %v3496, %v3497
    %v3499 = vsub.f32 1.0, %v3498
    %v3500 = vmul.f32 %v3497, %v3499
    %v3501 = vadd.f32 %v3497, %v3500
    %vm3502 = vweird.f32 %v3496
    %vm3503 = vweird.f32 %v3497
    %vm3504 = vmor %vm3502, %vm3503
    %v3505 = vsel %vm3504, %v3497, %v3501
    %v3506 = vand.u32 2147483647, %v3496
    %vm3507 = vcmp.eq.f32.partialorder %v3506, 8.507059e+37
    %v3508 = vand.u32 %v3496, 2147483648
    %v3509 = vor.u32 1.1754944e-38, %v3508
    %v3510 = vsel %vm3507, %v3509, %v3505
    %v3511 = vmul.f32 1.0, %v3510
    %v3512 = vxor.u32 %v3396, 2147483648
    %v3513 = vmul.f32 %v3512, 1.442695
    %v3514 = vpow.pop %v3513
    %v3515 = vadd.f32 %v3514, 1.0
    %v3516 = vrcp.pop %v3515
    %v3517 = vmul.f32 %v3515, %v3516
    %v3518 = vsub.f32 1.0, %v3517
    %v3519 = vmul.f32 %v3516, %v3518
    %v3520 = vadd.f32 %v3516, %v3519
    %vm3521 = vweird.f32 %v3515
    %vm3522 = vweird.f32 %v3516
    %vm3523 = vmor %vm3521, %vm3522
    %v3524 = vsel %vm3523, %v3516, %v3520
    %v3525 = vand.u32 2147483647, %v3515
    %vm3526 = vcmp.eq.f32.partialorder %v3525, 8.507059e+37
    %v3527 = vand.u32 %v3515, 2147483648
    %v3528 = vor.u32 1.1754944e-38, %v3527
    %v3529 = vsel %vm3526, %v3528, %v3524
    %v3530 = vmul.f32 1.0, %v3529
    %v3531 = vtanh.pop %v3397
    %v3532 = vxor.u32 %v3398, 2147483648
    %v3533 = vmul.f32 %v3532, 1.442695
    %v3534 = vpow.pop %v3533
    %v3535 = vadd.f32 %v3534, 1.0
    %v3536 = vrcp.pop %v3535
    %v3537 = vmul.f32 %v3535, %v3536
    %v3538 = vsub.f32 1.0, %v3537
    %v3539 = vmul.f32 %v3536, %v3538
    %v3540 = vadd.f32 %v3536, %v3539
    %vm3541 = vweird.f32 %v3535
    %vm3542 = vweird.f32 %v3536
    %vm3543 = vmor %vm3541, %vm3542
    %v3544 = vsel %vm3543, %v3536, %v3540
    %v3545 = vand.u32 2147483647, %v3535
    %vm3546 = vcmp.eq.f32.partialorder %v3545, 8.507059e+37
    %v3547 = vand.u32 %v3535, 2147483648
    %v3548 = vor.u32 1.1754944e-38, %v3547
    %v3549 = vsel %vm3546, %v3548, %v3544
    %v3550 = vmul.f32 1.0, %v3549
    %v3551 = vmul.f32 %v3530, %v3235
    %v3552 = vmul.f32 %v3511, %v3531
    %v3553 = vadd.f32 %v3551, %v3552
    %v3554 = vtanh.pop %v3553
    %v3555 = vmul.f32 %v3550, %v3554
    %v3556 = vxor.u32 %v3489, 2147483648
    %v3557 = vmul.f32 %v3556, 1.442695
    %v3558 = vpow.pop %v3557
    %v3559 = vadd.f32 %v3558, 1.0
    %v3560 = vrcp.pop %v3559
    %v3561 = vmul.f32 %v3559, %v3560
    %v3562 = vsub.f32 1.0, %v3561
    %v3563 = vmul.f32 %v3560, %v3562
    %v3564 = vadd.f32 %v3560, %v3563
    %vm3565 = vweird.f32 %v3559
    %vm3566 = vweird.f32 %v3560
    %vm3567 = vmor %vm3565, %vm3566
    %v3568 = vsel %vm3567, %v3560, %v3564
    %v3569 = vand.u32 2147483647, %v3559
    %vm3570 = vcmp.eq.f32.partialorder %v3569, 8.507059e+37
    %v3571 = vand.u32 %v3559, 2147483648
    %v3572 = vor.u32 1.1754944e-38, %v3571
    %v3573 = vsel %vm3570, %v3572, %v3568
    %v3574 = vmul.f32 1.0, %v3573
    %v3575 = vxor.u32 %v3490, 2147483648
    %v3576 = vmul.f32 %v3575, 1.442695
    %v3577 = vpow.pop %v3576
    %v3578 = vadd.f32 %v3577, 1.0
    %v3579 = vrcp.pop %v3578
    %v3580 = vmul.f32 %v3578, %v3579
    %v3581 = vsub.f32 1.0, %v3580
    %v3582 = vmul.f32 %v3579, %v3581
    %v3583 = vadd.f32 %v3579, %v3582
    %vm3584 = vweird.f32 %v3578
    %vm3585 = vweird.f32 %v3579
    %vm3586 = vmor %vm3584, %vm3585
    %v3587 = vsel %vm3586, %v3579, %v3583
    %v3588 = vand.u32 2147483647, %v3578
    %vm3589 = vcmp.eq.f32.partialorder %v3588, 8.507059e+37
    %v3590 = vand.u32 %v3578, 2147483648
    %v3591 = vor.u32 1.1754944e-38, %v3590
    %v3592 = vsel %vm3589, %v3591, %v3587
    %v3593 = vmul.f32 1.0, %v3592
    %v3594 = vtanh.pop %v3491
    %v3595 = vxor.u32 %v3492, 2147483648
    %v3596 = vmul.f32 %v3595, 1.442695
    %v3597 = vpow.pop %v3596
    %v3598 = vadd.f32 %v3597, 1.0
    %v3599 = vrcp.pop %v3598
    %v3600 = vmul.f32 %v3598, %v3599
    %v3601 = vsub.f32 1.0, %v3600
    %v3602 = vmul.f32 %v3599, %v3601
    %v3603 = vadd.f32 %v3599, %v3602
    %vm3604 = vweird.f32 %v3598
    %vm3605 = vweird.f32 %v3599
    %vm3606 = vmor %vm3604, %vm3605
    %v3607 = vsel %vm3606, %v3599, %v3603
    %v3608 = vand.u32 2147483647, %v3598
    %vm3609 = vcmp.eq.f32.partialorder %v3608, 8.507059e+37
    %v3610 = vand.u32 %v3598, 2147483648
    %v3611 = vor.u32 1.1754944e-38, %v3610
    %v3612 = vsel %vm3609, %v3611, %v3607
    %v3613 = vmul.f32 1.0, %v3612
    %v3614 = vmul.f32 %v3593, %v3298
    %v3615 = vmul.f32 %v3574, %v3594
    %v3616 = vadd.f32 %v3614, %v3615
    %v3617 = vtanh.pop %v3616
    %v3618 = vmul.f32 %v3613, %v3617
    %s3619 = scalar_lea.vmem [#allocation4], 56
    %3620 = vst [vmem:[%s3619] sm:$0xff] %v3555
    %3621 = vst [vmem:[#allocation5] sm:$0xff] %v3618
    %3622 = vst [vmem:[#allocation6] sm:$0xff] %v3555
    %3623 = vst [vmem:[%s1048] sm:$0xff] %v3553
    %3624 = vst [vmem:[%s1050] sm:$0xff] %v3618
    %3625 = vst [vmem:[%s1052] sm:$0xff] %v3616
    %v3626 = vld [vmem:[#allocation4] sm:$0xff]
    %v3627 = vld [vmem:[#allocation4 + $0x8] sm:$0xff]
    %v3628 = vld [vmem:[#allocation4 + $0x10] sm:$0xff]
    %v3629 = vld [vmem:[#allocation4 + $0x18] sm:$0xff]
    %v3630 = vld [vmem:[#allocation4 + $0x20] sm:$0xff]
    %v3631 = vld [vmem:[#allocation4 + $0x28] sm:$0xff]
    %v3632 = vld [vmem:[#allocation4 + $0x30] sm:$0xff]
    %v3633 = vld [vmem:[#allocation4 + $0x38] sm:$0xff]
    %v3634 = vpack.c.bf16 %v3627, %v3626
    %v3635 = vpack.c.bf16 %v3629, %v3628
    %v3636 = vpack.c.bf16 %v3631, %v3630
    %v3637 = vpack.c.bf16 %v3633, %v3632
    %v3654 = vunpack.c.l.b16 %v334
    %v3655 = vunpack.c.l.b16 %v335
    %v3656 = vunpack.c.l.b16 %v336
    %v3657 = vunpack.c.l.b16 %v337
    %v3658 = vunpack.c.l.b16 %v338
    %v3659 = vunpack.c.l.b16 %v339
    %v3660 = vunpack.c.l.b16 %v340
    %v3661 = vunpack.c.l.b16 %v341
    %v3662 = vunpack.c.l.b16 %v342
    %v3663 = vunpack.c.l.b16 %v343
    %v3664 = vunpack.c.l.b16 %v344
    %v3665 = vunpack.c.l.b16 %v345
    %v3666 = vunpack.c.l.b16 %v346
    %v3667 = vunpack.c.l.b16 %v347
    %v3668 = vunpack.c.l.b16 %v348
    %v3669 = vunpack.c.l.b16 %v349
    %v3670 = vpack.c.b16 %v3655, %v3654
    %v3671 = vpack.c.b16 %v3657, %v3656
    %v3672 = vpack.c.b16 %v3659, %v3658
    %v3673 = vpack.c.b16 %v3661, %v3660
    %v3674 = vpack.c.b16 %v3663, %v3662
    %v3675 = vpack.c.b16 %v3665, %v3664
    %v3676 = vpack.c.b16 %v3667, %v3666
    %v3677 = vpack.c.b16 %v3669, %v3668
    %3686 = vmatpush.bf16.msra.mxu0 %v3677
    %3687 = vmatpush.bf16.msra.mxu0 %v3676
    %3688 = vmatpush.bf16.msra.mxu0 %v3675
    %3689 = vmatpush.bf16.msra.mxu0 %v3674
    %3690 = vmatpush.bf16.msra.mxu0 %v3673
    %3691 = vmatpush.bf16.msra.mxu0 %v3672
    %3692 = vmatpush.bf16.msra.mxu0 %v3671
    %3693 = vmatpush.bf16.msra.mxu0 %v3670
    %3694 = vmatmul.bf16.gmra.mxu0 %v3634
    %v3695 = vpop.f32.mrf.mxu0
    %v3696 = vadd.f32 0.0, %v3695
    %v3697 = vpop.f32.mrf.mxu0
    %v3698 = vadd.f32 0.0, %v3697
    %3699 = vmatmul.bf16.gmra.mxu0 %v3635
    %v3700 = vpop.f32.mrf.mxu0
    %v3701 = vadd.f32 0.0, %v3700
    %v3702 = vpop.f32.mrf.mxu0
    %v3703 = vadd.f32 0.0, %v3702
    %3704 = vmatmul.bf16.gmra.mxu0 %v3636
    %v3705 = vpop.f32.mrf.mxu0
    %v3706 = vadd.f32 0.0, %v3705
    %v3707 = vpop.f32.mrf.mxu0
    %v3708 = vadd.f32 0.0, %v3707
    %3709 = vmatmul.bf16.gmra.mxu0 %v3637
    %v3710 = vpop.f32.mrf.mxu0
    %v3711 = vadd.f32 0.0, %v3710
    %v3712 = vpop.f32.mrf.mxu0
    %v3713 = vadd.f32 0.0, %v3712
    %3714 = vdwg.mxu0
    %3715 = vst [vmem:[#allocation18] sm:$0xff] %v3696
    %3716 = vst [vmem:[#allocation18 + $0x8] sm:$0xff] %v3698
    %3717 = vst [vmem:[#allocation18 + $0x10] sm:$0xff] %v3701
    %3718 = vst [vmem:[#allocation18 + $0x18] sm:$0xff] %v3703
    %3719 = vst [vmem:[#allocation18 + $0x20] sm:$0xff] %v3706
    %3720 = vst [vmem:[#allocation18 + $0x28] sm:$0xff] %v3708
    %3721 = vst [vmem:[#allocation18 + $0x30] sm:$0xff] %v3711
    %3722 = vst [vmem:[#allocation18 + $0x38] sm:$0xff] %v3713
    %v3723 = vld [vmem:[#allocation5] sm:$0xff]
    %v3724 = vld [vmem:[#allocation5 + $0x8] sm:$0xff]
    %v3725 = vld [vmem:[#allocation5 + $0x10] sm:$0xff]
    %v3726 = vld [vmem:[#allocation5 + $0x18] sm:$0xff]
    %v3727 = vld [vmem:[#allocation5 + $0x20] sm:$0xff]
    %v3728 = vld [vmem:[#allocation5 + $0x28] sm:$0xff]
    %v3729 = vld [vmem:[#allocation5 + $0x30] sm:$0xff]
    %v3730 = vld [vmem:[#allocation5 + $0x38] sm:$0xff]
    %v3731 = vpack.c.bf16 %v3724, %v3723
    %v3732 = vpack.c.bf16 %v3726, %v3725
    %v3733 = vpack.c.bf16 %v3728, %v3727
    %v3734 = vpack.c.bf16 %v3730, %v3729
    %v3751 = vunpack.c.l.b16 %v351
    %v3752 = vunpack.c.l.b16 %v352
    %v3753 = vunpack.c.l.b16 %v353
    %v3754 = vunpack.c.l.b16 %v354
    %v3755 = vunpack.c.l.b16 %v355
    %v3756 = vunpack.c.l.b16 %v356
    %v3757 = vunpack.c.l.b16 %v357
    %v3758 = vunpack.c.l.b16 %v358
    %v3759 = vunpack.c.l.b16 %v359
    %v3760 = vunpack.c.l.b16 %v360
    %v3761 = vunpack.c.l.b16 %v361
    %v3762 = vunpack.c.l.b16 %v362
    %v3763 = vunpack.c.l.b16 %v363
    %v3764 = vunpack.c.l.b16 %v364
    %v3765 = vunpack.c.l.b16 %v365
    %v3766 = vunpack.c.l.b16 %v366
    %v3767 = vpack.c.b16 %v3752, %v3751
    %v3768 = vpack.c.b16 %v3754, %v3753
    %v3769 = vpack.c.b16 %v3756, %v3755
    %v3770 = vpack.c.b16 %v3758, %v3757
    %v3771 = vpack.c.b16 %v3760, %v3759
    %v3772 = vpack.c.b16 %v3762, %v3761
    %v3773 = vpack.c.b16 %v3764, %v3763
    %v3774 = vpack.c.b16 %v3766, %v3765
    %3783 = vmatpush.bf16.msra.mxu0 %v3774
    %3784 = vmatpush.bf16.msra.mxu0 %v3773
    %3785 = vmatpush.bf16.msra.mxu0 %v3772
    %3786 = vmatpush.bf16.msra.mxu0 %v3771
    %3787 = vmatpush.bf16.msra.mxu0 %v3770
    %3788 = vmatpush.bf16.msra.mxu0 %v3769
    %3789 = vmatpush.bf16.msra.mxu0 %v3768
    %3790 = vmatpush.bf16.msra.mxu0 %v3767
    %3791 = vmatmul.bf16.gmra.mxu0 %v3731
    %v3792 = vpop.f32.mrf.mxu0
    %v3793 = vadd.f32 0.0, %v3792
    %v3794 = vpop.f32.mrf.mxu0
    %v3795 = vadd.f32 0.0, %v3794
    %3796 = vmatmul.bf16.gmra.mxu0 %v3732
    %v3797 = vpop.f32.mrf.mxu0
    %v3798 = vadd.f32 0.0, %v3797
    %v3799 = vpop.f32.mrf.mxu0
    %v3800 = vadd.f32 0.0, %v3799
    %3801 = vmatmul.bf16.gmra.mxu0 %v3733
    %v3802 = vpop.f32.mrf.mxu0
    %v3803 = vadd.f32 0.0, %v3802
    %v3804 = vpop.f32.mrf.mxu0
    %v3805 = vadd.f32 0.0, %v3804
    %3806 = vmatmul.bf16.gmra.mxu0 %v3734
    %v3807 = vpop.f32.mrf.mxu0
    %v3808 = vadd.f32 0.0, %v3807
    %v3809 = vpop.f32.mrf.mxu0
    %v3810 = vadd.f32 0.0, %v3809
    %3811 = vdwg.mxu0
    %3812 = vst [vmem:[#allocation19] sm:$0xff] %v3793
    %3813 = vst [vmem:[#allocation19 + $0x8] sm:$0xff] %v3795
    %3814 = vst [vmem:[#allocation19 + $0x10] sm:$0xff] %v3798
    %3815 = vst [vmem:[#allocation19 + $0x18] sm:$0xff] %v3800
    %3816 = vst [vmem:[#allocation19 + $0x20] sm:$0xff] %v3803
    %3817 = vst [vmem:[#allocation19 + $0x28] sm:$0xff] %v3805
    %3818 = vst [vmem:[#allocation19 + $0x30] sm:$0xff] %v3808
    %3819 = vst [vmem:[#allocation19 + $0x38] sm:$0xff] %v3810
    // Predicated region
    $region54: #{tpu_custom_call.1} parent=1 // pred_check
      _
    $region55: #{tpu_custom_call.1} parent=1 // pred_check_branch
      %3821 = sbr.rel (0) target = $region57
    $region56: #{tpu_custom_call.1} parent=1 // pred_region
      %3823 = vsyncadd [#allocation9], 0
      %s3824 = sshll.u32 [#allocation18], 4
      %s3825 = int_to_ptr.vmem [resolvable:$true] %s3824
      %s3826 = sshll.u32 %s6, 4
      %s3827 = int_to_ptr.hbm [resolvable:$true] %s3826
      %3832 = dma.vmem_to_hbm [thread:$0]  %s3825, 1024, %s3827, [#allocation9], 128, 128, 8
    $region57: #{tpu_custom_call.1} parent=1 // pred_fallthru
      _
    // Predicated region
    $region58: #{tpu_custom_call.1} parent=1 // pred_check
      _
    $region59: #{tpu_custom_call.1} parent=1 // pred_check_branch
      %3834 = sbr.rel (0) target = $region61
    $region60: #{tpu_custom_call.1} parent=1 // pred_region
      %s3835 = ssub.s32 0, 0
      %s3836 = smul.u32 8, %s3835
      %3838 = vsyncadd [#allocation20], 0
      %s3839 = smul.addr %s3836, 8
      %s3840 = scalar_lea.hbm %s7, %s3839
      %s3841 = sshll.u32 [#allocation19], 4
      %s3842 = int_to_ptr.vmem [resolvable:$true] %s3841
      %s3843 = sshll.u32 %s3840, 4
      %s3844 = int_to_ptr.hbm [resolvable:$true] %s3843
      %3849 = dma.vmem_to_hbm [thread:$0]  %s3842, 1024, %s3844, [#allocation20], 128, 128, 8
    $region61: #{tpu_custom_call.1} parent=1 // pred_fallthru
      _
    // Predicated region
    $region62: #{tpu_custom_call.1} parent=1 // pred_check
      _
    $region63: #{tpu_custom_call.1} parent=1 // pred_check_branch
      %3851 = sbr.rel (0) target = $region65
    $region64: #{tpu_custom_call.1} parent=1 // pred_region
      %3853 = dma.done [#allocation9], 1024
    $region65: #{tpu_custom_call.1} parent=1 // pred_fallthru
      _
    // Predicated region
    $region66: #{tpu_custom_call.1} parent=1 // pred_check
      _
    $region67: #{tpu_custom_call.1} parent=1 // pred_check_branch
      %3855 = sbr.rel (0) target = $region69
    $region68: #{tpu_custom_call.1} parent=1 // pred_region
      %3857 = dma.done [#allocation20], 1024
    $region69: #{tpu_custom_call.1} parent=1 // pred_fallthru
      _
    %3858 = vsyncpa [#allocation8], 1
    %3859 = vsyncpa [#allocation11], 1
    %3860 = vsyncpa [#allocation14], 1
    %3861 = vsyncpa [#allocation17], 1
    %3862 = vsyncpa [#allocation9], 1
    %3863 = vsyncpa [#allocation20], 1

</llo_original>
